<compile_context>
chip_gen: v7x
topology: tpu7x:2x2x1
jax: 0.10.0
libtpu: 0.0.40
codegen_flags: <defaults>
</compile_context>

<pallas_src>
import jax
import jax.numpy as jnp
from jax.experimental import pallas as pl
from jax.experimental.pallas import tpu as pltpu

EPS = 1e-5  # torch BatchNorm2d default


# ----------------------------------------------------------------------------
# Fused kernel: conv1 -> BN1 -> conv2 -> BN2 -> SiLU -> Linear1 -> Linear2 -> Softmax(dim=0)
# Activation layout: per-channel (N, P) blocks, P = H*W = 576 (lane-dense).
# ----------------------------------------------------------------------------
def fused_net_kernel(x_ref,                                   # (3, N, P) f32   VMEM
                     w1_ref, b1_ref, g1_ref, be1_ref,         # (6,3)(6,)(6,)(6,)   SMEM
                     w2_ref, b2_ref, g2_ref, be2_ref,         # (3,6)(3,)(3,)(3,)   SMEM
                     l1w_ref,                                 # (6, P, 60) bf16 VMEM
                     l1b_ref,                                 # (1, 60) f32     VMEM
                     l2w_ref,                                 # (60, 2) f32     VMEM
                     l2b_ref,                                 # (1, 2)  f32     VMEM
                     o_ref):                                  # (N, 2)  f32     VMEM
    # --- input channels: three lane-dense (N, P) blocks ---
    xc = [x_ref[c] for c in range(3)]

    # --- conv1 (1x1) as VPU broadcast-FMA, then BatchNorm2d(6) with batch stats ---
    h1 = []
    for co in range(6):
        acc = w1_ref[co, 0] * xc[0]
        for ci in range(1, 3):
            acc = acc + w1_ref[co, ci] * xc[ci]
        acc = acc + b1_ref[co]
        m = jnp.mean(acc, keepdims=True)                          # mean over N*H*W
        v = jnp.mean((acc - m) * (acc - m), keepdims=True)        # biased variance (torch train)
        h1.append((acc - m) * jax.lax.rsqrt(v + EPS) * g1_ref[co] + be1_ref[co])

    # --- conv2 (1x1) + BatchNorm2d(3) + SiLU ---
    x1c = []
    for co in range(3):
        acc = w2_ref[co, 0] * h1[0]
        for ci in range(1, 6):
            acc = acc + w2_ref[co, ci] * h1[ci]
        acc = acc + b2_ref[co]
        m = jnp.mean(acc, keepdims=True)
        v = jnp.mean((acc - m) * (acc - m), keepdims=True)
        a = (acc - m) * jax.lax.rsqrt(v + EPS) * g2_ref[co] + be2_ref[co]
        x1c.append(a * jax.nn.sigmoid(a))                         # SiLU

    # --- Linear1 over concat([x1, x]) WITHOUT materializing the concat/flatten ---
    # Channel order [x1_0, x1_1, x1_2, x_0, x_1, x_2] matches torch.concat + NCHW flatten;
    # l1w[c, p, o] = liner1.weight[o, c*P + p]  (prepacked at init time).
    feats = x1c + xc
    y1 = l1b_ref[...]                                             # (1, 60) broadcasts over batch
    for c in range(6):
        y1 = y1 + jnp.dot(feats[c].astype(l1w_ref.dtype), l1w_ref[c],
                          preferred_element_type=jnp.float32)     # (N, 60), f32 accumulation

    # --- Linear2 + Softmax(dim=0) over the batch dimension (as nn.Softmax(dim=0)) ---
    y2 = jnp.dot(y1, l2w_ref[...], preferred_element_type=jnp.float32) + l2b_ref[...]  # (N, 2)
    mx = jnp.max(y2, axis=0, keepdims=True)
    e = jnp.exp(y2 - mx)
    o_ref[...] = e / jnp.sum(e, axis=0, keepdims=True)


def _vmem():
    return pl.BlockSpec(memory_space=pltpu.MemorySpace.VMEM)


def _smem():
    return pl.BlockSpec(memory_space=pltpu.MemorySpace.SMEM)


@jax.jit
def my_net_forward(x, kp):
    """x: (N, 3, H, W) float32 NCHW, with 6*H*W == 3456 (H = W = 24)."""
    N, C, H, W = x.shape
    P = H * W
    # Only glue: a ~14 KiB layout flip of the *input* to channel-leading (C, N, P) so every
    # per-channel block is a lane-dense (N, 576) tile inside the kernel. No intermediates
    # ever leave VMEM; no concat/flatten ops exist at the XLA level.
    x_cnp = jnp.transpose(x.reshape(N, C, P), (1, 0, 2))
    return pl.pallas_call(
        fused_net_kernel,
        out_shape=jax.ShapeDtypeStruct((N, 2), jnp.float32),
        in_specs=[_vmem(),                                    # x (C, N, P)
                  _smem(), _smem(), _smem(), _smem(),         # conv1 / bn1 scalars
                  _smem(), _smem(), _smem(), _smem(),         # conv2 / bn2 scalars
                  _vmem(), _vmem(), _vmem(), _vmem()],        # lin1_w, lin1_b, lin2_w, lin2_b
        out_specs=_vmem(),
    )(x_cnp,
      kp["conv1_w"], kp["conv1_b"], kp["bn1_g"], kp["bn1_b"],
      kp["conv2_w"], kp["conv2_b"], kp["bn2_g"], kp["bn2_b"],
      kp["lin1_w"], kp["lin1_b"], kp["lin2_w"], kp["lin2_b"])


# ----------------------------------------------------------------------------
# Parameters: native PyTorch layouts + one-time repack into kernel layouts.
# ----------------------------------------------------------------------------
def init_torch_params(key):
    ks = jax.random.split(key, 8)
    f32 = jnp.float32
    return {
        "conv1.weight":  0.1 * jax.random.normal(ks[0], (6, 3, 1, 1), f32),
        "conv1.bias":    0.1 * jax.random.normal(ks[1], (6,), f32),
        "bn1.weight":    jnp.ones((6,), f32),
        "bn1.bias":      jnp.zeros((6,), f32),
        "conv2.weight":  0.1 * jax.random.normal(ks[2], (3, 6, 1, 1), f32),
        "conv2.bias":    0.1 * jax.random.normal(ks[3], (3,), f32),
        "bn2.weight":    jnp.ones((3,), f32),
        "bn2.bias":      jnp.zeros((3,), f32),
        "liner1.weight": 0.02 * jax.random.normal(ks[4], (60, 3456), f32),
        "liner1.bias":   0.02 * jax.random.normal(ks[5], (60,), f32),
        "liner2.weight": 0.1 * jax.random.normal(ks[6], (2, 60), f32),
        "liner2.bias":   0.1 * jax.random.normal(ks[7], (2,), f32),
    }


def prepare_kernel_params(tp, spatial):
    """One-time (init-time) repack of torch-layout weights into kernel layouts."""
    # l1w[c, p, o] = liner1.weight[o, c*spatial + p] : per-concat-channel (P, 60) matmul slabs.
    l1w = jnp.transpose(tp["liner1.weight"].reshape(60, 6, spatial), (1, 2, 0))
    return {
        "conv1_w": tp["conv1.weight"].reshape(6, 3),        # SMEM scalar table
        "conv1_b": tp["conv1.bias"],
        "bn1_g":   tp["bn1.weight"],
        "bn1_b":   tp["bn1.bias"],
        "conv2_w": tp["conv2.weight"].reshape(3, 6),
        "conv2_b": tp["conv2.bias"],
        "bn2_g":   tp["bn2.weight"],
        "bn2_b":   tp["bn2.bias"],
        "lin1_w":  l1w.astype(jnp.bfloat16),                # bf16 storage, f32 MXU accumulation
        "lin1_b":  tp["liner1.bias"].reshape(1, 60),
        "lin2_w":  jnp.transpose(tp["liner2.weight"]),      # (60, 2), (in, out)
        "lin2_b":  tp["liner2.bias"].reshape(1, 2),
    }


if __name__ == "__main__":
    key = jax.random.PRNGKey(0)
    k_x, k_p = jax.random.split(key)

    # H = W = 24 is dictated by nn.Linear(3456, 60): 6 * 24 * 24 = 3456.
    N, C, H, W = 2, 3, 24, 24
    x = jax.random.normal(k_x, (N, C, H, W), jnp.float32)
    params = prepare_kernel_params(init_torch_params(k_p), spatial=H * W)

    y = my_net_forward(x, params)
    y = jax.block_until_ready(y)

    assert y.shape == (N, 2)
    # Softmax(dim=0): each column sums to 1 across the batch.
    assert jnp.allclose(jnp.sum(y, axis=0), jnp.ones((2,), jnp.float32), atol=1e-5)
    print("KERNEL_OK")
</pallas_src>

<mosaic_0001>
module attributes {stable_mosaic.version = 11 : i64} {
  func.func @fused_net_kernel(%arg0: memref<3x2x576xf32, #tpu.memory_space<vmem>>, %arg1: memref<6x3xf32, #tpu.memory_space<smem>>, %arg2: memref<6xf32, #tpu.memory_space<smem>>, %arg3: memref<6xf32, #tpu.memory_space<smem>>, %arg4: memref<6xf32, #tpu.memory_space<smem>>, %arg5: memref<3x6xf32, #tpu.memory_space<smem>>, %arg6: memref<3xf32, #tpu.memory_space<smem>>, %arg7: memref<3xf32, #tpu.memory_space<smem>>, %arg8: memref<3xf32, #tpu.memory_space<smem>>, %arg9: memref<6x576x60xbf16, #tpu.memory_space<vmem>>, %arg10: memref<1x60xf32, #tpu.memory_space<vmem>>, %arg11: memref<60x2xf32, #tpu.memory_space<vmem>>, %arg12: memref<1x2xf32, #tpu.memory_space<vmem>>, %arg13: memref<2x2xf32, #tpu.memory_space<vmem>>) attributes {dimension_semantics = [], scalar_prefetch = 0 : i64, scratch_operands = 0 : i64, tpu.core_type = #tpu.core_type<tc>} {
    %c0 = arith.constant 0 : index
    %c0_0 = arith.constant 0 : index
    %c0_1 = arith.constant 0 : index
    %0 = vector.load %arg0[%c0, %c0_0, %c0_1] : memref<3x2x576xf32, #tpu.memory_space<vmem>>, vector<1x2x576xf32>
    %1 = vector.shape_cast %0 : vector<1x2x576xf32> to vector<2x576xf32>
    %c1 = arith.constant 1 : index
    %c0_2 = arith.constant 0 : index
    %c0_3 = arith.constant 0 : index
    %2 = vector.load %arg0[%c1, %c0_2, %c0_3] : memref<3x2x576xf32, #tpu.memory_space<vmem>>, vector<1x2x576xf32>
    %3 = vector.shape_cast %2 : vector<1x2x576xf32> to vector<2x576xf32>
    %c2 = arith.constant 2 : index
    %c0_4 = arith.constant 0 : index
    %c0_5 = arith.constant 0 : index
    %4 = vector.load %arg0[%c2, %c0_4, %c0_5] : memref<3x2x576xf32, #tpu.memory_space<vmem>>, vector<1x2x576xf32>
    %5 = vector.shape_cast %4 : vector<1x2x576xf32> to vector<2x576xf32>
    %c0_6 = arith.constant 0 : index
    %c0_7 = arith.constant 0 : index
    %6 = memref.load %arg1[%c0_6, %c0_7] : memref<6x3xf32, #tpu.memory_space<smem>>
    %7 = vector.broadcast %6 : f32 to vector<2x576xf32>
    %8 = arith.mulf %7, %1 : vector<2x576xf32>
    %c0_8 = arith.constant 0 : index
    %c1_9 = arith.constant 1 : index
    %9 = memref.load %arg1[%c0_8, %c1_9] : memref<6x3xf32, #tpu.memory_space<smem>>
    %10 = vector.broadcast %9 : f32 to vector<2x576xf32>
    %11 = arith.mulf %10, %3 : vector<2x576xf32>
    %12 = arith.addf %8, %11 : vector<2x576xf32>
    %c0_10 = arith.constant 0 : index
    %c2_11 = arith.constant 2 : index
    %13 = memref.load %arg1[%c0_10, %c2_11] : memref<6x3xf32, #tpu.memory_space<smem>>
    %14 = vector.broadcast %13 : f32 to vector<2x576xf32>
    %15 = arith.mulf %14, %5 : vector<2x576xf32>
    %16 = arith.addf %12, %15 : vector<2x576xf32>
    %c0_12 = arith.constant 0 : index
    %17 = memref.load %arg2[%c0_12] : memref<6xf32, #tpu.memory_space<smem>>
    %18 = vector.broadcast %17 : f32 to vector<2x576xf32>
    %19 = arith.addf %16, %18 : vector<2x576xf32>
    %20 = vector.shape_cast %19 : vector<2x576xf32> to vector<1x2x576xf32>
    %cst = arith.constant dense<0.000000e+00> : vector<1xf32>
    %21 = vector.multi_reduction <add>, %20, %cst [1, 2] : vector<1x2x576xf32> to vector<1xf32>
    %22 = vector.shape_cast %21 : vector<1xf32> to vector<1x1x1xf32>
    %23 = vector.extract %22[0, 0, 0] : f32 from vector<1x1x1xf32>
    %24 = vector.broadcast %23 : f32 to vector<1x1xf32>
    %cst_13 = arith.constant 1.152000e+03 : f32
    %25 = vector.broadcast %cst_13 : f32 to vector<1x1xf32>
    %26 = arith.divf %24, %25 : vector<1x1xf32>
    %27 = vector.broadcast %26 : vector<1x1xf32> to vector<2x576xf32>
    %28 = arith.subf %19, %27 : vector<2x576xf32>
    %29 = vector.broadcast %26 : vector<1x1xf32> to vector<2x576xf32>
    %30 = arith.subf %19, %29 : vector<2x576xf32>
    %31 = arith.mulf %28, %30 : vector<2x576xf32>
    %32 = vector.shape_cast %31 : vector<2x576xf32> to vector<1x2x576xf32>
    %cst_14 = arith.constant dense<0.000000e+00> : vector<1xf32>
    %33 = vector.multi_reduction <add>, %32, %cst_14 [1, 2] : vector<1x2x576xf32> to vector<1xf32>
    %34 = vector.shape_cast %33 : vector<1xf32> to vector<1x1x1xf32>
    %35 = vector.extract %34[0, 0, 0] : f32 from vector<1x1x1xf32>
    %36 = vector.broadcast %35 : f32 to vector<1x1xf32>
    %cst_15 = arith.constant 1.152000e+03 : f32
    %37 = vector.broadcast %cst_15 : f32 to vector<1x1xf32>
    %38 = arith.divf %36, %37 : vector<1x1xf32>
    %39 = vector.broadcast %26 : vector<1x1xf32> to vector<2x576xf32>
    %40 = arith.subf %19, %39 : vector<2x576xf32>
    %cst_16 = arith.constant 9.99999974E-6 : f32
    %41 = vector.broadcast %cst_16 : f32 to vector<1x1xf32>
    %42 = arith.addf %38, %41 : vector<1x1xf32>
    %43 = math.rsqrt %42 : vector<1x1xf32>
    %44 = vector.broadcast %43 : vector<1x1xf32> to vector<2x576xf32>
    %45 = arith.mulf %40, %44 : vector<2x576xf32>
    %c0_17 = arith.constant 0 : index
    %46 = memref.load %arg3[%c0_17] : memref<6xf32, #tpu.memory_space<smem>>
    %47 = vector.broadcast %46 : f32 to vector<2x576xf32>
    %48 = arith.mulf %45, %47 : vector<2x576xf32>
    %c0_18 = arith.constant 0 : index
    %49 = memref.load %arg4[%c0_18] : memref<6xf32, #tpu.memory_space<smem>>
    %50 = vector.broadcast %49 : f32 to vector<2x576xf32>
    %51 = arith.addf %48, %50 : vector<2x576xf32>
    %c1_19 = arith.constant 1 : index
    %c0_20 = arith.constant 0 : index
    %52 = memref.load %arg1[%c1_19, %c0_20] : memref<6x3xf32, #tpu.memory_space<smem>>
    %53 = vector.broadcast %52 : f32 to vector<2x576xf32>
    %54 = arith.mulf %53, %1 : vector<2x576xf32>
    %c1_21 = arith.constant 1 : index
    %c1_22 = arith.constant 1 : index
    %55 = memref.load %arg1[%c1_21, %c1_22] : memref<6x3xf32, #tpu.memory_space<smem>>
    %56 = vector.broadcast %55 : f32 to vector<2x576xf32>
    %57 = arith.mulf %56, %3 : vector<2x576xf32>
    %58 = arith.addf %54, %57 : vector<2x576xf32>
    %c1_23 = arith.constant 1 : index
    %c2_24 = arith.constant 2 : index
    %59 = memref.load %arg1[%c1_23, %c2_24] : memref<6x3xf32, #tpu.memory_space<smem>>
    %60 = vector.broadcast %59 : f32 to vector<2x576xf32>
    %61 = arith.mulf %60, %5 : vector<2x576xf32>
    %62 = arith.addf %58, %61 : vector<2x576xf32>
    %c1_25 = arith.constant 1 : index
    %63 = memref.load %arg2[%c1_25] : memref<6xf32, #tpu.memory_space<smem>>
    %64 = vector.broadcast %63 : f32 to vector<2x576xf32>
    %65 = arith.addf %62, %64 : vector<2x576xf32>
    %66 = vector.shape_cast %65 : vector<2x576xf32> to vector<1x2x576xf32>
    %cst_26 = arith.constant dense<0.000000e+00> : vector<1xf32>
    %67 = vector.multi_reduction <add>, %66, %cst_26 [1, 2] : vector<1x2x576xf32> to vector<1xf32>
    %68 = vector.shape_cast %67 : vector<1xf32> to vector<1x1x1xf32>
    %69 = vector.extract %68[0, 0, 0] : f32 from vector<1x1x1xf32>
    %70 = vector.broadcast %69 : f32 to vector<1x1xf32>
    %cst_27 = arith.constant 1.152000e+03 : f32
    %71 = vector.broadcast %cst_27 : f32 to vector<1x1xf32>
    %72 = arith.divf %70, %71 : vector<1x1xf32>
    %73 = vector.broadcast %72 : vector<1x1xf32> to vector<2x576xf32>
    %74 = arith.subf %65, %73 : vector<2x576xf32>
    %75 = vector.broadcast %72 : vector<1x1xf32> to vector<2x576xf32>
    %76 = arith.subf %65, %75 : vector<2x576xf32>
    %77 = arith.mulf %74, %76 : vector<2x576xf32>
    %78 = vector.shape_cast %77 : vector<2x576xf32> to vector<1x2x576xf32>
    %cst_28 = arith.constant dense<0.000000e+00> : vector<1xf32>
    %79 = vector.multi_reduction <add>, %78, %cst_28 [1, 2] : vector<1x2x576xf32> to vector<1xf32>
    %80 = vector.shape_cast %79 : vector<1xf32> to vector<1x1x1xf32>
    %81 = vector.extract %80[0, 0, 0] : f32 from vector<1x1x1xf32>
    %82 = vector.broadcast %81 : f32 to vector<1x1xf32>
    %cst_29 = arith.constant 1.152000e+03 : f32
    %83 = vector.broadcast %cst_29 : f32 to vector<1x1xf32>
    %84 = arith.divf %82, %83 : vector<1x1xf32>
    %85 = vector.broadcast %72 : vector<1x1xf32> to vector<2x576xf32>
    %86 = arith.subf %65, %85 : vector<2x576xf32>
    %cst_30 = arith.constant 9.99999974E-6 : f32
    %87 = vector.broadcast %cst_30 : f32 to vector<1x1xf32>
    %88 = arith.addf %84, %87 : vector<1x1xf32>
    %89 = math.rsqrt %88 : vector<1x1xf32>
    %90 = vector.broadcast %89 : vector<1x1xf32> to vector<2x576xf32>
    %91 = arith.mulf %86, %90 : vector<2x576xf32>
    %c1_31 = arith.constant 1 : index
    %92 = memref.load %arg3[%c1_31] : memref<6xf32, #tpu.memory_space<smem>>
    %93 = vector.broadcast %92 : f32 to vector<2x576xf32>
    %94 = arith.mulf %91, %93 : vector<2x576xf32>
    %c1_32 = arith.constant 1 : index
    %95 = memref.load %arg4[%c1_32] : memref<6xf32, #tpu.memory_space<smem>>
    %96 = vector.broadcast %95 : f32 to vector<2x576xf32>
    %97 = arith.addf %94, %96 : vector<2x576xf32>
    %c2_33 = arith.constant 2 : index
    %c0_34 = arith.constant 0 : index
    %98 = memref.load %arg1[%c2_33, %c0_34] : memref<6x3xf32, #tpu.memory_space<smem>>
    %99 = vector.broadcast %98 : f32 to vector<2x576xf32>
    %100 = arith.mulf %99, %1 : vector<2x576xf32>
    %c2_35 = arith.constant 2 : index
    %c1_36 = arith.constant 1 : index
    %101 = memref.load %arg1[%c2_35, %c1_36] : memref<6x3xf32, #tpu.memory_space<smem>>
    %102 = vector.broadcast %101 : f32 to vector<2x576xf32>
    %103 = arith.mulf %102, %3 : vector<2x576xf32>
    %104 = arith.addf %100, %103 : vector<2x576xf32>
    %c2_37 = arith.constant 2 : index
    %c2_38 = arith.constant 2 : index
    %105 = memref.load %arg1[%c2_37, %c2_38] : memref<6x3xf32, #tpu.memory_space<smem>>
    %106 = vector.broadcast %105 : f32 to vector<2x576xf32>
    %107 = arith.mulf %106, %5 : vector<2x576xf32>
    %108 = arith.addf %104, %107 : vector<2x576xf32>
    %c2_39 = arith.constant 2 : index
    %109 = memref.load %arg2[%c2_39] : memref<6xf32, #tpu.memory_space<smem>>
    %110 = vector.broadcast %109 : f32 to vector<2x576xf32>
    %111 = arith.addf %108, %110 : vector<2x576xf32>
    %112 = vector.shape_cast %111 : vector<2x576xf32> to vector<1x2x576xf32>
    %cst_40 = arith.constant dense<0.000000e+00> : vector<1xf32>
    %113 = vector.multi_reduction <add>, %112, %cst_40 [1, 2] : vector<1x2x576xf32> to vector<1xf32>
    %114 = vector.shape_cast %113 : vector<1xf32> to vector<1x1x1xf32>
    %115 = vector.extract %114[0, 0, 0] : f32 from vector<1x1x1xf32>
    %116 = vector.broadcast %115 : f32 to vector<1x1xf32>
    %cst_41 = arith.constant 1.152000e+03 : f32
    %117 = vector.broadcast %cst_41 : f32 to vector<1x1xf32>
    %118 = arith.divf %116, %117 : vector<1x1xf32>
    %119 = vector.broadcast %118 : vector<1x1xf32> to vector<2x576xf32>
    %120 = arith.subf %111, %119 : vector<2x576xf32>
    %121 = vector.broadcast %118 : vector<1x1xf32> to vector<2x576xf32>
    %122 = arith.subf %111, %121 : vector<2x576xf32>
    %123 = arith.mulf %120, %122 : vector<2x576xf32>
    %124 = vector.shape_cast %123 : vector<2x576xf32> to vector<1x2x576xf32>
    %cst_42 = arith.constant dense<0.000000e+00> : vector<1xf32>
    %125 = vector.multi_reduction <add>, %124, %cst_42 [1, 2] : vector<1x2x576xf32> to vector<1xf32>
    %126 = vector.shape_cast %125 : vector<1xf32> to vector<1x1x1xf32>
    %127 = vector.extract %126[0, 0, 0] : f32 from vector<1x1x1xf32>
    %128 = vector.broadcast %127 : f32 to vector<1x1xf32>
    %cst_43 = arith.constant 1.152000e+03 : f32
    %129 = vector.broadcast %cst_43 : f32 to vector<1x1xf32>
    %130 = arith.divf %128, %129 : vector<1x1xf32>
    %131 = vector.broadcast %118 : vector<1x1xf32> to vector<2x576xf32>
    %132 = arith.subf %111, %131 : vector<2x576xf32>
    %cst_44 = arith.constant 9.99999974E-6 : f32
    %133 = vector.broadcast %cst_44 : f32 to vector<1x1xf32>
    %134 = arith.addf %130, %133 : vector<1x1xf32>
    %135 = math.rsqrt %134 : vector<1x1xf32>
    %136 = vector.broadcast %135 : vector<1x1xf32> to vector<2x576xf32>
    %137 = arith.mulf %132, %136 : vector<2x576xf32>
    %c2_45 = arith.constant 2 : index
    %138 = memref.load %arg3[%c2_45] : memref<6xf32, #tpu.memory_space<smem>>
    %139 = vector.broadcast %138 : f32 to vector<2x576xf32>
    %140 = arith.mulf %137, %139 : vector<2x576xf32>
    %c2_46 = arith.constant 2 : index
    %141 = memref.load %arg4[%c2_46] : memref<6xf32, #tpu.memory_space<smem>>
    %142 = vector.broadcast %141 : f32 to vector<2x576xf32>
    %143 = arith.addf %140, %142 : vector<2x576xf32>
    %c3 = arith.constant 3 : index
    %c0_47 = arith.constant 0 : index
    %144 = memref.load %arg1[%c3, %c0_47] : memref<6x3xf32, #tpu.memory_space<smem>>
    %145 = vector.broadcast %144 : f32 to vector<2x576xf32>
    %146 = arith.mulf %145, %1 : vector<2x576xf32>
    %c3_48 = arith.constant 3 : index
    %c1_49 = arith.constant 1 : index
    %147 = memref.load %arg1[%c3_48, %c1_49] : memref<6x3xf32, #tpu.memory_space<smem>>
    %148 = vector.broadcast %147 : f32 to vector<2x576xf32>
    %149 = arith.mulf %148, %3 : vector<2x576xf32>
    %150 = arith.addf %146, %149 : vector<2x576xf32>
    %c3_50 = arith.constant 3 : index
    %c2_51 = arith.constant 2 : index
    %151 = memref.load %arg1[%c3_50, %c2_51] : memref<6x3xf32, #tpu.memory_space<smem>>
    %152 = vector.broadcast %151 : f32 to vector<2x576xf32>
    %153 = arith.mulf %152, %5 : vector<2x576xf32>
    %154 = arith.addf %150, %153 : vector<2x576xf32>
    %c3_52 = arith.constant 3 : index
    %155 = memref.load %arg2[%c3_52] : memref<6xf32, #tpu.memory_space<smem>>
    %156 = vector.broadcast %155 : f32 to vector<2x576xf32>
    %157 = arith.addf %154, %156 : vector<2x576xf32>
    %158 = vector.shape_cast %157 : vector<2x576xf32> to vector<1x2x576xf32>
    %cst_53 = arith.constant dense<0.000000e+00> : vector<1xf32>
    %159 = vector.multi_reduction <add>, %158, %cst_53 [1, 2] : vector<1x2x576xf32> to vector<1xf32>
    %160 = vector.shape_cast %159 : vector<1xf32> to vector<1x1x1xf32>
    %161 = vector.extract %160[0, 0, 0] : f32 from vector<1x1x1xf32>
    %162 = vector.broadcast %161 : f32 to vector<1x1xf32>
    %cst_54 = arith.constant 1.152000e+03 : f32
    %163 = vector.broadcast %cst_54 : f32 to vector<1x1xf32>
    %164 = arith.divf %162, %163 : vector<1x1xf32>
    %165 = vector.broadcast %164 : vector<1x1xf32> to vector<2x576xf32>
    %166 = arith.subf %157, %165 : vector<2x576xf32>
    %167 = vector.broadcast %164 : vector<1x1xf32> to vector<2x576xf32>
    %168 = arith.subf %157, %167 : vector<2x576xf32>
    %169 = arith.mulf %166, %168 : vector<2x576xf32>
    %170 = vector.shape_cast %169 : vector<2x576xf32> to vector<1x2x576xf32>
    %cst_55 = arith.constant dense<0.000000e+00> : vector<1xf32>
    %171 = vector.multi_reduction <add>, %170, %cst_55 [1, 2] : vector<1x2x576xf32> to vector<1xf32>
    %172 = vector.shape_cast %171 : vector<1xf32> to vector<1x1x1xf32>
    %173 = vector.extract %172[0, 0, 0] : f32 from vector<1x1x1xf32>
    %174 = vector.broadcast %173 : f32 to vector<1x1xf32>
    %cst_56 = arith.constant 1.152000e+03 : f32
    %175 = vector.broadcast %cst_56 : f32 to vector<1x1xf32>
    %176 = arith.divf %174, %175 : vector<1x1xf32>
    %177 = vector.broadcast %164 : vector<1x1xf32> to vector<2x576xf32>
    %178 = arith.subf %157, %177 : vector<2x576xf32>
    %cst_57 = arith.constant 9.99999974E-6 : f32
    %179 = vector.broadcast %cst_57 : f32 to vector<1x1xf32>
    %180 = arith.addf %176, %179 : vector<1x1xf32>
    %181 = math.rsqrt %180 : vector<1x1xf32>
    %182 = vector.broadcast %181 : vector<1x1xf32> to vector<2x576xf32>
    %183 = arith.mulf %178, %182 : vector<2x576xf32>
    %c3_58 = arith.constant 3 : index
    %184 = memref.load %arg3[%c3_58] : memref<6xf32, #tpu.memory_space<smem>>
    %185 = vector.broadcast %184 : f32 to vector<2x576xf32>
    %186 = arith.mulf %183, %185 : vector<2x576xf32>
    %c3_59 = arith.constant 3 : index
    %187 = memref.load %arg4[%c3_59] : memref<6xf32, #tpu.memory_space<smem>>
    %188 = vector.broadcast %187 : f32 to vector<2x576xf32>
    %189 = arith.addf %186, %188 : vector<2x576xf32>
    %c4 = arith.constant 4 : index
    %c0_60 = arith.constant 0 : index
    %190 = memref.load %arg1[%c4, %c0_60] : memref<6x3xf32, #tpu.memory_space<smem>>
    %191 = vector.broadcast %190 : f32 to vector<2x576xf32>
    %192 = arith.mulf %191, %1 : vector<2x576xf32>
    %c4_61 = arith.constant 4 : index
    %c1_62 = arith.constant 1 : index
    %193 = memref.load %arg1[%c4_61, %c1_62] : memref<6x3xf32, #tpu.memory_space<smem>>
    %194 = vector.broadcast %193 : f32 to vector<2x576xf32>
    %195 = arith.mulf %194, %3 : vector<2x576xf32>
    %196 = arith.addf %192, %195 : vector<2x576xf32>
    %c4_63 = arith.constant 4 : index
    %c2_64 = arith.constant 2 : index
    %197 = memref.load %arg1[%c4_63, %c2_64] : memref<6x3xf32, #tpu.memory_space<smem>>
    %198 = vector.broadcast %197 : f32 to vector<2x576xf32>
    %199 = arith.mulf %198, %5 : vector<2x576xf32>
    %200 = arith.addf %196, %199 : vector<2x576xf32>
    %c4_65 = arith.constant 4 : index
    %201 = memref.load %arg2[%c4_65] : memref<6xf32, #tpu.memory_space<smem>>
    %202 = vector.broadcast %201 : f32 to vector<2x576xf32>
    %203 = arith.addf %200, %202 : vector<2x576xf32>
    %204 = vector.shape_cast %203 : vector<2x576xf32> to vector<1x2x576xf32>
    %cst_66 = arith.constant dense<0.000000e+00> : vector<1xf32>
    %205 = vector.multi_reduction <add>, %204, %cst_66 [1, 2] : vector<1x2x576xf32> to vector<1xf32>
    %206 = vector.shape_cast %205 : vector<1xf32> to vector<1x1x1xf32>
    %207 = vector.extract %206[0, 0, 0] : f32 from vector<1x1x1xf32>
    %208 = vector.broadcast %207 : f32 to vector<1x1xf32>
    %cst_67 = arith.constant 1.152000e+03 : f32
    %209 = vector.broadcast %cst_67 : f32 to vector<1x1xf32>
    %210 = arith.divf %208, %209 : vector<1x1xf32>
    %211 = vector.broadcast %210 : vector<1x1xf32> to vector<2x576xf32>
    %212 = arith.subf %203, %211 : vector<2x576xf32>
    %213 = vector.broadcast %210 : vector<1x1xf32> to vector<2x576xf32>
    %214 = arith.subf %203, %213 : vector<2x576xf32>
    %215 = arith.mulf %212, %214 : vector<2x576xf32>
    %216 = vector.shape_cast %215 : vector<2x576xf32> to vector<1x2x576xf32>
    %cst_68 = arith.constant dense<0.000000e+00> : vector<1xf32>
    %217 = vector.multi_reduction <add>, %216, %cst_68 [1, 2] : vector<1x2x576xf32> to vector<1xf32>
    %218 = vector.shape_cast %217 : vector<1xf32> to vector<1x1x1xf32>
    %219 = vector.extract %218[0, 0, 0] : f32 from vector<1x1x1xf32>
    %220 = vector.broadcast %219 : f32 to vector<1x1xf32>
    %cst_69 = arith.constant 1.152000e+03 : f32
    %221 = vector.broadcast %cst_69 : f32 to vector<1x1xf32>
    %222 = arith.divf %220, %221 : vector<1x1xf32>
    %223 = vector.broadcast %210 : vector<1x1xf32> to vector<2x576xf32>
    %224 = arith.subf %203, %223 : vector<2x576xf32>
    %cst_70 = arith.constant 9.99999974E-6 : f32
    %225 = vector.broadcast %cst_70 : f32 to vector<1x1xf32>
    %226 = arith.addf %222, %225 : vector<1x1xf32>
    %227 = math.rsqrt %226 : vector<1x1xf32>
    %228 = vector.broadcast %227 : vector<1x1xf32> to vector<2x576xf32>
    %229 = arith.mulf %224, %228 : vector<2x576xf32>
    %c4_71 = arith.constant 4 : index
    %230 = memref.load %arg3[%c4_71] : memref<6xf32, #tpu.memory_space<smem>>
    %231 = vector.broadcast %230 : f32 to vector<2x576xf32>
    %232 = arith.mulf %229, %231 : vector<2x576xf32>
    %c4_72 = arith.constant 4 : index
    %233 = memref.load %arg4[%c4_72] : memref<6xf32, #tpu.memory_space<smem>>
    %234 = vector.broadcast %233 : f32 to vector<2x576xf32>
    %235 = arith.addf %232, %234 : vector<2x576xf32>
    %c5 = arith.constant 5 : index
    %c0_73 = arith.constant 0 : index
    %236 = memref.load %arg1[%c5, %c0_73] : memref<6x3xf32, #tpu.memory_space<smem>>
    %237 = vector.broadcast %236 : f32 to vector<2x576xf32>
    %238 = arith.mulf %237, %1 : vector<2x576xf32>
    %c5_74 = arith.constant 5 : index
    %c1_75 = arith.constant 1 : index
    %239 = memref.load %arg1[%c5_74, %c1_75] : memref<6x3xf32, #tpu.memory_space<smem>>
    %240 = vector.broadcast %239 : f32 to vector<2x576xf32>
    %241 = arith.mulf %240, %3 : vector<2x576xf32>
    %242 = arith.addf %238, %241 : vector<2x576xf32>
    %c5_76 = arith.constant 5 : index
    %c2_77 = arith.constant 2 : index
    %243 = memref.load %arg1[%c5_76, %c2_77] : memref<6x3xf32, #tpu.memory_space<smem>>
    %244 = vector.broadcast %243 : f32 to vector<2x576xf32>
    %245 = arith.mulf %244, %5 : vector<2x576xf32>
    %246 = arith.addf %242, %245 : vector<2x576xf32>
    %c5_78 = arith.constant 5 : index
    %247 = memref.load %arg2[%c5_78] : memref<6xf32, #tpu.memory_space<smem>>
    %248 = vector.broadcast %247 : f32 to vector<2x576xf32>
    %249 = arith.addf %246, %248 : vector<2x576xf32>
    %250 = vector.shape_cast %249 : vector<2x576xf32> to vector<1x2x576xf32>
    %cst_79 = arith.constant dense<0.000000e+00> : vector<1xf32>
    %251 = vector.multi_reduction <add>, %250, %cst_79 [1, 2] : vector<1x2x576xf32> to vector<1xf32>
    %252 = vector.shape_cast %251 : vector<1xf32> to vector<1x1x1xf32>
    %253 = vector.extract %252[0, 0, 0] : f32 from vector<1x1x1xf32>
    %254 = vector.broadcast %253 : f32 to vector<1x1xf32>
    %cst_80 = arith.constant 1.152000e+03 : f32
    %255 = vector.broadcast %cst_80 : f32 to vector<1x1xf32>
    %256 = arith.divf %254, %255 : vector<1x1xf32>
    %257 = vector.broadcast %256 : vector<1x1xf32> to vector<2x576xf32>
    %258 = arith.subf %249, %257 : vector<2x576xf32>
    %259 = vector.broadcast %256 : vector<1x1xf32> to vector<2x576xf32>
    %260 = arith.subf %249, %259 : vector<2x576xf32>
    %261 = arith.mulf %258, %260 : vector<2x576xf32>
    %262 = vector.shape_cast %261 : vector<2x576xf32> to vector<1x2x576xf32>
    %cst_81 = arith.constant dense<0.000000e+00> : vector<1xf32>
    %263 = vector.multi_reduction <add>, %262, %cst_81 [1, 2] : vector<1x2x576xf32> to vector<1xf32>
    %264 = vector.shape_cast %263 : vector<1xf32> to vector<1x1x1xf32>
    %265 = vector.extract %264[0, 0, 0] : f32 from vector<1x1x1xf32>
    %266 = vector.broadcast %265 : f32 to vector<1x1xf32>
    %cst_82 = arith.constant 1.152000e+03 : f32
    %267 = vector.broadcast %cst_82 : f32 to vector<1x1xf32>
    %268 = arith.divf %266, %267 : vector<1x1xf32>
    %269 = vector.broadcast %256 : vector<1x1xf32> to vector<2x576xf32>
    %270 = arith.subf %249, %269 : vector<2x576xf32>
    %cst_83 = arith.constant 9.99999974E-6 : f32
    %271 = vector.broadcast %cst_83 : f32 to vector<1x1xf32>
    %272 = arith.addf %268, %271 : vector<1x1xf32>
    %273 = math.rsqrt %272 : vector<1x1xf32>
    %274 = vector.broadcast %273 : vector<1x1xf32> to vector<2x576xf32>
    %275 = arith.mulf %270, %274 : vector<2x576xf32>
    %c5_84 = arith.constant 5 : index
    %276 = memref.load %arg3[%c5_84] : memref<6xf32, #tpu.memory_space<smem>>
    %277 = vector.broadcast %276 : f32 to vector<2x576xf32>
    %278 = arith.mulf %275, %277 : vector<2x576xf32>
    %c5_85 = arith.constant 5 : index
    %279 = memref.load %arg4[%c5_85] : memref<6xf32, #tpu.memory_space<smem>>
    %280 = vector.broadcast %279 : f32 to vector<2x576xf32>
    %281 = arith.addf %278, %280 : vector<2x576xf32>
    %c0_86 = arith.constant 0 : index
    %c0_87 = arith.constant 0 : index
    %282 = memref.load %arg5[%c0_86, %c0_87] : memref<3x6xf32, #tpu.memory_space<smem>>
    %283 = vector.broadcast %282 : f32 to vector<2x576xf32>
    %284 = arith.mulf %283, %51 : vector<2x576xf32>
    %c0_88 = arith.constant 0 : index
    %c1_89 = arith.constant 1 : index
    %285 = memref.load %arg5[%c0_88, %c1_89] : memref<3x6xf32, #tpu.memory_space<smem>>
    %286 = vector.broadcast %285 : f32 to vector<2x576xf32>
    %287 = arith.mulf %286, %97 : vector<2x576xf32>
    %288 = arith.addf %284, %287 : vector<2x576xf32>
    %c0_90 = arith.constant 0 : index
    %c2_91 = arith.constant 2 : index
    %289 = memref.load %arg5[%c0_90, %c2_91] : memref<3x6xf32, #tpu.memory_space<smem>>
    %290 = vector.broadcast %289 : f32 to vector<2x576xf32>
    %291 = arith.mulf %290, %143 : vector<2x576xf32>
    %292 = arith.addf %288, %291 : vector<2x576xf32>
    %c0_92 = arith.constant 0 : index
    %c3_93 = arith.constant 3 : index
    %293 = memref.load %arg5[%c0_92, %c3_93] : memref<3x6xf32, #tpu.memory_space<smem>>
    %294 = vector.broadcast %293 : f32 to vector<2x576xf32>
    %295 = arith.mulf %294, %189 : vector<2x576xf32>
    %296 = arith.addf %292, %295 : vector<2x576xf32>
    %c0_94 = arith.constant 0 : index
    %c4_95 = arith.constant 4 : index
    %297 = memref.load %arg5[%c0_94, %c4_95] : memref<3x6xf32, #tpu.memory_space<smem>>
    %298 = vector.broadcast %297 : f32 to vector<2x576xf32>
    %299 = arith.mulf %298, %235 : vector<2x576xf32>
    %300 = arith.addf %296, %299 : vector<2x576xf32>
    %c0_96 = arith.constant 0 : index
    %c5_97 = arith.constant 5 : index
    %301 = memref.load %arg5[%c0_96, %c5_97] : memref<3x6xf32, #tpu.memory_space<smem>>
    %302 = vector.broadcast %301 : f32 to vector<2x576xf32>
    %303 = arith.mulf %302, %281 : vector<2x576xf32>
    %304 = arith.addf %300, %303 : vector<2x576xf32>
    %c0_98 = arith.constant 0 : index
    %305 = memref.load %arg6[%c0_98] : memref<3xf32, #tpu.memory_space<smem>>
    %306 = vector.broadcast %305 : f32 to vector<2x576xf32>
    %307 = arith.addf %304, %306 : vector<2x576xf32>
    %308 = vector.shape_cast %307 : vector<2x576xf32> to vector<1x2x576xf32>
    %cst_99 = arith.constant dense<0.000000e+00> : vector<1xf32>
    %309 = vector.multi_reduction <add>, %308, %cst_99 [1, 2] : vector<1x2x576xf32> to vector<1xf32>
    %310 = vector.shape_cast %309 : vector<1xf32> to vector<1x1x1xf32>
    %311 = vector.extract %310[0, 0, 0] : f32 from vector<1x1x1xf32>
    %312 = vector.broadcast %311 : f32 to vector<1x1xf32>
    %cst_100 = arith.constant 1.152000e+03 : f32
    %313 = vector.broadcast %cst_100 : f32 to vector<1x1xf32>
    %314 = arith.divf %312, %313 : vector<1x1xf32>
    %315 = vector.broadcast %314 : vector<1x1xf32> to vector<2x576xf32>
    %316 = arith.subf %307, %315 : vector<2x576xf32>
    %317 = vector.broadcast %314 : vector<1x1xf32> to vector<2x576xf32>
    %318 = arith.subf %307, %317 : vector<2x576xf32>
    %319 = arith.mulf %316, %318 : vector<2x576xf32>
    %320 = vector.shape_cast %319 : vector<2x576xf32> to vector<1x2x576xf32>
    %cst_101 = arith.constant dense<0.000000e+00> : vector<1xf32>
    %321 = vector.multi_reduction <add>, %320, %cst_101 [1, 2] : vector<1x2x576xf32> to vector<1xf32>
    %322 = vector.shape_cast %321 : vector<1xf32> to vector<1x1x1xf32>
    %323 = vector.extract %322[0, 0, 0] : f32 from vector<1x1x1xf32>
    %324 = vector.broadcast %323 : f32 to vector<1x1xf32>
    %cst_102 = arith.constant 1.152000e+03 : f32
    %325 = vector.broadcast %cst_102 : f32 to vector<1x1xf32>
    %326 = arith.divf %324, %325 : vector<1x1xf32>
    %327 = vector.broadcast %314 : vector<1x1xf32> to vector<2x576xf32>
    %328 = arith.subf %307, %327 : vector<2x576xf32>
    %cst_103 = arith.constant 9.99999974E-6 : f32
    %329 = vector.broadcast %cst_103 : f32 to vector<1x1xf32>
    %330 = arith.addf %326, %329 : vector<1x1xf32>
    %331 = math.rsqrt %330 : vector<1x1xf32>
    %332 = vector.broadcast %331 : vector<1x1xf32> to vector<2x576xf32>
    %333 = arith.mulf %328, %332 : vector<2x576xf32>
    %c0_104 = arith.constant 0 : index
    %334 = memref.load %arg7[%c0_104] : memref<3xf32, #tpu.memory_space<smem>>
    %335 = vector.broadcast %334 : f32 to vector<2x576xf32>
    %336 = arith.mulf %333, %335 : vector<2x576xf32>
    %c0_105 = arith.constant 0 : index
    %337 = memref.load %arg8[%c0_105] : memref<3xf32, #tpu.memory_space<smem>>
    %338 = vector.broadcast %337 : f32 to vector<2x576xf32>
    %339 = arith.addf %336, %338 : vector<2x576xf32>
    %340 = arith.negf %339 : vector<2x576xf32>
    %341 = math.exp %340 : vector<2x576xf32>
    %cst_106 = arith.constant 1.000000e+00 : f32
    %342 = vector.broadcast %cst_106 : f32 to vector<2x576xf32>
    %343 = arith.addf %342, %341 : vector<2x576xf32>
    %344 = arith.divf %342, %343 : vector<2x576xf32>
    %345 = arith.mulf %339, %344 : vector<2x576xf32>
    %c1_107 = arith.constant 1 : index
    %c0_108 = arith.constant 0 : index
    %346 = memref.load %arg5[%c1_107, %c0_108] : memref<3x6xf32, #tpu.memory_space<smem>>
    %347 = vector.broadcast %346 : f32 to vector<2x576xf32>
    %348 = arith.mulf %347, %51 : vector<2x576xf32>
    %c1_109 = arith.constant 1 : index
    %c1_110 = arith.constant 1 : index
    %349 = memref.load %arg5[%c1_109, %c1_110] : memref<3x6xf32, #tpu.memory_space<smem>>
    %350 = vector.broadcast %349 : f32 to vector<2x576xf32>
    %351 = arith.mulf %350, %97 : vector<2x576xf32>
    %352 = arith.addf %348, %351 : vector<2x576xf32>
    %c1_111 = arith.constant 1 : index
    %c2_112 = arith.constant 2 : index
    %353 = memref.load %arg5[%c1_111, %c2_112] : memref<3x6xf32, #tpu.memory_space<smem>>
    %354 = vector.broadcast %353 : f32 to vector<2x576xf32>
    %355 = arith.mulf %354, %143 : vector<2x576xf32>
    %356 = arith.addf %352, %355 : vector<2x576xf32>
    %c1_113 = arith.constant 1 : index
    %c3_114 = arith.constant 3 : index
    %357 = memref.load %arg5[%c1_113, %c3_114] : memref<3x6xf32, #tpu.memory_space<smem>>
    %358 = vector.broadcast %357 : f32 to vector<2x576xf32>
    %359 = arith.mulf %358, %189 : vector<2x576xf32>
    %360 = arith.addf %356, %359 : vector<2x576xf32>
    %c1_115 = arith.constant 1 : index
    %c4_116 = arith.constant 4 : index
    %361 = memref.load %arg5[%c1_115, %c4_116] : memref<3x6xf32, #tpu.memory_space<smem>>
    %362 = vector.broadcast %361 : f32 to vector<2x576xf32>
    %363 = arith.mulf %362, %235 : vector<2x576xf32>
    %364 = arith.addf %360, %363 : vector<2x576xf32>
    %c1_117 = arith.constant 1 : index
    %c5_118 = arith.constant 5 : index
    %365 = memref.load %arg5[%c1_117, %c5_118] : memref<3x6xf32, #tpu.memory_space<smem>>
    %366 = vector.broadcast %365 : f32 to vector<2x576xf32>
    %367 = arith.mulf %366, %281 : vector<2x576xf32>
    %368 = arith.addf %364, %367 : vector<2x576xf32>
    %c1_119 = arith.constant 1 : index
    %369 = memref.load %arg6[%c1_119] : memref<3xf32, #tpu.memory_space<smem>>
    %370 = vector.broadcast %369 : f32 to vector<2x576xf32>
    %371 = arith.addf %368, %370 : vector<2x576xf32>
    %372 = vector.shape_cast %371 : vector<2x576xf32> to vector<1x2x576xf32>
    %cst_120 = arith.constant dense<0.000000e+00> : vector<1xf32>
    %373 = vector.multi_reduction <add>, %372, %cst_120 [1, 2] : vector<1x2x576xf32> to vector<1xf32>
    %374 = vector.shape_cast %373 : vector<1xf32> to vector<1x1x1xf32>
    %375 = vector.extract %374[0, 0, 0] : f32 from vector<1x1x1xf32>
    %376 = vector.broadcast %375 : f32 to vector<1x1xf32>
    %cst_121 = arith.constant 1.152000e+03 : f32
    %377 = vector.broadcast %cst_121 : f32 to vector<1x1xf32>
    %378 = arith.divf %376, %377 : vector<1x1xf32>
    %379 = vector.broadcast %378 : vector<1x1xf32> to vector<2x576xf32>
    %380 = arith.subf %371, %379 : vector<2x576xf32>
    %381 = vector.broadcast %378 : vector<1x1xf32> to vector<2x576xf32>
    %382 = arith.subf %371, %381 : vector<2x576xf32>
    %383 = arith.mulf %380, %382 : vector<2x576xf32>
    %384 = vector.shape_cast %383 : vector<2x576xf32> to vector<1x2x576xf32>
    %cst_122 = arith.constant dense<0.000000e+00> : vector<1xf32>
    %385 = vector.multi_reduction <add>, %384, %cst_122 [1, 2] : vector<1x2x576xf32> to vector<1xf32>
    %386 = vector.shape_cast %385 : vector<1xf32> to vector<1x1x1xf32>
    %387 = vector.extract %386[0, 0, 0] : f32 from vector<1x1x1xf32>
    %388 = vector.broadcast %387 : f32 to vector<1x1xf32>
    %cst_123 = arith.constant 1.152000e+03 : f32
    %389 = vector.broadcast %cst_123 : f32 to vector<1x1xf32>
    %390 = arith.divf %388, %389 : vector<1x1xf32>
    %391 = vector.broadcast %378 : vector<1x1xf32> to vector<2x576xf32>
    %392 = arith.subf %371, %391 : vector<2x576xf32>
    %cst_124 = arith.constant 9.99999974E-6 : f32
    %393 = vector.broadcast %cst_124 : f32 to vector<1x1xf32>
    %394 = arith.addf %390, %393 : vector<1x1xf32>
    %395 = math.rsqrt %394 : vector<1x1xf32>
    %396 = vector.broadcast %395 : vector<1x1xf32> to vector<2x576xf32>
    %397 = arith.mulf %392, %396 : vector<2x576xf32>
    %c1_125 = arith.constant 1 : index
    %398 = memref.load %arg7[%c1_125] : memref<3xf32, #tpu.memory_space<smem>>
    %399 = vector.broadcast %398 : f32 to vector<2x576xf32>
    %400 = arith.mulf %397, %399 : vector<2x576xf32>
    %c1_126 = arith.constant 1 : index
    %401 = memref.load %arg8[%c1_126] : memref<3xf32, #tpu.memory_space<smem>>
    %402 = vector.broadcast %401 : f32 to vector<2x576xf32>
    %403 = arith.addf %400, %402 : vector<2x576xf32>
    %404 = arith.negf %403 : vector<2x576xf32>
    %405 = math.exp %404 : vector<2x576xf32>
    %cst_127 = arith.constant 1.000000e+00 : f32
    %406 = vector.broadcast %cst_127 : f32 to vector<2x576xf32>
    %407 = arith.addf %406, %405 : vector<2x576xf32>
    %408 = arith.divf %406, %407 : vector<2x576xf32>
    %409 = arith.mulf %403, %408 : vector<2x576xf32>
    %c2_128 = arith.constant 2 : index
    %c0_129 = arith.constant 0 : index
    %410 = memref.load %arg5[%c2_128, %c0_129] : memref<3x6xf32, #tpu.memory_space<smem>>
    %411 = vector.broadcast %410 : f32 to vector<2x576xf32>
    %412 = arith.mulf %411, %51 : vector<2x576xf32>
    %c2_130 = arith.constant 2 : index
    %c1_131 = arith.constant 1 : index
    %413 = memref.load %arg5[%c2_130, %c1_131] : memref<3x6xf32, #tpu.memory_space<smem>>
    %414 = vector.broadcast %413 : f32 to vector<2x576xf32>
    %415 = arith.mulf %414, %97 : vector<2x576xf32>
    %416 = arith.addf %412, %415 : vector<2x576xf32>
    %c2_132 = arith.constant 2 : index
    %c2_133 = arith.constant 2 : index
    %417 = memref.load %arg5[%c2_132, %c2_133] : memref<3x6xf32, #tpu.memory_space<smem>>
    %418 = vector.broadcast %417 : f32 to vector<2x576xf32>
    %419 = arith.mulf %418, %143 : vector<2x576xf32>
    %420 = arith.addf %416, %419 : vector<2x576xf32>
    %c2_134 = arith.constant 2 : index
    %c3_135 = arith.constant 3 : index
    %421 = memref.load %arg5[%c2_134, %c3_135] : memref<3x6xf32, #tpu.memory_space<smem>>
    %422 = vector.broadcast %421 : f32 to vector<2x576xf32>
    %423 = arith.mulf %422, %189 : vector<2x576xf32>
    %424 = arith.addf %420, %423 : vector<2x576xf32>
    %c2_136 = arith.constant 2 : index
    %c4_137 = arith.constant 4 : index
    %425 = memref.load %arg5[%c2_136, %c4_137] : memref<3x6xf32, #tpu.memory_space<smem>>
    %426 = vector.broadcast %425 : f32 to vector<2x576xf32>
    %427 = arith.mulf %426, %235 : vector<2x576xf32>
    %428 = arith.addf %424, %427 : vector<2x576xf32>
    %c2_138 = arith.constant 2 : index
    %c5_139 = arith.constant 5 : index
    %429 = memref.load %arg5[%c2_138, %c5_139] : memref<3x6xf32, #tpu.memory_space<smem>>
    %430 = vector.broadcast %429 : f32 to vector<2x576xf32>
    %431 = arith.mulf %430, %281 : vector<2x576xf32>
    %432 = arith.addf %428, %431 : vector<2x576xf32>
    %c2_140 = arith.constant 2 : index
    %433 = memref.load %arg6[%c2_140] : memref<3xf32, #tpu.memory_space<smem>>
    %434 = vector.broadcast %433 : f32 to vector<2x576xf32>
    %435 = arith.addf %432, %434 : vector<2x576xf32>
    %436 = vector.shape_cast %435 : vector<2x576xf32> to vector<1x2x576xf32>
    %cst_141 = arith.constant dense<0.000000e+00> : vector<1xf32>
    %437 = vector.multi_reduction <add>, %436, %cst_141 [1, 2] : vector<1x2x576xf32> to vector<1xf32>
    %438 = vector.shape_cast %437 : vector<1xf32> to vector<1x1x1xf32>
    %439 = vector.extract %438[0, 0, 0] : f32 from vector<1x1x1xf32>
    %440 = vector.broadcast %439 : f32 to vector<1x1xf32>
    %cst_142 = arith.constant 1.152000e+03 : f32
    %441 = vector.broadcast %cst_142 : f32 to vector<1x1xf32>
    %442 = arith.divf %440, %441 : vector<1x1xf32>
    %443 = vector.broadcast %442 : vector<1x1xf32> to vector<2x576xf32>
    %444 = arith.subf %435, %443 : vector<2x576xf32>
    %445 = vector.broadcast %442 : vector<1x1xf32> to vector<2x576xf32>
    %446 = arith.subf %435, %445 : vector<2x576xf32>
    %447 = arith.mulf %444, %446 : vector<2x576xf32>
    %448 = vector.shape_cast %447 : vector<2x576xf32> to vector<1x2x576xf32>
    %cst_143 = arith.constant dense<0.000000e+00> : vector<1xf32>
    %449 = vector.multi_reduction <add>, %448, %cst_143 [1, 2] : vector<1x2x576xf32> to vector<1xf32>
    %450 = vector.shape_cast %449 : vector<1xf32> to vector<1x1x1xf32>
    %451 = vector.extract %450[0, 0, 0] : f32 from vector<1x1x1xf32>
    %452 = vector.broadcast %451 : f32 to vector<1x1xf32>
    %cst_144 = arith.constant 1.152000e+03 : f32
    %453 = vector.broadcast %cst_144 : f32 to vector<1x1xf32>
    %454 = arith.divf %452, %453 : vector<1x1xf32>
    %455 = vector.broadcast %442 : vector<1x1xf32> to vector<2x576xf32>
    %456 = arith.subf %435, %455 : vector<2x576xf32>
    %cst_145 = arith.constant 9.99999974E-6 : f32
    %457 = vector.broadcast %cst_145 : f32 to vector<1x1xf32>
    %458 = arith.addf %454, %457 : vector<1x1xf32>
    %459 = math.rsqrt %458 : vector<1x1xf32>
    %460 = vector.broadcast %459 : vector<1x1xf32> to vector<2x576xf32>
    %461 = arith.mulf %456, %460 : vector<2x576xf32>
    %c2_146 = arith.constant 2 : index
    %462 = memref.load %arg7[%c2_146] : memref<3xf32, #tpu.memory_space<smem>>
    %463 = vector.broadcast %462 : f32 to vector<2x576xf32>
    %464 = arith.mulf %461, %463 : vector<2x576xf32>
    %c2_147 = arith.constant 2 : index
    %465 = memref.load %arg8[%c2_147] : memref<3xf32, #tpu.memory_space<smem>>
    %466 = vector.broadcast %465 : f32 to vector<2x576xf32>
    %467 = arith.addf %464, %466 : vector<2x576xf32>
    %468 = arith.negf %467 : vector<2x576xf32>
    %469 = math.exp %468 : vector<2x576xf32>
    %cst_148 = arith.constant 1.000000e+00 : f32
    %470 = vector.broadcast %cst_148 : f32 to vector<2x576xf32>
    %471 = arith.addf %470, %469 : vector<2x576xf32>
    %472 = arith.divf %470, %471 : vector<2x576xf32>
    %473 = arith.mulf %467, %472 : vector<2x576xf32>
    %c0_149 = arith.constant 0 : index
    %c0_150 = arith.constant 0 : index
    %474 = vector.load %arg10[%c0_149, %c0_150] : memref<1x60xf32, #tpu.memory_space<vmem>>, vector<1x60xf32>
    %475 = arith.truncf %345 : vector<2x576xf32> to vector<2x576xbf16>
    %c0_151 = arith.constant 0 : index
    %c0_152 = arith.constant 0 : index
    %c0_153 = arith.constant 0 : index
    %476 = vector.load %arg9[%c0_151, %c0_152, %c0_153] : memref<6x576x60xbf16, #tpu.memory_space<vmem>>, vector<1x576x60xbf16>
    %477 = vector.shape_cast %476 : vector<1x576x60xbf16> to vector<576x60xbf16>
    %cst_154 = arith.constant dense<0.000000e+00> : vector<2x60xf32>
    %478 = tpu.matmul %475, %477, %cst_154 {dimension_numbers = #tpu.dot_dimension_numbers<[1], [0], [0], [1], [0, 0, 1, 1], [], []>} : vector<2x576xbf16>, vector<576x60xbf16>, vector<2x60xf32> -> vector<2x60xf32>
    %479 = vector.broadcast %474 : vector<1x60xf32> to vector<2x60xf32>
    %480 = arith.addf %479, %478 : vector<2x60xf32>
    %481 = arith.truncf %409 : vector<2x576xf32> to vector<2x576xbf16>
    %c1_155 = arith.constant 1 : index
    %c0_156 = arith.constant 0 : index
    %c0_157 = arith.constant 0 : index
    %482 = vector.load %arg9[%c1_155, %c0_156, %c0_157] : memref<6x576x60xbf16, #tpu.memory_space<vmem>>, vector<1x576x60xbf16>
    %483 = vector.shape_cast %482 : vector<1x576x60xbf16> to vector<576x60xbf16>
    %cst_158 = arith.constant dense<0.000000e+00> : vector<2x60xf32>
    %484 = tpu.matmul %481, %483, %cst_158 {dimension_numbers = #tpu.dot_dimension_numbers<[1], [0], [0], [1], [0, 0, 1, 1], [], []>} : vector<2x576xbf16>, vector<576x60xbf16>, vector<2x60xf32> -> vector<2x60xf32>
    %485 = arith.addf %480, %484 : vector<2x60xf32>
    %486 = arith.truncf %473 : vector<2x576xf32> to vector<2x576xbf16>
    %c2_159 = arith.constant 2 : index
    %c0_160 = arith.constant 0 : index
    %c0_161 = arith.constant 0 : index
    %487 = vector.load %arg9[%c2_159, %c0_160, %c0_161] : memref<6x576x60xbf16, #tpu.memory_space<vmem>>, vector<1x576x60xbf16>
    %488 = vector.shape_cast %487 : vector<1x576x60xbf16> to vector<576x60xbf16>
    %cst_162 = arith.constant dense<0.000000e+00> : vector<2x60xf32>
    %489 = tpu.matmul %486, %488, %cst_162 {dimension_numbers = #tpu.dot_dimension_numbers<[1], [0], [0], [1], [0, 0, 1, 1], [], []>} : vector<2x576xbf16>, vector<576x60xbf16>, vector<2x60xf32> -> vector<2x60xf32>
    %490 = arith.addf %485, %489 : vector<2x60xf32>
    %491 = arith.truncf %1 : vector<2x576xf32> to vector<2x576xbf16>
    %c3_163 = arith.constant 3 : index
    %c0_164 = arith.constant 0 : index
    %c0_165 = arith.constant 0 : index
    %492 = vector.load %arg9[%c3_163, %c0_164, %c0_165] : memref<6x576x60xbf16, #tpu.memory_space<vmem>>, vector<1x576x60xbf16>
    %493 = vector.shape_cast %492 : vector<1x576x60xbf16> to vector<576x60xbf16>
    %cst_166 = arith.constant dense<0.000000e+00> : vector<2x60xf32>
    %494 = tpu.matmul %491, %493, %cst_166 {dimension_numbers = #tpu.dot_dimension_numbers<[1], [0], [0], [1], [0, 0, 1, 1], [], []>} : vector<2x576xbf16>, vector<576x60xbf16>, vector<2x60xf32> -> vector<2x60xf32>
    %495 = arith.addf %490, %494 : vector<2x60xf32>
    %496 = arith.truncf %3 : vector<2x576xf32> to vector<2x576xbf16>
    %c4_167 = arith.constant 4 : index
    %c0_168 = arith.constant 0 : index
    %c0_169 = arith.constant 0 : index
    %497 = vector.load %arg9[%c4_167, %c0_168, %c0_169] : memref<6x576x60xbf16, #tpu.memory_space<vmem>>, vector<1x576x60xbf16>
    %498 = vector.shape_cast %497 : vector<1x576x60xbf16> to vector<576x60xbf16>
    %cst_170 = arith.constant dense<0.000000e+00> : vector<2x60xf32>
    %499 = tpu.matmul %496, %498, %cst_170 {dimension_numbers = #tpu.dot_dimension_numbers<[1], [0], [0], [1], [0, 0, 1, 1], [], []>} : vector<2x576xbf16>, vector<576x60xbf16>, vector<2x60xf32> -> vector<2x60xf32>
    %500 = arith.addf %495, %499 : vector<2x60xf32>
    %501 = arith.truncf %5 : vector<2x576xf32> to vector<2x576xbf16>
    %c5_171 = arith.constant 5 : index
    %c0_172 = arith.constant 0 : index
    %c0_173 = arith.constant 0 : index
    %502 = vector.load %arg9[%c5_171, %c0_172, %c0_173] : memref<6x576x60xbf16, #tpu.memory_space<vmem>>, vector<1x576x60xbf16>
    %503 = vector.shape_cast %502 : vector<1x576x60xbf16> to vector<576x60xbf16>
    %cst_174 = arith.constant dense<0.000000e+00> : vector<2x60xf32>
    %504 = tpu.matmul %501, %503, %cst_174 {dimension_numbers = #tpu.dot_dimension_numbers<[1], [0], [0], [1], [0, 0, 1, 1], [], []>} : vector<2x576xbf16>, vector<576x60xbf16>, vector<2x60xf32> -> vector<2x60xf32>
    %505 = arith.addf %500, %504 : vector<2x60xf32>
    %c0_175 = arith.constant 0 : index
    %c0_176 = arith.constant 0 : index
    %506 = vector.load %arg11[%c0_175, %c0_176] : memref<60x2xf32, #tpu.memory_space<vmem>>, vector<60x2xf32>
    %cst_177 = arith.constant dense<0.000000e+00> : vector<2x2xf32>
    %507 = tpu.matmul %505, %506, %cst_177 {dimension_numbers = #tpu.dot_dimension_numbers<[1], [0], [0], [1], [0, 0, 1, 1], [], []>} : vector<2x60xf32>, vector<60x2xf32>, vector<2x2xf32> -> vector<2x2xf32>
    %c0_178 = arith.constant 0 : index
    %c0_179 = arith.constant 0 : index
    %508 = vector.load %arg12[%c0_178, %c0_179] : memref<1x2xf32, #tpu.memory_space<vmem>>, vector<1x2xf32>
    %509 = vector.broadcast %508 : vector<1x2xf32> to vector<2x2xf32>
    %510 = arith.addf %507, %509 : vector<2x2xf32>
    %cst_180 = arith.constant dense<0xFF800000> : vector<2xf32>
    %511 = vector.multi_reduction <maximumf>, %510, %cst_180 [0] : vector<2x2xf32> to vector<2xf32>
    %512 = vector.shape_cast %511 : vector<2xf32> to vector<1x2xf32>
    %513 = vector.broadcast %512 : vector<1x2xf32> to vector<2x2xf32>
    %514 = arith.subf %510, %513 : vector<2x2xf32>
    %515 = math.exp %514 : vector<2x2xf32>
    %cst_181 = arith.constant dense<0.000000e+00> : vector<2xf32>
    %516 = vector.multi_reduction <add>, %515, %cst_181 [0] : vector<2x2xf32> to vector<2xf32>
    %517 = vector.shape_cast %516 : vector<2xf32> to vector<1x2xf32>
    %518 = vector.broadcast %517 : vector<1x2xf32> to vector<2x2xf32>
    %519 = arith.divf %515, %518 : vector<2x2xf32>
    %c0_182 = arith.constant 0 : index
    %c0_183 = arith.constant 0 : index
    %520 = vector.load %arg13[%c0_182, %c0_183] : memref<2x2xf32, #tpu.memory_space<vmem>>, vector<2x2xf32>
    tpu.vector_store %arg13[%c0_182, %c0_183], %519 {strides = array<i32>} : memref<2x2xf32, #tpu.memory_space<vmem>>, vector<2x2xf32>,
    return
  }
}

</mosaic_0001>

<llo_original>
// kernel: my_net_forward.1
$region0: #{my_net_forward.1}
  #allocation0 [shape = 'u32[]', space=smem, size = 0x4, offset = 0x4, fixed_abs, tag = 'smem constant byte address 0x4 - core index']
  #allocation1 [shape = 'u32[144,128]{1,0:T(1,128)}', space=vmem, size = 0x12000, scoped, tag = 'internal scratch']
  %s0 = inlined_call_operand.vmem [shape: f32[3,2,576], index: 0, kind: input, shape index: {}]
  %s1 = inlined_call_operand.vmem [shape: f32[6,3], index: 1, kind: input, shape index: {}]
  %s2 = inlined_call_operand.vmem [shape: f32[6], index: 2, kind: input, shape index: {}]
  %s3 = inlined_call_operand.vmem [shape: f32[6], index: 3, kind: input, shape index: {}]
  %s4 = inlined_call_operand.vmem [shape: f32[6], index: 4, kind: input, shape index: {}]
  %s5 = inlined_call_operand.vmem [shape: f32[3,6], index: 5, kind: input, shape index: {}]
  %s6 = inlined_call_operand.vmem [shape: f32[3], index: 6, kind: input, shape index: {}]
  %s7 = inlined_call_operand.vmem [shape: f32[3], index: 7, kind: input, shape index: {}]
  %s8 = inlined_call_operand.vmem [shape: f32[3], index: 8, kind: input, shape index: {}]
  %s9 = inlined_call_operand.vmem [shape: bf16[6,576,60], index: 9, kind: input, shape index: {}]
  %s10 = inlined_call_operand.vmem [shape: f32[1,60], index: 10, kind: input, shape index: {}]
  %s11 = inlined_call_operand.vmem [shape: f32[60,2], index: 11, kind: input, shape index: {}]
  %s12 = inlined_call_operand.vmem [shape: f32[1,2], index: 12, kind: input, shape index: {}]
  %s13 = inlined_call_operand.hbm [shape: f32[2,2], index: 13, kind: output, shape index: {}]
  %s14 = sld [smem:[#allocation0]]
  $region94: #{my_net_forward.1} parent=0
    _
  %s16 = ssub.s32 1, %s14
  %s17 = scalar_select 0, %s16, %s14
  $region1: #{my_net_forward.1} parent=0
    #allocation2 [shape = 'u8[4096]{0}', space=smem, size = 0x1000, scoped, tag = 'input window, operand 1, single buffered']
    #allocation3 [shape = 's32[1]{0}', space=sflag, size = 0x4, scoped, tag = 'scoped memory for my_net_forward.1']
    #allocation4 [shape = 's32[1]{0}', space=sflag, size = 0x4, scoped, tag = 'scoped memory for my_net_forward.1']
    #allocation5 [shape = 'u8[512]{0}', space=smem, size = 0x200, scoped, tag = 'input window, operand 2, single buffered']
    #allocation6 [shape = 's32[1]{0}', space=sflag, size = 0x4, scoped, tag = 'scoped memory for my_net_forward.1']
    #allocation7 [shape = 'u8[512]{0}', space=smem, size = 0x200, scoped, tag = 'input window, operand 3, single buffered']
    #allocation8 [shape = 'u8[512]{0}', space=smem, size = 0x200, scoped, tag = 'input window, operand 4, single buffered']
    #allocation9 [shape = 's32[1]{0}', space=sflag, size = 0x4, scoped, tag = 'scoped memory for my_net_forward.1']
    #allocation10 [shape = 'u8[2048]{0}', space=smem, size = 0x800, scoped, tag = 'input window, operand 5, single buffered']
    #allocation11 [shape = 'u8[512]{0}', space=smem, size = 0x200, scoped, tag = 'input window, operand 6, single buffered']
    #allocation12 [shape = 's32[1]{0}', space=sflag, size = 0x4, scoped, tag = 'scoped memory for my_net_forward.1']
    #allocation13 [shape = 'u8[512]{0}', space=smem, size = 0x200, scoped, tag = 'input window, operand 7, single buffered']
    #allocation14 [shape = 'u8[512]{0}', space=smem, size = 0x200, scoped, tag = 'input window, operand 8, single buffered']
    #allocation15 [shape = 's32[1]{0}', space=sflag, size = 0x4, scoped, tag = 'scoped memory for my_net_forward.1']
    #allocation16 [shape = 'u8[1024]{0}', space=vmem, size = 0x400, scoped, tag = 'output window, operand 0, single buffered']
    %18 = vsyncpa [#allocation4], 0
    %19 = vsyncpa [#allocation6], 0
    %20 = vsyncpa [#allocation9], 0
    %21 = vsyncpa [#allocation12], 0
    %22 = vsyncpa [#allocation15], 0
    %23 = vsyncpa [#allocation3], 0
    // Predicated region
    $region2: #{my_net_forward.1} parent=1 // pred_check
      _
    $region3: #{my_net_forward.1} parent=1 // pred_check_branch
      %25 = sbr.rel (0) target = $region5
    $region4: #{my_net_forward.1} parent=1 // pred_region
      _
    $region5: #{my_net_forward.1} parent=1 // pred_fallthru
      _
    // Predicated region
    $region6: #{my_net_forward.1} parent=1 // pred_check
      _
    $region7: #{my_net_forward.1} parent=1 // pred_check_branch
      %27 = sbr.rel (0) target = $region9
    $region8: #{my_net_forward.1} parent=1 // pred_region
      %s29 = ssub.s32 128, 128
      %30 = vsyncadd [#allocation4], %s29
      %s32 = sshll.u32 %s1, 4
      %s33 = int_to_ptr.vmem [resolvable:$true] %s32
      %35 = dma.vmem_to_smem %s33, 128, [#allocation2], [#allocation4]
    $region9: #{my_net_forward.1} parent=1 // pred_fallthru
      _
    // Predicated region
    $region10: #{my_net_forward.1} parent=1 // pred_check
      _
    $region11: #{my_net_forward.1} parent=1 // pred_check_branch
      %37 = sbr.rel (0) target = $region13
    $region12: #{my_net_forward.1} parent=1 // pred_region
      %s39 = ssub.s32 16, 16
      %40 = vsyncadd [#allocation6], %s39
      %s42 = sshll.u32 %s2, 4
      %s43 = int_to_ptr.vmem [resolvable:$true] %s42
      %45 = dma.vmem_to_smem %s43, 16, [#allocation5], [#allocation6]
    $region13: #{my_net_forward.1} parent=1 // pred_fallthru
      _
    // Predicated region
    $region14: #{my_net_forward.1} parent=1 // pred_check
      _
    $region15: #{my_net_forward.1} parent=1 // pred_check_branch
      %47 = sbr.rel (0) target = $region17
    $region16: #{my_net_forward.1} parent=1 // pred_region
      %s49 = ssub.s32 16, 16
      %50 = vsyncadd [#allocation6], %s49
      %s52 = sshll.u32 %s3, 4
      %s53 = int_to_ptr.vmem [resolvable:$true] %s52
      %55 = dma.vmem_to_smem %s53, 16, [#allocation7], [#allocation6]
    $region17: #{my_net_forward.1} parent=1 // pred_fallthru
      _
    // Predicated region
    $region18: #{my_net_forward.1} parent=1 // pred_check
      _
    $region19: #{my_net_forward.1} parent=1 // pred_check_branch
      %57 = sbr.rel (0) target = $region21
    $region20: #{my_net_forward.1} parent=1 // pred_region
      %s59 = ssub.s32 16, 16
      %60 = vsyncadd [#allocation9], %s59
      %s62 = sshll.u32 %s4, 4
      %s63 = int_to_ptr.vmem [resolvable:$true] %s62
      %65 = dma.vmem_to_smem %s63, 16, [#allocation8], [#allocation9]
    $region21: #{my_net_forward.1} parent=1 // pred_fallthru
      _
    // Predicated region
    $region22: #{my_net_forward.1} parent=1 // pred_check
      _
    $region23: #{my_net_forward.1} parent=1 // pred_check_branch
      %67 = sbr.rel (0) target = $region25
    $region24: #{my_net_forward.1} parent=1 // pred_region
      %s69 = ssub.s32 64, 64
      %70 = vsyncadd [#allocation9], %s69
      %s72 = sshll.u32 %s5, 4
      %s73 = int_to_ptr.vmem [resolvable:$true] %s72
      %75 = dma.vmem_to_smem %s73, 64, [#allocation10], [#allocation9]
    $region25: #{my_net_forward.1} parent=1 // pred_fallthru
      _
    // Predicated region
    $region26: #{my_net_forward.1} parent=1 // pred_check
      _
    $region27: #{my_net_forward.1} parent=1 // pred_check_branch
      %77 = sbr.rel (0) target = $region29
    $region28: #{my_net_forward.1} parent=1 // pred_region
      %s79 = ssub.s32 16, 16
      %80 = vsyncadd [#allocation12], %s79
      %s82 = sshll.u32 %s6, 4
      %s83 = int_to_ptr.vmem [resolvable:$true] %s82
      %85 = dma.vmem_to_smem %s83, 16, [#allocation11], [#allocation12]
    $region29: #{my_net_forward.1} parent=1 // pred_fallthru
      _
    // Predicated region
    $region30: #{my_net_forward.1} parent=1 // pred_check
      _
    $region31: #{my_net_forward.1} parent=1 // pred_check_branch
      %87 = sbr.rel (0) target = $region33
    $region32: #{my_net_forward.1} parent=1 // pred_region
      %s89 = ssub.s32 16, 16
      %90 = vsyncadd [#allocation12], %s89
      %s92 = sshll.u32 %s7, 4
      %s93 = int_to_ptr.vmem [resolvable:$true] %s92
      %95 = dma.vmem_to_smem %s93, 16, [#allocation13], [#allocation12]
    $region33: #{my_net_forward.1} parent=1 // pred_fallthru
      _
    // Predicated region
    $region34: #{my_net_forward.1} parent=1 // pred_check
      _
    $region35: #{my_net_forward.1} parent=1 // pred_check_branch
      %97 = sbr.rel (0) target = $region37
    $region36: #{my_net_forward.1} parent=1 // pred_region
      %s99 = ssub.s32 16, 16
      %100 = vsyncadd [#allocation15], %s99
      %s102 = sshll.u32 %s8, 4
      %s103 = int_to_ptr.vmem [resolvable:$true] %s102
      %105 = dma.vmem_to_smem %s103, 16, [#allocation14], [#allocation15]
    $region37: #{my_net_forward.1} parent=1 // pred_fallthru
      _
    // Predicated region
    $region38: #{my_net_forward.1} parent=1 // pred_check
      _
    $region39: #{my_net_forward.1} parent=1 // pred_check_branch
      %107 = sbr.rel (0) target = $region41
    $region40: #{my_net_forward.1} parent=1 // pred_region
      _
    $region41: #{my_net_forward.1} parent=1 // pred_fallthru
      _
    // Predicated region
    $region42: #{my_net_forward.1} parent=1 // pred_check
      _
    $region43: #{my_net_forward.1} parent=1 // pred_check_branch
      %109 = sbr.rel (0) target = $region45
    $region44: #{my_net_forward.1} parent=1 // pred_region
      _
    $region45: #{my_net_forward.1} parent=1 // pred_fallthru
      _
    // Predicated region
    $region46: #{my_net_forward.1} parent=1 // pred_check
      _
    $region47: #{my_net_forward.1} parent=1 // pred_check_branch
      %111 = sbr.rel (0) target = $region49
    $region48: #{my_net_forward.1} parent=1 // pred_region
      _
    $region49: #{my_net_forward.1} parent=1 // pred_fallthru
      _
    // Predicated region
    $region50: #{my_net_forward.1} parent=1 // pred_check
      _
    $region51: #{my_net_forward.1} parent=1 // pred_check_branch
      %113 = sbr.rel (0) target = $region53
    $region52: #{my_net_forward.1} parent=1 // pred_region
      _
    $region53: #{my_net_forward.1} parent=1 // pred_fallthru
      _
    // Predicated region
    $region54: #{my_net_forward.1} parent=1 // pred_check
      _
    $region55: #{my_net_forward.1} parent=1 // pred_check_branch
      %115 = sbr.rel (0) target = $region57
    $region56: #{my_net_forward.1} parent=1 // pred_region
      %116 = dma.done [#allocation4], 128
    $region57: #{my_net_forward.1} parent=1 // pred_fallthru
      _
    // Predicated region
    $region58: #{my_net_forward.1} parent=1 // pred_check
      _
    $region59: #{my_net_forward.1} parent=1 // pred_check_branch
      %118 = sbr.rel (0) target = $region61
    $region60: #{my_net_forward.1} parent=1 // pred_region
      %119 = dma.done [#allocation6], 16
    $region61: #{my_net_forward.1} parent=1 // pred_fallthru
      _
    // Predicated region
    $region62: #{my_net_forward.1} parent=1 // pred_check
      _
    $region63: #{my_net_forward.1} parent=1 // pred_check_branch
      %121 = sbr.rel (0) target = $region65
    $region64: #{my_net_forward.1} parent=1 // pred_region
      %122 = dma.done [#allocation6], 16
    $region65: #{my_net_forward.1} parent=1 // pred_fallthru
      _
    // Predicated region
    $region66: #{my_net_forward.1} parent=1 // pred_check
      _
    $region67: #{my_net_forward.1} parent=1 // pred_check_branch
      %124 = sbr.rel (0) target = $region69
    $region68: #{my_net_forward.1} parent=1 // pred_region
      %125 = dma.done [#allocation9], 16
    $region69: #{my_net_forward.1} parent=1 // pred_fallthru
      _
    // Predicated region
    $region70: #{my_net_forward.1} parent=1 // pred_check
      _
    $region71: #{my_net_forward.1} parent=1 // pred_check_branch
      %127 = sbr.rel (0) target = $region73
    $region72: #{my_net_forward.1} parent=1 // pred_region
      %128 = dma.done [#allocation9], 64
    $region73: #{my_net_forward.1} parent=1 // pred_fallthru
      _
    // Predicated region
    $region74: #{my_net_forward.1} parent=1 // pred_check
      _
    $region75: #{my_net_forward.1} parent=1 // pred_check_branch
      %130 = sbr.rel (0) target = $region77
    $region76: #{my_net_forward.1} parent=1 // pred_region
      %131 = dma.done [#allocation12], 16
    $region77: #{my_net_forward.1} parent=1 // pred_fallthru
      _
    // Predicated region
    $region78: #{my_net_forward.1} parent=1 // pred_check
      _
    $region79: #{my_net_forward.1} parent=1 // pred_check_branch
      %133 = sbr.rel (0) target = $region81
    $region80: #{my_net_forward.1} parent=1 // pred_region
      %134 = dma.done [#allocation12], 16
    $region81: #{my_net_forward.1} parent=1 // pred_fallthru
      _
    // Predicated region
    $region82: #{my_net_forward.1} parent=1 // pred_check
      _
    $region83: #{my_net_forward.1} parent=1 // pred_check_branch
      %136 = sbr.rel (0) target = $region85
    $region84: #{my_net_forward.1} parent=1 // pred_region
      %137 = dma.done [#allocation15], 16
    $region85: #{my_net_forward.1} parent=1 // pred_fallthru
      _
    %138 = sfence
    %v140 = vld [vmem:[%s0] sm:$0xff]
    %v141 = vld [vmem:[%s0 + $0x8] sm:$0x3]
    %s142 = scalar_lea.vmem %s0, 10
    %v143 = vld [vmem:[%s142] sm:$0xff]
    %v144 = vld [vmem:[%s142 + $0x8] sm:$0x3]
    %s145 = scalar_lea.vmem %s0, 20
    %v146 = vld [vmem:[%s145] sm:$0xff]
    %v147 = vld [vmem:[%s145 + $0x8] sm:$0x3]
    %s148 = sld [smem:[#allocation2]]
    %v149 = vstv %s148
    %v150 = vmul.f32 %v149, %v140
    %v151 = vmul.f32 %v149, %v141
    %s152 = sld [smem:[#allocation2 + $0x1]]
    %v153 = vstv %s152
    %v154 = vmul.f32 %v153, %v143
    %v155 = vmul.f32 %v153, %v144
    %v156 = vadd.f32 %v150, %v154
    %v157 = vadd.f32 %v151, %v155
    %s158 = sld [smem:[#allocation2 + $0x2]]
    %v159 = vstv %s158
    %v160 = vmul.f32 %v159, %v146
    %v161 = vmul.f32 %v159, %v147
    %v162 = vadd.f32 %v156, %v160
    %v163 = vadd.f32 %v157, %v161
    %s164 = sld [smem:[#allocation5]]
    %v165 = vstv %s164
    %v166 = vadd.f32 %v162, %v165
    %v167 = vadd.f32 %v163, %v165
    %v170 = vcombine.high %v166, %v166
    %v172 = vunpack.c.l.s4 1983009808
    %v173 = vunpack.c.0.s8 %v172
    %v174 = vlaneseq
    %v175 = vshrl.u32 %v174, 7
    %v176 = vsub.s32 %v173, %v175
    %v177 = vrot.slane %v166, %v176
    %v179 = vunpack.c.l.s4 1983009808
    %v180 = vunpack.c.0.s8 %v179
    %v181 = vlaneseq
    %v182 = vshrl.u32 %v181, 7
    %v183 = vsub.s32 %v180, %v182
    %v184 = vrot.slane %v170, %v183
    %v185 = vcombine.high %v177, %v177
    %v186 = vcombine.high %v184, %v184
    %v188 = vunpack.c.l.s4 1983009808
    %v189 = vunpack.c.0.s8 %v188
    %v190 = vlaneseq
    %v191 = vshrl.u32 %v190, 7
    %v192 = vsub.s32 %v189, %v191
    %v193 = vrot.slane %v167, %v192
    %vm199 = vcmask 1041408
    %v200 = vsel %vm199, %v177, 0.0
    %v201 = vsel %vm199, %v185, 0.0
    %v202 = vadd.f32 %v200, %v201
    %v203 = vsel %vm199, %v184, 0.0
    %v204 = vadd.f32 %v202, %v203
    %v205 = vsel %vm199, %v186, 0.0
    %v206 = vadd.f32 %v204, %v205
    %vm207 = vcmask 517120
    %v208 = vsel %vm207, %v193, 0.0
    %v209 = vadd.f32 %v206, %v208
    %210 = vadd.xlane.f32.xlu0 %v209
    %v211 = vpop.xlane.xlu0 %210
    %v212 = vrot.slane %v211, 4
    %v213 = vadd.f32 %v211, %v212
    %v214 = vrot.slane %v213, 2
    %v215 = vadd.f32 %v213, %v214
    %v216 = vrot.slane %v215, 1
    %v217 = vadd.f32 %v215, %v216
    %s218 = vtos %v217
    %v219 = vstv %s218
    %v220 = vrcp.pop 1152.0
    %v221 = vmul.f32 %v219, %v220
    %v222 = vsub.f32 %v166, %v221
    %v223 = vsub.f32 %v167, %v221
    %v224 = vmul.f32 %v222, %v222
    %v225 = vmul.f32 %v223, %v223
    %v228 = vcombine.high %v224, %v224
    %v230 = vunpack.c.l.s4 1983009808
    %v231 = vunpack.c.0.s8 %v230
    %v232 = vlaneseq
    %v233 = vshrl.u32 %v232, 7
    %v234 = vsub.s32 %v231, %v233
    %v235 = vrot.slane %v224, %v234
    %v237 = vunpack.c.l.s4 1983009808
    %v238 = vunpack.c.0.s8 %v237
    %v239 = vlaneseq
    %v240 = vshrl.u32 %v239, 7
    %v241 = vsub.s32 %v238, %v240
    %v242 = vrot.slane %v228, %v241
    %v243 = vcombine.high %v235, %v235
    %v244 = vcombine.high %v242, %v242
    %v246 = vunpack.c.l.s4 1983009808
    %v247 = vunpack.c.0.s8 %v246
    %v248 = vlaneseq
    %v249 = vshrl.u32 %v248, 7
    %v250 = vsub.s32 %v247, %v249
    %v251 = vrot.slane %v225, %v250
    %v257 = vsel %vm199, %v235, 0.0
    %v258 = vsel %vm199, %v243, 0.0
    %v259 = vadd.f32 %v257, %v258
    %v260 = vsel %vm199, %v242, 0.0
    %v261 = vadd.f32 %v259, %v260
    %v262 = vsel %vm199, %v244, 0.0
    %v263 = vadd.f32 %v261, %v262
    %v264 = vsel %vm207, %v251, 0.0
    %v265 = vadd.f32 %v263, %v264
    %266 = vadd.xlane.f32.xlu0 %v265
    %v267 = vpop.xlane.xlu0 %266
    %v268 = vrot.slane %v267, 4
    %v269 = vadd.f32 %v267, %v268
    %v270 = vrot.slane %v269, 2
    %v271 = vadd.f32 %v269, %v270
    %v272 = vrot.slane %v271, 1
    %v273 = vadd.f32 %v271, %v272
    %s274 = vtos %v273
    %v275 = vstv %s274
    %v276 = vmul.f32 %v275, %v220
    %v277 = vadd.f32 %v276, 1e-05
    %v278 = vrsqrt.pop %v277
    %v279 = vmul.f32 %v222, %v278
    %v280 = vmul.f32 %v223, %v278
    %s281 = sld [smem:[#allocation7]]
    %v282 = vstv %s281
    %v283 = vmul.f32 %v279, %v282
    %v284 = vmul.f32 %v280, %v282
    %s285 = sld [smem:[#allocation8]]
    %v286 = vstv %s285
    %v287 = vadd.f32 %v283, %v286
    %v288 = vadd.f32 %v284, %v286
    %s289 = sld [smem:[#allocation2 + $0x80]]
    %v290 = vstv %s289
    %v291 = vmul.f32 %v290, %v140
    %v292 = vmul.f32 %v290, %v141
    %s293 = sld [smem:[#allocation2 + $0x81]]
    %v294 = vstv %s293
    %v295 = vmul.f32 %v294, %v143
    %v296 = vmul.f32 %v294, %v144
    %v297 = vadd.f32 %v291, %v295
    %v298 = vadd.f32 %v292, %v296
    %s299 = sld [smem:[#allocation2 + $0x82]]
    %v300 = vstv %s299
    %v301 = vmul.f32 %v300, %v146
    %v302 = vmul.f32 %v300, %v147
    %v303 = vadd.f32 %v297, %v301
    %v304 = vadd.f32 %v298, %v302
    %s305 = sld [smem:[#allocation5 + $0x1]]
    %v306 = vstv %s305
    %v307 = vadd.f32 %v303, %v306
    %v308 = vadd.f32 %v304, %v306
    %v311 = vcombine.high %v307, %v307
    %v313 = vunpack.c.l.s4 1983009808
    %v314 = vunpack.c.0.s8 %v313
    %v315 = vlaneseq
    %v316 = vshrl.u32 %v315, 7
    %v317 = vsub.s32 %v314, %v316
    %v318 = vrot.slane %v307, %v317
    %v320 = vunpack.c.l.s4 1983009808
    %v321 = vunpack.c.0.s8 %v320
    %v322 = vlaneseq
    %v323 = vshrl.u32 %v322, 7
    %v324 = vsub.s32 %v321, %v323
    %v325 = vrot.slane %v311, %v324
    %v326 = vcombine.high %v318, %v318
    %v327 = vcombine.high %v325, %v325
    %v329 = vunpack.c.l.s4 1983009808
    %v330 = vunpack.c.0.s8 %v329
    %v331 = vlaneseq
    %v332 = vshrl.u32 %v331, 7
    %v333 = vsub.s32 %v330, %v332
    %v334 = vrot.slane %v308, %v333
    %v340 = vsel %vm199, %v318, 0.0
    %v341 = vsel %vm199, %v326, 0.0
    %v342 = vadd.f32 %v340, %v341
    %v343 = vsel %vm199, %v325, 0.0
    %v344 = vadd.f32 %v342, %v343
    %v345 = vsel %vm199, %v327, 0.0
    %v346 = vadd.f32 %v344, %v345
    %v347 = vsel %vm207, %v334, 0.0
    %v348 = vadd.f32 %v346, %v347
    %349 = vadd.xlane.f32.xlu0 %v348
    %v350 = vpop.xlane.xlu0 %349
    %v351 = vrot.slane %v350, 4
    %v352 = vadd.f32 %v350, %v351
    %v353 = vrot.slane %v352, 2
    %v354 = vadd.f32 %v352, %v353
    %v355 = vrot.slane %v354, 1
    %v356 = vadd.f32 %v354, %v355
    %s357 = vtos %v356
    %v358 = vstv %s357
    %v359 = vmul.f32 %v358, %v220
    %v360 = vsub.f32 %v307, %v359
    %v361 = vsub.f32 %v308, %v359
    %v362 = vmul.f32 %v360, %v360
    %v363 = vmul.f32 %v361, %v361
    %v366 = vcombine.high %v362, %v362
    %v368 = vunpack.c.l.s4 1983009808
    %v369 = vunpack.c.0.s8 %v368
    %v370 = vlaneseq
    %v371 = vshrl.u32 %v370, 7
    %v372 = vsub.s32 %v369, %v371
    %v373 = vrot.slane %v362, %v372
    %v375 = vunpack.c.l.s4 1983009808
    %v376 = vunpack.c.0.s8 %v375
    %v377 = vlaneseq
    %v378 = vshrl.u32 %v377, 7
    %v379 = vsub.s32 %v376, %v378
    %v380 = vrot.slane %v366, %v379
    %v381 = vcombine.high %v373, %v373
    %v382 = vcombine.high %v380, %v380
    %v384 = vunpack.c.l.s4 1983009808
    %v385 = vunpack.c.0.s8 %v384
    %v386 = vlaneseq
    %v387 = vshrl.u32 %v386, 7
    %v388 = vsub.s32 %v385, %v387
    %v389 = vrot.slane %v363, %v388
    %v395 = vsel %vm199, %v373, 0.0
    %v396 = vsel %vm199, %v381, 0.0
    %v397 = vadd.f32 %v395, %v396
    %v398 = vsel %vm199, %v380, 0.0
    %v399 = vadd.f32 %v397, %v398
    %v400 = vsel %vm199, %v382, 0.0
    %v401 = vadd.f32 %v399, %v400
    %v402 = vsel %vm207, %v389, 0.0
    %v403 = vadd.f32 %v401, %v402
    %404 = vadd.xlane.f32.xlu0 %v403
    %v405 = vpop.xlane.xlu0 %404
    %v406 = vrot.slane %v405, 4
    %v407 = vadd.f32 %v405, %v406
    %v408 = vrot.slane %v407, 2
    %v409 = vadd.f32 %v407, %v408
    %v410 = vrot.slane %v409, 1
    %v411 = vadd.f32 %v409, %v410
    %s412 = vtos %v411
    %v413 = vstv %s412
    %v414 = vmul.f32 %v413, %v220
    %v415 = vadd.f32 %v414, 1e-05
    %v416 = vrsqrt.pop %v415
    %v417 = vmul.f32 %v360, %v416
    %v418 = vmul.f32 %v361, %v416
    %s419 = sld [smem:[#allocation7 + $0x1]]
    %v420 = vstv %s419
    %v421 = vmul.f32 %v417, %v420
    %v422 = vmul.f32 %v418, %v420
    %s423 = sld [smem:[#allocation8 + $0x1]]
    %v424 = vstv %s423
    %v425 = vadd.f32 %v421, %v424
    %v426 = vadd.f32 %v422, %v424
    %s427 = sld [smem:[#allocation2 + $0x100]]
    %v428 = vstv %s427
    %v429 = vmul.f32 %v428, %v140
    %v430 = vmul.f32 %v428, %v141
    %s431 = sld [smem:[#allocation2 + $0x101]]
    %v432 = vstv %s431
    %v433 = vmul.f32 %v432, %v143
    %v434 = vmul.f32 %v432, %v144
    %v435 = vadd.f32 %v429, %v433
    %v436 = vadd.f32 %v430, %v434
    %s437 = sld [smem:[#allocation2 + $0x102]]
    %v438 = vstv %s437
    %v439 = vmul.f32 %v438, %v146
    %v440 = vmul.f32 %v438, %v147
    %v441 = vadd.f32 %v435, %v439
    %v442 = vadd.f32 %v436, %v440
    %s443 = sld [smem:[#allocation5 + $0x2]]
    %v444 = vstv %s443
    %v445 = vadd.f32 %v441, %v444
    %v446 = vadd.f32 %v442, %v444
    %v449 = vcombine.high %v445, %v445
    %v451 = vunpack.c.l.s4 1983009808
    %v452 = vunpack.c.0.s8 %v451
    %v453 = vlaneseq
    %v454 = vshrl.u32 %v453, 7
    %v455 = vsub.s32 %v452, %v454
    %v456 = vrot.slane %v445, %v455
    %v458 = vunpack.c.l.s4 1983009808
    %v459 = vunpack.c.0.s8 %v458
    %v460 = vlaneseq
    %v461 = vshrl.u32 %v460, 7
    %v462 = vsub.s32 %v459, %v461
    %v463 = vrot.slane %v449, %v462
    %v464 = vcombine.high %v456, %v456
    %v465 = vcombine.high %v463, %v463
    %v467 = vunpack.c.l.s4 1983009808
    %v468 = vunpack.c.0.s8 %v467
    %v469 = vlaneseq
    %v470 = vshrl.u32 %v469, 7
    %v471 = vsub.s32 %v468, %v470
    %v472 = vrot.slane %v446, %v471
    %v478 = vsel %vm199, %v456, 0.0
    %v479 = vsel %vm199, %v464, 0.0
    %v480 = vadd.f32 %v478, %v479
    %v481 = vsel %vm199, %v463, 0.0
    %v482 = vadd.f32 %v480, %v481
    %v483 = vsel %vm199, %v465, 0.0
    %v484 = vadd.f32 %v482, %v483
    %v485 = vsel %vm207, %v472, 0.0
    %v486 = vadd.f32 %v484, %v485
    %487 = vadd.xlane.f32.xlu0 %v486
    %v488 = vpop.xlane.xlu0 %487
    %v489 = vrot.slane %v488, 4
    %v490 = vadd.f32 %v488, %v489
    %v491 = vrot.slane %v490, 2
    %v492 = vadd.f32 %v490, %v491
    %v493 = vrot.slane %v492, 1
    %v494 = vadd.f32 %v492, %v493
    %s495 = vtos %v494
    %v496 = vstv %s495
    %v497 = vmul.f32 %v496, %v220
    %v498 = vsub.f32 %v445, %v497
    %v499 = vsub.f32 %v446, %v497
    %v500 = vmul.f32 %v498, %v498
    %v501 = vmul.f32 %v499, %v499
    %v504 = vcombine.high %v500, %v500
    %v506 = vunpack.c.l.s4 1983009808
    %v507 = vunpack.c.0.s8 %v506
    %v508 = vlaneseq
    %v509 = vshrl.u32 %v508, 7
    %v510 = vsub.s32 %v507, %v509
    %v511 = vrot.slane %v500, %v510
    %v513 = vunpack.c.l.s4 1983009808
    %v514 = vunpack.c.0.s8 %v513
    %v515 = vlaneseq
    %v516 = vshrl.u32 %v515, 7
    %v517 = vsub.s32 %v514, %v516
    %v518 = vrot.slane %v504, %v517
    %v519 = vcombine.high %v511, %v511
    %v520 = vcombine.high %v518, %v518
    %v522 = vunpack.c.l.s4 1983009808
    %v523 = vunpack.c.0.s8 %v522
    %v524 = vlaneseq
    %v525 = vshrl.u32 %v524, 7
    %v526 = vsub.s32 %v523, %v525
    %v527 = vrot.slane %v501, %v526
    %v533 = vsel %vm199, %v511, 0.0
    %v534 = vsel %vm199, %v519, 0.0
    %v535 = vadd.f32 %v533, %v534
    %v536 = vsel %vm199, %v518, 0.0
    %v537 = vadd.f32 %v535, %v536
    %v538 = vsel %vm199, %v520, 0.0
    %v539 = vadd.f32 %v537, %v538
    %v540 = vsel %vm207, %v527, 0.0
    %v541 = vadd.f32 %v539, %v540
    %542 = vadd.xlane.f32.xlu0 %v541
    %v543 = vpop.xlane.xlu0 %542
    %v544 = vrot.slane %v543, 4
    %v545 = vadd.f32 %v543, %v544
    %v546 = vrot.slane %v545, 2
    %v547 = vadd.f32 %v545, %v546
    %v548 = vrot.slane %v547, 1
    %v549 = vadd.f32 %v547, %v548
    %s550 = vtos %v549
    %v551 = vstv %s550
    %v552 = vmul.f32 %v551, %v220
    %v553 = vadd.f32 %v552, 1e-05
    %v554 = vrsqrt.pop %v553
    %v555 = vmul.f32 %v498, %v554
    %v556 = vmul.f32 %v499, %v554
    %s557 = sld [smem:[#allocation7 + $0x2]]
    %v558 = vstv %s557
    %v559 = vmul.f32 %v555, %v558
    %v560 = vmul.f32 %v556, %v558
    %s561 = sld [smem:[#allocation8 + $0x2]]
    %v562 = vstv %s561
    %v563 = vadd.f32 %v559, %v562
    %v564 = vadd.f32 %v560, %v562
    %s565 = sld [smem:[#allocation2 + $0x180]]
    %v566 = vstv %s565
    %v567 = vmul.f32 %v566, %v140
    %v568 = vmul.f32 %v566, %v141
    %s569 = sld [smem:[#allocation2 + $0x181]]
    %v570 = vstv %s569
    %v571 = vmul.f32 %v570, %v143
    %v572 = vmul.f32 %v570, %v144
    %v573 = vadd.f32 %v567, %v571
    %v574 = vadd.f32 %v568, %v572
    %s575 = sld [smem:[#allocation2 + $0x182]]
    %v576 = vstv %s575
    %v577 = vmul.f32 %v576, %v146
    %v578 = vmul.f32 %v576, %v147
    %v579 = vadd.f32 %v573, %v577
    %v580 = vadd.f32 %v574, %v578
    %s581 = sld [smem:[#allocation5 + $0x3]]
    %v582 = vstv %s581
    %v583 = vadd.f32 %v579, %v582
    %v584 = vadd.f32 %v580, %v582
    %v587 = vcombine.high %v583, %v583
    %v589 = vunpack.c.l.s4 1983009808
    %v590 = vunpack.c.0.s8 %v589
    %v591 = vlaneseq
    %v592 = vshrl.u32 %v591, 7
    %v593 = vsub.s32 %v590, %v592
    %v594 = vrot.slane %v583, %v593
    %v596 = vunpack.c.l.s4 1983009808
    %v597 = vunpack.c.0.s8 %v596
    %v598 = vlaneseq
    %v599 = vshrl.u32 %v598, 7
    %v600 = vsub.s32 %v597, %v599
    %v601 = vrot.slane %v587, %v600
    %v602 = vcombine.high %v594, %v594
    %v603 = vcombine.high %v601, %v601
    %v605 = vunpack.c.l.s4 1983009808
    %v606 = vunpack.c.0.s8 %v605
    %v607 = vlaneseq
    %v608 = vshrl.u32 %v607, 7
    %v609 = vsub.s32 %v606, %v608
    %v610 = vrot.slane %v584, %v609
    %v616 = vsel %vm199, %v594, 0.0
    %v617 = vsel %vm199, %v602, 0.0
    %v618 = vadd.f32 %v616, %v617
    %v619 = vsel %vm199, %v601, 0.0
    %v620 = vadd.f32 %v618, %v619
    %v621 = vsel %vm199, %v603, 0.0
    %v622 = vadd.f32 %v620, %v621
    %v623 = vsel %vm207, %v610, 0.0
    %v624 = vadd.f32 %v622, %v623
    %625 = vadd.xlane.f32.xlu0 %v624
    %v626 = vpop.xlane.xlu0 %625
    %v627 = vrot.slane %v626, 4
    %v628 = vadd.f32 %v626, %v627
    %v629 = vrot.slane %v628, 2
    %v630 = vadd.f32 %v628, %v629
    %v631 = vrot.slane %v630, 1
    %v632 = vadd.f32 %v630, %v631
    %s633 = vtos %v632
    %v634 = vstv %s633
    %v635 = vmul.f32 %v634, %v220
    %v636 = vsub.f32 %v583, %v635
    %v637 = vsub.f32 %v584, %v635
    %v638 = vmul.f32 %v636, %v636
    %v639 = vmul.f32 %v637, %v637
    %v642 = vcombine.high %v638, %v638
    %v644 = vunpack.c.l.s4 1983009808
    %v645 = vunpack.c.0.s8 %v644
    %v646 = vlaneseq
    %v647 = vshrl.u32 %v646, 7
    %v648 = vsub.s32 %v645, %v647
    %v649 = vrot.slane %v638, %v648
    %v651 = vunpack.c.l.s4 1983009808
    %v652 = vunpack.c.0.s8 %v651
    %v653 = vlaneseq
    %v654 = vshrl.u32 %v653, 7
    %v655 = vsub.s32 %v652, %v654
    %v656 = vrot.slane %v642, %v655
    %v657 = vcombine.high %v649, %v649
    %v658 = vcombine.high %v656, %v656
    %v660 = vunpack.c.l.s4 1983009808
    %v661 = vunpack.c.0.s8 %v660
    %v662 = vlaneseq
    %v663 = vshrl.u32 %v662, 7
    %v664 = vsub.s32 %v661, %v663
    %v665 = vrot.slane %v639, %v664
    %v671 = vsel %vm199, %v649, 0.0
    %v672 = vsel %vm199, %v657, 0.0
    %v673 = vadd.f32 %v671, %v672
    %v674 = vsel %vm199, %v656, 0.0
    %v675 = vadd.f32 %v673, %v674
    %v676 = vsel %vm199, %v658, 0.0
    %v677 = vadd.f32 %v675, %v676
    %v678 = vsel %vm207, %v665, 0.0
    %v679 = vadd.f32 %v677, %v678
    %680 = vadd.xlane.f32.xlu0 %v679
    %v681 = vpop.xlane.xlu0 %680
    %v682 = vrot.slane %v681, 4
    %v683 = vadd.f32 %v681, %v682
    %v684 = vrot.slane %v683, 2
    %v685 = vadd.f32 %v683, %v684
    %v686 = vrot.slane %v685, 1
    %v687 = vadd.f32 %v685, %v686
    %s688 = vtos %v687
    %v689 = vstv %s688
    %v690 = vmul.f32 %v689, %v220
    %v691 = vadd.f32 %v690, 1e-05
    %v692 = vrsqrt.pop %v691
    %v693 = vmul.f32 %v636, %v692
    %v694 = vmul.f32 %v637, %v692
    %s695 = sld [smem:[#allocation7 + $0x3]]
    %v696 = vstv %s695
    %v697 = vmul.f32 %v693, %v696
    %v698 = vmul.f32 %v694, %v696
    %s699 = sld [smem:[#allocation8 + $0x3]]
    %v700 = vstv %s699
    %v701 = vadd.f32 %v697, %v700
    %v702 = vadd.f32 %v698, %v700
    %s703 = sld [smem:[#allocation2 + $0x200]]
    %v704 = vstv %s703
    %v705 = vmul.f32 %v704, %v140
    %v706 = vmul.f32 %v704, %v141
    %s707 = sld [smem:[#allocation2 + $0x201]]
    %v708 = vstv %s707
    %v709 = vmul.f32 %v708, %v143
    %v710 = vmul.f32 %v708, %v144
    %v711 = vadd.f32 %v705, %v709
    %v712 = vadd.f32 %v706, %v710
    %s713 = sld [smem:[#allocation2 + $0x202]]
    %v714 = vstv %s713
    %v715 = vmul.f32 %v714, %v146
    %v716 = vmul.f32 %v714, %v147
    %v717 = vadd.f32 %v711, %v715
    %v718 = vadd.f32 %v712, %v716
    %s719 = sld [smem:[#allocation5 + $0x4]]
    %v720 = vstv %s719
    %v721 = vadd.f32 %v717, %v720
    %v722 = vadd.f32 %v718, %v720
    %v725 = vcombine.high %v721, %v721
    %v727 = vunpack.c.l.s4 1983009808
    %v728 = vunpack.c.0.s8 %v727
    %v729 = vlaneseq
    %v730 = vshrl.u32 %v729, 7
    %v731 = vsub.s32 %v728, %v730
    %v732 = vrot.slane %v721, %v731
    %v734 = vunpack.c.l.s4 1983009808
    %v735 = vunpack.c.0.s8 %v734
    %v736 = vlaneseq
    %v737 = vshrl.u32 %v736, 7
    %v738 = vsub.s32 %v735, %v737
    %v739 = vrot.slane %v725, %v738
    %v740 = vcombine.high %v732, %v732
    %v741 = vcombine.high %v739, %v739
    %v743 = vunpack.c.l.s4 1983009808
    %v744 = vunpack.c.0.s8 %v743
    %v745 = vlaneseq
    %v746 = vshrl.u32 %v745, 7
    %v747 = vsub.s32 %v744, %v746
    %v748 = vrot.slane %v722, %v747
    %v754 = vsel %vm199, %v732, 0.0
    %v755 = vsel %vm199, %v740, 0.0
    %v756 = vadd.f32 %v754, %v755
    %v757 = vsel %vm199, %v739, 0.0
    %v758 = vadd.f32 %v756, %v757
    %v759 = vsel %vm199, %v741, 0.0
    %v760 = vadd.f32 %v758, %v759
    %v761 = vsel %vm207, %v748, 0.0
    %v762 = vadd.f32 %v760, %v761
    %763 = vadd.xlane.f32.xlu0 %v762
    %v764 = vpop.xlane.xlu0 %763
    %v765 = vrot.slane %v764, 4
    %v766 = vadd.f32 %v764, %v765
    %v767 = vrot.slane %v766, 2
    %v768 = vadd.f32 %v766, %v767
    %v769 = vrot.slane %v768, 1
    %v770 = vadd.f32 %v768, %v769
    %s771 = vtos %v770
    %v772 = vstv %s771
    %v773 = vmul.f32 %v772, %v220
    %v774 = vsub.f32 %v721, %v773
    %v775 = vsub.f32 %v722, %v773
    %v776 = vmul.f32 %v774, %v774
    %v777 = vmul.f32 %v775, %v775
    %v780 = vcombine.high %v776, %v776
    %v782 = vunpack.c.l.s4 1983009808
    %v783 = vunpack.c.0.s8 %v782
    %v784 = vlaneseq
    %v785 = vshrl.u32 %v784, 7
    %v786 = vsub.s32 %v783, %v785
    %v787 = vrot.slane %v776, %v786
    %v789 = vunpack.c.l.s4 1983009808
    %v790 = vunpack.c.0.s8 %v789
    %v791 = vlaneseq
    %v792 = vshrl.u32 %v791, 7
    %v793 = vsub.s32 %v790, %v792
    %v794 = vrot.slane %v780, %v793
    %v795 = vcombine.high %v787, %v787
    %v796 = vcombine.high %v794, %v794
    %v798 = vunpack.c.l.s4 1983009808
    %v799 = vunpack.c.0.s8 %v798
    %v800 = vlaneseq
    %v801 = vshrl.u32 %v800, 7
    %v802 = vsub.s32 %v799, %v801
    %v803 = vrot.slane %v777, %v802
    %v809 = vsel %vm199, %v787, 0.0
    %v810 = vsel %vm199, %v795, 0.0
    %v811 = vadd.f32 %v809, %v810
    %v812 = vsel %vm199, %v794, 0.0
    %v813 = vadd.f32 %v811, %v812
    %v814 = vsel %vm199, %v796, 0.0
    %v815 = vadd.f32 %v813, %v814
    %v816 = vsel %vm207, %v803, 0.0
    %v817 = vadd.f32 %v815, %v816
    %818 = vadd.xlane.f32.xlu0 %v817
    %v819 = vpop.xlane.xlu0 %818
    %v820 = vrot.slane %v819, 4
    %v821 = vadd.f32 %v819, %v820
    %v822 = vrot.slane %v821, 2
    %v823 = vadd.f32 %v821, %v822
    %v824 = vrot.slane %v823, 1
    %v825 = vadd.f32 %v823, %v824
    %s826 = vtos %v825
    %v827 = vstv %s826
    %v828 = vmul.f32 %v827, %v220
    %v829 = vadd.f32 %v828, 1e-05
    %v830 = vrsqrt.pop %v829
    %v831 = vmul.f32 %v774, %v830
    %v832 = vmul.f32 %v775, %v830
    %s833 = sld [smem:[#allocation7 + $0x4]]
    %v834 = vstv %s833
    %v835 = vmul.f32 %v831, %v834
    %v836 = vmul.f32 %v832, %v834
    %s837 = sld [smem:[#allocation8 + $0x4]]
    %v838 = vstv %s837
    %v839 = vadd.f32 %v835, %v838
    %v840 = vadd.f32 %v836, %v838
    %s841 = sld [smem:[#allocation2 + $0x280]]
    %v842 = vstv %s841
    %v843 = vmul.f32 %v842, %v140
    %v844 = vmul.f32 %v842, %v141
    %s845 = sld [smem:[#allocation2 + $0x281]]
    %v846 = vstv %s845
    %v847 = vmul.f32 %v846, %v143
    %v848 = vmul.f32 %v846, %v144
    %v849 = vadd.f32 %v843, %v847
    %v850 = vadd.f32 %v844, %v848
    %s851 = sld [smem:[#allocation2 + $0x282]]
    %v852 = vstv %s851
    %v853 = vmul.f32 %v852, %v146
    %v854 = vmul.f32 %v852, %v147
    %v855 = vadd.f32 %v849, %v853
    %v856 = vadd.f32 %v850, %v854
    %s857 = sld [smem:[#allocation5 + $0x5]]
    %v858 = vstv %s857
    %v859 = vadd.f32 %v855, %v858
    %v860 = vadd.f32 %v856, %v858
    %v863 = vcombine.high %v859, %v859
    %v865 = vunpack.c.l.s4 1983009808
    %v866 = vunpack.c.0.s8 %v865
    %v867 = vlaneseq
    %v868 = vshrl.u32 %v867, 7
    %v869 = vsub.s32 %v866, %v868
    %v870 = vrot.slane %v859, %v869
    %v872 = vunpack.c.l.s4 1983009808
    %v873 = vunpack.c.0.s8 %v872
    %v874 = vlaneseq
    %v875 = vshrl.u32 %v874, 7
    %v876 = vsub.s32 %v873, %v875
    %v877 = vrot.slane %v863, %v876
    %v878 = vcombine.high %v870, %v870
    %v879 = vcombine.high %v877, %v877
    %v881 = vunpack.c.l.s4 1983009808
    %v882 = vunpack.c.0.s8 %v881
    %v883 = vlaneseq
    %v884 = vshrl.u32 %v883, 7
    %v885 = vsub.s32 %v882, %v884
    %v886 = vrot.slane %v860, %v885
    %v892 = vsel %vm199, %v870, 0.0
    %v893 = vsel %vm199, %v878, 0.0
    %v894 = vadd.f32 %v892, %v893
    %v895 = vsel %vm199, %v877, 0.0
    %v896 = vadd.f32 %v894, %v895
    %v897 = vsel %vm199, %v879, 0.0
    %v898 = vadd.f32 %v896, %v897
    %v899 = vsel %vm207, %v886, 0.0
    %v900 = vadd.f32 %v898, %v899
    %901 = vadd.xlane.f32.xlu0 %v900
    %v902 = vpop.xlane.xlu0 %901
    %v903 = vrot.slane %v902, 4
    %v904 = vadd.f32 %v902, %v903
    %v905 = vrot.slane %v904, 2
    %v906 = vadd.f32 %v904, %v905
    %v907 = vrot.slane %v906, 1
    %v908 = vadd.f32 %v906, %v907
    %s909 = vtos %v908
    %v910 = vstv %s909
    %v911 = vmul.f32 %v910, %v220
    %v912 = vsub.f32 %v859, %v911
    %v913 = vsub.f32 %v860, %v911
    %v914 = vmul.f32 %v912, %v912
    %v915 = vmul.f32 %v913, %v913
    %v918 = vcombine.high %v914, %v914
    %v920 = vunpack.c.l.s4 1983009808
    %v921 = vunpack.c.0.s8 %v920
    %v922 = vlaneseq
    %v923 = vshrl.u32 %v922, 7
    %v924 = vsub.s32 %v921, %v923
    %v925 = vrot.slane %v914, %v924
    %v927 = vunpack.c.l.s4 1983009808
    %v928 = vunpack.c.0.s8 %v927
    %v929 = vlaneseq
    %v930 = vshrl.u32 %v929, 7
    %v931 = vsub.s32 %v928, %v930
    %v932 = vrot.slane %v918, %v931
    %v933 = vcombine.high %v925, %v925
    %v934 = vcombine.high %v932, %v932
    %v936 = vunpack.c.l.s4 1983009808
    %v937 = vunpack.c.0.s8 %v936
    %v938 = vlaneseq
    %v939 = vshrl.u32 %v938, 7
    %v940 = vsub.s32 %v937, %v939
    %v941 = vrot.slane %v915, %v940
    %v947 = vsel %vm199, %v925, 0.0
    %v948 = vsel %vm199, %v933, 0.0
    %v949 = vadd.f32 %v947, %v948
    %v950 = vsel %vm199, %v932, 0.0
    %v951 = vadd.f32 %v949, %v950
    %v952 = vsel %vm199, %v934, 0.0
    %v953 = vadd.f32 %v951, %v952
    %v954 = vsel %vm207, %v941, 0.0
    %v955 = vadd.f32 %v953, %v954
    %956 = vadd.xlane.f32.xlu0 %v955
    %v957 = vpop.xlane.xlu0 %956
    %v958 = vrot.slane %v957, 4
    %v959 = vadd.f32 %v957, %v958
    %v960 = vrot.slane %v959, 2
    %v961 = vadd.f32 %v959, %v960
    %v962 = vrot.slane %v961, 1
    %v963 = vadd.f32 %v961, %v962
    %s964 = vtos %v963
    %v965 = vstv %s964
    %v966 = vmul.f32 %v965, %v220
    %v967 = vadd.f32 %v966, 1e-05
    %v968 = vrsqrt.pop %v967
    %v969 = vmul.f32 %v912, %v968
    %v970 = vmul.f32 %v913, %v968
    %s971 = sld [smem:[#allocation7 + $0x5]]
    %v972 = vstv %s971
    %v973 = vmul.f32 %v969, %v972
    %v974 = vmul.f32 %v970, %v972
    %s975 = sld [smem:[#allocation8 + $0x5]]
    %v976 = vstv %s975
    %v977 = vadd.f32 %v973, %v976
    %v978 = vadd.f32 %v974, %v976
    %s979 = sld [smem:[#allocation10]]
    %v980 = vstv %s979
    %v981 = vmul.f32 %v980, %v287
    %v982 = vmul.f32 %v980, %v288
    %s983 = sld [smem:[#allocation10 + $0x1]]
    %v984 = vstv %s983
    %v985 = vmul.f32 %v984, %v425
    %v986 = vmul.f32 %v984, %v426
    %v987 = vadd.f32 %v981, %v985
    %v988 = vadd.f32 %v982, %v986
    %s989 = sld [smem:[#allocation10 + $0x2]]
    %v990 = vstv %s989
    %v991 = vmul.f32 %v990, %v563
    %v992 = vmul.f32 %v990, %v564
    %v993 = vadd.f32 %v987, %v991
    %v994 = vadd.f32 %v988, %v992
    %s995 = sld [smem:[#allocation10 + $0x3]]
    %v996 = vstv %s995
    %v997 = vmul.f32 %v996, %v701
    %v998 = vmul.f32 %v996, %v702
    %v999 = vadd.f32 %v993, %v997
    %v1000 = vadd.f32 %v994, %v998
    %s1001 = sld [smem:[#allocation10 + $0x4]]
    %v1002 = vstv %s1001
    %v1003 = vmul.f32 %v1002, %v839
    %v1004 = vmul.f32 %v1002, %v840
    %v1005 = vadd.f32 %v999, %v1003
    %v1006 = vadd.f32 %v1000, %v1004
    %s1007 = sld [smem:[#allocation10 + $0x5]]
    %v1008 = vstv %s1007
    %v1009 = vmul.f32 %v1008, %v977
    %v1010 = vmul.f32 %v1008, %v978
    %v1011 = vadd.f32 %v1005, %v1009
    %v1012 = vadd.f32 %v1006, %v1010
    %s1013 = sld [smem:[#allocation11]]
    %v1014 = vstv %s1013
    %v1015 = vadd.f32 %v1011, %v1014
    %v1016 = vadd.f32 %v1012, %v1014
    %v1019 = vcombine.high %v1015, %v1015
    %v1021 = vunpack.c.l.s4 1983009808
    %v1022 = vunpack.c.0.s8 %v1021
    %v1023 = vlaneseq
    %v1024 = vshrl.u32 %v1023, 7
    %v1025 = vsub.s32 %v1022, %v1024
    %v1026 = vrot.slane %v1015, %v1025
    %v1028 = vunpack.c.l.s4 1983009808
    %v1029 = vunpack.c.0.s8 %v1028
    %v1030 = vlaneseq
    %v1031 = vshrl.u32 %v1030, 7
    %v1032 = vsub.s32 %v1029, %v1031
    %v1033 = vrot.slane %v1019, %v1032
    %v1034 = vcombine.high %v1026, %v1026
    %v1035 = vcombine.high %v1033, %v1033
    %v1037 = vunpack.c.l.s4 1983009808
    %v1038 = vunpack.c.0.s8 %v1037
    %v1039 = vlaneseq
    %v1040 = vshrl.u32 %v1039, 7
    %v1041 = vsub.s32 %v1038, %v1040
    %v1042 = vrot.slane %v1016, %v1041
    %v1048 = vsel %vm199, %v1026, 0.0
    %v1049 = vsel %vm199, %v1034, 0.0
    %v1050 = vadd.f32 %v1048, %v1049
    %v1051 = vsel %vm199, %v1033, 0.0
    %v1052 = vadd.f32 %v1050, %v1051
    %v1053 = vsel %vm199, %v1035, 0.0
    %v1054 = vadd.f32 %v1052, %v1053
    %v1055 = vsel %vm207, %v1042, 0.0
    %v1056 = vadd.f32 %v1054, %v1055
    %1057 = vadd.xlane.f32.xlu0 %v1056
    %v1058 = vpop.xlane.xlu0 %1057
    %v1059 = vrot.slane %v1058, 4
    %v1060 = vadd.f32 %v1058, %v1059
    %v1061 = vrot.slane %v1060, 2
    %v1062 = vadd.f32 %v1060, %v1061
    %v1063 = vrot.slane %v1062, 1
    %v1064 = vadd.f32 %v1062, %v1063
    %s1065 = vtos %v1064
    %v1066 = vstv %s1065
    %v1067 = vmul.f32 %v1066, %v220
    %v1068 = vsub.f32 %v1015, %v1067
    %v1069 = vsub.f32 %v1016, %v1067
    %v1070 = vmul.f32 %v1068, %v1068
    %v1071 = vmul.f32 %v1069, %v1069
    %v1074 = vcombine.high %v1070, %v1070
    %v1076 = vunpack.c.l.s4 1983009808
    %v1077 = vunpack.c.0.s8 %v1076
    %v1078 = vlaneseq
    %v1079 = vshrl.u32 %v1078, 7
    %v1080 = vsub.s32 %v1077, %v1079
    %v1081 = vrot.slane %v1070, %v1080
    %v1083 = vunpack.c.l.s4 1983009808
    %v1084 = vunpack.c.0.s8 %v1083
    %v1085 = vlaneseq
    %v1086 = vshrl.u32 %v1085, 7
    %v1087 = vsub.s32 %v1084, %v1086
    %v1088 = vrot.slane %v1074, %v1087
    %v1089 = vcombine.high %v1081, %v1081
    %v1090 = vcombine.high %v1088, %v1088
    %v1092 = vunpack.c.l.s4 1983009808
    %v1093 = vunpack.c.0.s8 %v1092
    %v1094 = vlaneseq
    %v1095 = vshrl.u32 %v1094, 7
    %v1096 = vsub.s32 %v1093, %v1095
    %v1097 = vrot.slane %v1071, %v1096
    %v1103 = vsel %vm199, %v1081, 0.0
    %v1104 = vsel %vm199, %v1089, 0.0
    %v1105 = vadd.f32 %v1103, %v1104
    %v1106 = vsel %vm199, %v1088, 0.0
    %v1107 = vadd.f32 %v1105, %v1106
    %v1108 = vsel %vm199, %v1090, 0.0
    %v1109 = vadd.f32 %v1107, %v1108
    %v1110 = vsel %vm207, %v1097, 0.0
    %v1111 = vadd.f32 %v1109, %v1110
    %1112 = vadd.xlane.f32.xlu0 %v1111
    %v1113 = vpop.xlane.xlu0 %1112
    %v1114 = vrot.slane %v1113, 4
    %v1115 = vadd.f32 %v1113, %v1114
    %v1116 = vrot.slane %v1115, 2
    %v1117 = vadd.f32 %v1115, %v1116
    %v1118 = vrot.slane %v1117, 1
    %v1119 = vadd.f32 %v1117, %v1118
    %s1120 = vtos %v1119
    %v1121 = vstv %s1120
    %v1122 = vmul.f32 %v1121, %v220
    %v1123 = vadd.f32 %v1122, 1e-05
    %v1124 = vrsqrt.pop %v1123
    %v1125 = vmul.f32 %v1068, %v1124
    %v1126 = vmul.f32 %v1069, %v1124
    %s1127 = sld [smem:[#allocation13]]
    %v1128 = vstv %s1127
    %v1129 = vmul.f32 %v1125, %v1128
    %v1130 = vmul.f32 %v1126, %v1128
    %s1131 = sld [smem:[#allocation14]]
    %v1132 = vstv %s1131
    %v1133 = vadd.f32 %v1129, %v1132
    %v1134 = vadd.f32 %v1130, %v1132
    %v1135 = vxor.u32 %v1133, 2147483648
    %v1136 = vxor.u32 %v1134, 2147483648
    %v1137 = vmul.f32 %v1135, 1.442695
    %v1138 = vpow.pop %v1137
    %v1139 = vmul.f32 %v1136, 1.442695
    %v1140 = vpow.pop %v1139
    %v1141 = vadd.f32 %v1138, 1.0
    %v1142 = vadd.f32 %v1140, 1.0
    %v1143 = vrcp.pop %v1141
    %v1144 = vmul.f32 1.0, %v1143
    %v1145 = vrcp.pop %v1142
    %v1146 = vmul.f32 1.0, %v1145
    %v1147 = vmul.f32 %v1133, %v1144
    %v1148 = vmul.f32 %v1134, %v1146
    %s1149 = sld [smem:[#allocation10 + $0x80]]
    %v1150 = vstv %s1149
    %v1151 = vmul.f32 %v1150, %v287
    %v1152 = vmul.f32 %v1150, %v288
    %s1153 = sld [smem:[#allocation10 + $0x81]]
    %v1154 = vstv %s1153
    %v1155 = vmul.f32 %v1154, %v425
    %v1156 = vmul.f32 %v1154, %v426
    %v1157 = vadd.f32 %v1151, %v1155
    %v1158 = vadd.f32 %v1152, %v1156
    %s1159 = sld [smem:[#allocation10 + $0x82]]
    %v1160 = vstv %s1159
    %v1161 = vmul.f32 %v1160, %v563
    %v1162 = vmul.f32 %v1160, %v564
    %v1163 = vadd.f32 %v1157, %v1161
    %v1164 = vadd.f32 %v1158, %v1162
    %s1165 = sld [smem:[#allocation10 + $0x83]]
    %v1166 = vstv %s1165
    %v1167 = vmul.f32 %v1166, %v701
    %v1168 = vmul.f32 %v1166, %v702
    %v1169 = vadd.f32 %v1163, %v1167
    %v1170 = vadd.f32 %v1164, %v1168
    %s1171 = sld [smem:[#allocation10 + $0x84]]
    %v1172 = vstv %s1171
    %v1173 = vmul.f32 %v1172, %v839
    %v1174 = vmul.f32 %v1172, %v840
    %v1175 = vadd.f32 %v1169, %v1173
    %v1176 = vadd.f32 %v1170, %v1174
    %s1177 = sld [smem:[#allocation10 + $0x85]]
    %v1178 = vstv %s1177
    %v1179 = vmul.f32 %v1178, %v977
    %v1180 = vmul.f32 %v1178, %v978
    %v1181 = vadd.f32 %v1175, %v1179
    %v1182 = vadd.f32 %v1176, %v1180
    %s1183 = sld [smem:[#allocation11 + $0x1]]
    %v1184 = vstv %s1183
    %v1185 = vadd.f32 %v1181, %v1184
    %v1186 = vadd.f32 %v1182, %v1184
    %v1189 = vcombine.high %v1185, %v1185
    %v1191 = vunpack.c.l.s4 1983009808
    %v1192 = vunpack.c.0.s8 %v1191
    %v1193 = vlaneseq
    %v1194 = vshrl.u32 %v1193, 7
    %v1195 = vsub.s32 %v1192, %v1194
    %v1196 = vrot.slane %v1185, %v1195
    %v1198 = vunpack.c.l.s4 1983009808
    %v1199 = vunpack.c.0.s8 %v1198
    %v1200 = vlaneseq
    %v1201 = vshrl.u32 %v1200, 7
    %v1202 = vsub.s32 %v1199, %v1201
    %v1203 = vrot.slane %v1189, %v1202
    %v1204 = vcombine.high %v1196, %v1196
    %v1205 = vcombine.high %v1203, %v1203
    %v1207 = vunpack.c.l.s4 1983009808
    %v1208 = vunpack.c.0.s8 %v1207
    %v1209 = vlaneseq
    %v1210 = vshrl.u32 %v1209, 7
    %v1211 = vsub.s32 %v1208, %v1210
    %v1212 = vrot.slane %v1186, %v1211
    %v1218 = vsel %vm199, %v1196, 0.0
    %v1219 = vsel %vm199, %v1204, 0.0
    %v1220 = vadd.f32 %v1218, %v1219
    %v1221 = vsel %vm199, %v1203, 0.0
    %v1222 = vadd.f32 %v1220, %v1221
    %v1223 = vsel %vm199, %v1205, 0.0
    %v1224 = vadd.f32 %v1222, %v1223
    %v1225 = vsel %vm207, %v1212, 0.0
    %v1226 = vadd.f32 %v1224, %v1225
    %1227 = vadd.xlane.f32.xlu0 %v1226
    %v1228 = vpop.xlane.xlu0 %1227
    %v1229 = vrot.slane %v1228, 4
    %v1230 = vadd.f32 %v1228, %v1229
    %v1231 = vrot.slane %v1230, 2
    %v1232 = vadd.f32 %v1230, %v1231
    %v1233 = vrot.slane %v1232, 1
    %v1234 = vadd.f32 %v1232, %v1233
    %s1235 = vtos %v1234
    %v1236 = vstv %s1235
    %v1237 = vmul.f32 %v1236, %v220
    %v1238 = vsub.f32 %v1185, %v1237
    %v1239 = vsub.f32 %v1186, %v1237
    %v1240 = vmul.f32 %v1238, %v1238
    %v1241 = vmul.f32 %v1239, %v1239
    %v1244 = vcombine.high %v1240, %v1240
    %v1246 = vunpack.c.l.s4 1983009808
    %v1247 = vunpack.c.0.s8 %v1246
    %v1248 = vlaneseq
    %v1249 = vshrl.u32 %v1248, 7
    %v1250 = vsub.s32 %v1247, %v1249
    %v1251 = vrot.slane %v1240, %v1250
    %v1253 = vunpack.c.l.s4 1983009808
    %v1254 = vunpack.c.0.s8 %v1253
    %v1255 = vlaneseq
    %v1256 = vshrl.u32 %v1255, 7
    %v1257 = vsub.s32 %v1254, %v1256
    %v1258 = vrot.slane %v1244, %v1257
    %v1259 = vcombine.high %v1251, %v1251
    %v1260 = vcombine.high %v1258, %v1258
    %v1262 = vunpack.c.l.s4 1983009808
    %v1263 = vunpack.c.0.s8 %v1262
    %v1264 = vlaneseq
    %v1265 = vshrl.u32 %v1264, 7
    %v1266 = vsub.s32 %v1263, %v1265
    %v1267 = vrot.slane %v1241, %v1266
    %v1273 = vsel %vm199, %v1251, 0.0
    %v1274 = vsel %vm199, %v1259, 0.0
    %v1275 = vadd.f32 %v1273, %v1274
    %v1276 = vsel %vm199, %v1258, 0.0
    %v1277 = vadd.f32 %v1275, %v1276
    %v1278 = vsel %vm199, %v1260, 0.0
    %v1279 = vadd.f32 %v1277, %v1278
    %v1280 = vsel %vm207, %v1267, 0.0
    %v1281 = vadd.f32 %v1279, %v1280
    %1282 = vadd.xlane.f32.xlu0 %v1281
    %v1283 = vpop.xlane.xlu0 %1282
    %v1284 = vrot.slane %v1283, 4
    %v1285 = vadd.f32 %v1283, %v1284
    %v1286 = vrot.slane %v1285, 2
    %v1287 = vadd.f32 %v1285, %v1286
    %v1288 = vrot.slane %v1287, 1
    %v1289 = vadd.f32 %v1287, %v1288
    %s1290 = vtos %v1289
    %v1291 = vstv %s1290
    %v1292 = vmul.f32 %v1291, %v220
    %v1293 = vadd.f32 %v1292, 1e-05
    %v1294 = vrsqrt.pop %v1293
    %v1295 = vmul.f32 %v1238, %v1294
    %v1296 = vmul.f32 %v1239, %v1294
    %s1297 = sld [smem:[#allocation13 + $0x1]]
    %v1298 = vstv %s1297
    %v1299 = vmul.f32 %v1295, %v1298
    %v1300 = vmul.f32 %v1296, %v1298
    %s1301 = sld [smem:[#allocation14 + $0x1]]
    %v1302 = vstv %s1301
    %v1303 = vadd.f32 %v1299, %v1302
    %v1304 = vadd.f32 %v1300, %v1302
    %v1305 = vxor.u32 %v1303, 2147483648
    %v1306 = vxor.u32 %v1304, 2147483648
    %v1307 = vmul.f32 %v1305, 1.442695
    %v1308 = vpow.pop %v1307
    %v1309 = vmul.f32 %v1306, 1.442695
    %v1310 = vpow.pop %v1309
    %v1311 = vadd.f32 %v1308, 1.0
    %v1312 = vadd.f32 %v1310, 1.0
    %v1313 = vrcp.pop %v1311
    %v1314 = vmul.f32 1.0, %v1313
    %v1315 = vrcp.pop %v1312
    %v1316 = vmul.f32 1.0, %v1315
    %v1317 = vmul.f32 %v1303, %v1314
    %v1318 = vmul.f32 %v1304, %v1316
    %s1319 = sld [smem:[#allocation10 + $0x100]]
    %v1320 = vstv %s1319
    %v1321 = vmul.f32 %v1320, %v287
    %v1322 = vmul.f32 %v1320, %v288
    %s1323 = sld [smem:[#allocation10 + $0x101]]
    %v1324 = vstv %s1323
    %v1325 = vmul.f32 %v1324, %v425
    %v1326 = vmul.f32 %v1324, %v426
    %v1327 = vadd.f32 %v1321, %v1325
    %v1328 = vadd.f32 %v1322, %v1326
    %s1329 = sld [smem:[#allocation10 + $0x102]]
    %v1330 = vstv %s1329
    %v1331 = vmul.f32 %v1330, %v563
    %v1332 = vmul.f32 %v1330, %v564
    %v1333 = vadd.f32 %v1327, %v1331
    %v1334 = vadd.f32 %v1328, %v1332
    %s1335 = sld [smem:[#allocation10 + $0x103]]
    %v1336 = vstv %s1335
    %v1337 = vmul.f32 %v1336, %v701
    %v1338 = vmul.f32 %v1336, %v702
    %v1339 = vadd.f32 %v1333, %v1337
    %v1340 = vadd.f32 %v1334, %v1338
    %s1341 = sld [smem:[#allocation10 + $0x104]]
    %v1342 = vstv %s1341
    %v1343 = vmul.f32 %v1342, %v839
    %v1344 = vmul.f32 %v1342, %v840
    %v1345 = vadd.f32 %v1339, %v1343
    %v1346 = vadd.f32 %v1340, %v1344
    %s1347 = sld [smem:[#allocation10 + $0x105]]
    %v1348 = vstv %s1347
    %v1349 = vmul.f32 %v1348, %v977
    %v1350 = vmul.f32 %v1348, %v978
    %v1351 = vadd.f32 %v1345, %v1349
    %v1352 = vadd.f32 %v1346, %v1350
    %s1353 = sld [smem:[#allocation11 + $0x2]]
    %v1354 = vstv %s1353
    %v1355 = vadd.f32 %v1351, %v1354
    %v1356 = vadd.f32 %v1352, %v1354
    %v1359 = vcombine.high %v1355, %v1355
    %v1361 = vunpack.c.l.s4 1983009808
    %v1362 = vunpack.c.0.s8 %v1361
    %v1363 = vlaneseq
    %v1364 = vshrl.u32 %v1363, 7
    %v1365 = vsub.s32 %v1362, %v1364
    %v1366 = vrot.slane %v1355, %v1365
    %v1368 = vunpack.c.l.s4 1983009808
    %v1369 = vunpack.c.0.s8 %v1368
    %v1370 = vlaneseq
    %v1371 = vshrl.u32 %v1370, 7
    %v1372 = vsub.s32 %v1369, %v1371
    %v1373 = vrot.slane %v1359, %v1372
    %v1374 = vcombine.high %v1366, %v1366
    %v1375 = vcombine.high %v1373, %v1373
    %v1377 = vunpack.c.l.s4 1983009808
    %v1378 = vunpack.c.0.s8 %v1377
    %v1379 = vlaneseq
    %v1380 = vshrl.u32 %v1379, 7
    %v1381 = vsub.s32 %v1378, %v1380
    %v1382 = vrot.slane %v1356, %v1381
    %v1388 = vsel %vm199, %v1366, 0.0
    %v1389 = vsel %vm199, %v1374, 0.0
    %v1390 = vadd.f32 %v1388, %v1389
    %v1391 = vsel %vm199, %v1373, 0.0
    %v1392 = vadd.f32 %v1390, %v1391
    %v1393 = vsel %vm199, %v1375, 0.0
    %v1394 = vadd.f32 %v1392, %v1393
    %v1395 = vsel %vm207, %v1382, 0.0
    %v1396 = vadd.f32 %v1394, %v1395
    %1397 = vadd.xlane.f32.xlu0 %v1396
    %v1398 = vpop.xlane.xlu0 %1397
    %v1399 = vrot.slane %v1398, 4
    %v1400 = vadd.f32 %v1398, %v1399
    %v1401 = vrot.slane %v1400, 2
    %v1402 = vadd.f32 %v1400, %v1401
    %v1403 = vrot.slane %v1402, 1
    %v1404 = vadd.f32 %v1402, %v1403
    %s1405 = vtos %v1404
    %v1406 = vstv %s1405
    %v1407 = vmul.f32 %v1406, %v220
    %v1408 = vsub.f32 %v1355, %v1407
    %v1409 = vsub.f32 %v1356, %v1407
    %v1410 = vmul.f32 %v1408, %v1408
    %v1411 = vmul.f32 %v1409, %v1409
    %v1414 = vcombine.high %v1410, %v1410
    %v1416 = vunpack.c.l.s4 1983009808
    %v1417 = vunpack.c.0.s8 %v1416
    %v1418 = vlaneseq
    %v1419 = vshrl.u32 %v1418, 7
    %v1420 = vsub.s32 %v1417, %v1419
    %v1421 = vrot.slane %v1410, %v1420
    %v1423 = vunpack.c.l.s4 1983009808
    %v1424 = vunpack.c.0.s8 %v1423
    %v1425 = vlaneseq
    %v1426 = vshrl.u32 %v1425, 7
    %v1427 = vsub.s32 %v1424, %v1426
    %v1428 = vrot.slane %v1414, %v1427
    %v1429 = vcombine.high %v1421, %v1421
    %v1430 = vcombine.high %v1428, %v1428
    %v1432 = vunpack.c.l.s4 1983009808
    %v1433 = vunpack.c.0.s8 %v1432
    %v1434 = vlaneseq
    %v1435 = vshrl.u32 %v1434, 7
    %v1436 = vsub.s32 %v1433, %v1435
    %v1437 = vrot.slane %v1411, %v1436
    %v1443 = vsel %vm199, %v1421, 0.0
    %v1444 = vsel %vm199, %v1429, 0.0
    %v1445 = vadd.f32 %v1443, %v1444
    %v1446 = vsel %vm199, %v1428, 0.0
    %v1447 = vadd.f32 %v1445, %v1446
    %v1448 = vsel %vm199, %v1430, 0.0
    %v1449 = vadd.f32 %v1447, %v1448
    %v1450 = vsel %vm207, %v1437, 0.0
    %v1451 = vadd.f32 %v1449, %v1450
    %1452 = vadd.xlane.f32.xlu0 %v1451
    %v1453 = vpop.xlane.xlu0 %1452
    %v1454 = vrot.slane %v1453, 4
    %v1455 = vadd.f32 %v1453, %v1454
    %v1456 = vrot.slane %v1455, 2
    %v1457 = vadd.f32 %v1455, %v1456
    %v1458 = vrot.slane %v1457, 1
    %v1459 = vadd.f32 %v1457, %v1458
    %s1460 = vtos %v1459
    %v1461 = vstv %s1460
    %v1462 = vmul.f32 %v1461, %v220
    %v1463 = vadd.f32 %v1462, 1e-05
    %v1464 = vrsqrt.pop %v1463
    %v1465 = vmul.f32 %v1408, %v1464
    %v1466 = vmul.f32 %v1409, %v1464
    %s1467 = sld [smem:[#allocation13 + $0x2]]
    %v1468 = vstv %s1467
    %v1469 = vmul.f32 %v1465, %v1468
    %v1470 = vmul.f32 %v1466, %v1468
    %s1471 = sld [smem:[#allocation14 + $0x2]]
    %v1472 = vstv %s1471
    %v1473 = vadd.f32 %v1469, %v1472
    %v1474 = vadd.f32 %v1470, %v1472
    %v1475 = vxor.u32 %v1473, 2147483648
    %v1476 = vxor.u32 %v1474, 2147483648
    %v1477 = vmul.f32 %v1475, 1.442695
    %v1478 = vpow.pop %v1477
    %v1479 = vmul.f32 %v1476, 1.442695
    %v1480 = vpow.pop %v1479
    %v1481 = vadd.f32 %v1478, 1.0
    %v1482 = vadd.f32 %v1480, 1.0
    %v1483 = vrcp.pop %v1481
    %v1484 = vmul.f32 1.0, %v1483
    %v1485 = vrcp.pop %v1482
    %v1486 = vmul.f32 1.0, %v1485
    %v1487 = vmul.f32 %v1473, %v1484
    %v1488 = vmul.f32 %v1474, %v1486
    %v1489 = vld [vmem:[%s10] sm:$0x1]
    %v1492 = vcombine.high %v1147, %v1147
    %v1494 = vunpack.c.l.s4 1983009808
    %v1495 = vunpack.c.0.s8 %v1494
    %v1496 = vlaneseq
    %v1497 = vshrl.u32 %v1496, 7
    %v1498 = vsub.s32 %v1495, %v1497
    %v1499 = vrot.slane %v1147, %v1498
    %v1501 = vunpack.c.l.s4 1983009808
    %v1502 = vunpack.c.0.s8 %v1501
    %v1503 = vlaneseq
    %v1504 = vshrl.u32 %v1503, 7
    %v1505 = vsub.s32 %v1502, %v1504
    %v1506 = vrot.slane %v1492, %v1505
    %v1507 = vcombine.high %v1499, %v1499
    %v1508 = vcombine.high %v1506, %v1506
    %v1510 = vunpack.c.l.s4 1983009808
    %v1511 = vunpack.c.0.s8 %v1510
    %v1512 = vlaneseq
    %v1513 = vshrl.u32 %v1512, 7
    %v1514 = vsub.s32 %v1511, %v1513
    %v1515 = vrot.slane %v1148, %v1514
    %v1521 = vpack.c.bf16 %v1499, %v1499
    %v1522 = vpack.c.bf16 %v1507, %v1507
    %v1523 = vpack.c.bf16 %v1506, %v1506
    %v1524 = vpack.c.bf16 %v1508, %v1508
    %v1525 = vpack.c.bf16 %v1515, %v1515
    %v1526 = vld [vmem:[%s9] sm:$0xf]
    %v1527 = vld [vmem:[%s9 + $0x4] sm:$0xf]
    %v1528 = vld [vmem:[%s9 + $0x8] sm:$0xf]
    %v1529 = vld [vmem:[%s9 + $0xc] sm:$0xf]
    %v1530 = vld [vmem:[%s9 + $0x10] sm:$0xf]
    %v1531 = vld [vmem:[%s9 + $0x14] sm:$0xf]
    %v1532 = vld [vmem:[%s9 + $0x18] sm:$0xf]
    %v1533 = vld [vmem:[%s9 + $0x1c] sm:$0xf]
    %v1534 = vld [vmem:[%s9 + $0x20] sm:$0xf]
    %v1535 = vld [vmem:[%s9 + $0x24] sm:$0xf]
    %v1536 = vld [vmem:[%s9 + $0x28] sm:$0xf]
    %v1537 = vld [vmem:[%s9 + $0x2c] sm:$0xf]
    %v1538 = vld [vmem:[%s9 + $0x30] sm:$0xf]
    %v1539 = vld [vmem:[%s9 + $0x34] sm:$0xf]
    %v1540 = vld [vmem:[%s9 + $0x38] sm:$0xf]
    %v1541 = vld [vmem:[%s9 + $0x3c] sm:$0xf]
    %v1542 = vld [vmem:[%s9 + $0x40] sm:$0xf]
    %v1543 = vld [vmem:[%s9 + $0x44] sm:$0xf]
    %v1544 = vld [vmem:[%s9 + $0x48] sm:$0xf]
    %v1545 = vld [vmem:[%s9 + $0x4c] sm:$0xf]
    %v1546 = vld [vmem:[%s9 + $0x50] sm:$0xf]
    %v1547 = vld [vmem:[%s9 + $0x54] sm:$0xf]
    %v1548 = vld [vmem:[%s9 + $0x58] sm:$0xf]
    %v1549 = vld [vmem:[%s9 + $0x5c] sm:$0xf]
    %v1550 = vld [vmem:[%s9 + $0x60] sm:$0xf]
    %v1551 = vld [vmem:[%s9 + $0x64] sm:$0xf]
    %v1552 = vld [vmem:[%s9 + $0x68] sm:$0xf]
    %v1553 = vld [vmem:[%s9 + $0x6c] sm:$0xf]
    %v1554 = vld [vmem:[%s9 + $0x70] sm:$0xf]
    %v1555 = vld [vmem:[%s9 + $0x74] sm:$0xf]
    %v1556 = vld [vmem:[%s9 + $0x78] sm:$0xf]
    %v1557 = vld [vmem:[%s9 + $0x7c] sm:$0xf]
    %v1558 = vld [vmem:[%s9 + $0x80] sm:$0xf]
    %v1559 = vld [vmem:[%s9 + $0x84] sm:$0xf]
    %v1560 = vld [vmem:[%s9 + $0x88] sm:$0xf]
    %v1561 = vld [vmem:[%s9 + $0x8c] sm:$0xf]
    %v1562 = vld [vmem:[%s9 + $0x90] sm:$0xf]
    %v1563 = vld [vmem:[%s9 + $0x94] sm:$0xf]
    %v1564 = vld [vmem:[%s9 + $0x98] sm:$0xf]
    %v1565 = vld [vmem:[%s9 + $0x9c] sm:$0xf]
    %v1566 = vld [vmem:[%s9 + $0xa0] sm:$0xf]
    %v1567 = vld [vmem:[%s9 + $0xa4] sm:$0xf]
    %v1568 = vld [vmem:[%s9 + $0xa8] sm:$0xf]
    %v1569 = vld [vmem:[%s9 + $0xac] sm:$0xf]
    %v1570 = vld [vmem:[%s9 + $0xb0] sm:$0xf]
    %v1571 = vld [vmem:[%s9 + $0xb4] sm:$0xf]
    %v1572 = vld [vmem:[%s9 + $0xb8] sm:$0xf]
    %v1573 = vld [vmem:[%s9 + $0xbc] sm:$0xf]
    %v1574 = vld [vmem:[%s9 + $0xc0] sm:$0xf]
    %v1575 = vld [vmem:[%s9 + $0xc4] sm:$0xf]
    %v1576 = vld [vmem:[%s9 + $0xc8] sm:$0xf]
    %v1577 = vld [vmem:[%s9 + $0xcc] sm:$0xf]
    %v1578 = vld [vmem:[%s9 + $0xd0] sm:$0xf]
    %v1579 = vld [vmem:[%s9 + $0xd4] sm:$0xf]
    %v1580 = vld [vmem:[%s9 + $0xd8] sm:$0xf]
    %v1581 = vld [vmem:[%s9 + $0xdc] sm:$0xf]
    %v1582 = vld [vmem:[%s9 + $0xe0] sm:$0xf]
    %v1583 = vld [vmem:[%s9 + $0xe4] sm:$0xf]
    %v1584 = vld [vmem:[%s9 + $0xe8] sm:$0xf]
    %v1585 = vld [vmem:[%s9 + $0xec] sm:$0xf]
    %v1586 = vld [vmem:[%s9 + $0xf0] sm:$0xf]
    %v1587 = vld [vmem:[%s9 + $0xf4] sm:$0xf]
    %v1588 = vld [vmem:[%s9 + $0xf8] sm:$0xf]
    %v1589 = vld [vmem:[%s9 + $0xfc] sm:$0xf]
    %v1590 = vld [vmem:[%s9 + $0x100] sm:$0xf]
    %v1591 = vld [vmem:[%s9 + $0x104] sm:$0xf]
    %v1592 = vld [vmem:[%s9 + $0x108] sm:$0xf]
    %v1593 = vld [vmem:[%s9 + $0x10c] sm:$0xf]
    %v1594 = vld [vmem:[%s9 + $0x110] sm:$0xf]
    %v1595 = vld [vmem:[%s9 + $0x114] sm:$0xf]
    %v1596 = vld [vmem:[%s9 + $0x118] sm:$0xf]
    %v1597 = vld [vmem:[%s9 + $0x11c] sm:$0xf]
    %v1670 = vunpack.c.l.b16 %v1526
    %v1671 = vunpack.c.l.b16 %v1527
    %v1672 = vunpack.c.l.b16 %v1528
    %v1673 = vunpack.c.l.b16 %v1529
    %v1674 = vunpack.c.l.b16 %v1530
    %v1675 = vunpack.c.l.b16 %v1531
    %v1676 = vunpack.c.l.b16 %v1532
    %v1677 = vunpack.c.l.b16 %v1533
    %v1678 = vunpack.c.l.b16 %v1534
    %v1679 = vunpack.c.l.b16 %v1535
    %v1680 = vunpack.c.l.b16 %v1536
    %v1681 = vunpack.c.l.b16 %v1537
    %v1682 = vunpack.c.l.b16 %v1538
    %v1683 = vunpack.c.l.b16 %v1539
    %v1684 = vunpack.c.l.b16 %v1540
    %v1685 = vunpack.c.l.b16 %v1541
    %v1686 = vunpack.c.l.b16 %v1542
    %v1687 = vunpack.c.l.b16 %v1543
    %v1688 = vunpack.c.l.b16 %v1544
    %v1689 = vunpack.c.l.b16 %v1545
    %v1690 = vunpack.c.l.b16 %v1546
    %v1691 = vunpack.c.l.b16 %v1547
    %v1692 = vunpack.c.l.b16 %v1548
    %v1693 = vunpack.c.l.b16 %v1549
    %v1694 = vunpack.c.l.b16 %v1550
    %v1695 = vunpack.c.l.b16 %v1551
    %v1696 = vunpack.c.l.b16 %v1552
    %v1697 = vunpack.c.l.b16 %v1553
    %v1698 = vunpack.c.l.b16 %v1554
    %v1699 = vunpack.c.l.b16 %v1555
    %v1700 = vunpack.c.l.b16 %v1556
    %v1701 = vunpack.c.l.b16 %v1557
    %v1702 = vunpack.c.l.b16 %v1558
    %v1703 = vunpack.c.l.b16 %v1559
    %v1704 = vunpack.c.l.b16 %v1560
    %v1705 = vunpack.c.l.b16 %v1561
    %v1706 = vunpack.c.l.b16 %v1562
    %v1707 = vunpack.c.l.b16 %v1563
    %v1708 = vunpack.c.l.b16 %v1564
    %v1709 = vunpack.c.l.b16 %v1565
    %v1710 = vunpack.c.l.b16 %v1566
    %v1711 = vunpack.c.l.b16 %v1567
    %v1712 = vunpack.c.l.b16 %v1568
    %v1713 = vunpack.c.l.b16 %v1569
    %v1714 = vunpack.c.l.b16 %v1570
    %v1715 = vunpack.c.l.b16 %v1571
    %v1716 = vunpack.c.l.b16 %v1572
    %v1717 = vunpack.c.l.b16 %v1573
    %v1718 = vunpack.c.l.b16 %v1574
    %v1719 = vunpack.c.l.b16 %v1575
    %v1720 = vunpack.c.l.b16 %v1576
    %v1721 = vunpack.c.l.b16 %v1577
    %v1722 = vunpack.c.l.b16 %v1578
    %v1723 = vunpack.c.l.b16 %v1579
    %v1724 = vunpack.c.l.b16 %v1580
    %v1725 = vunpack.c.l.b16 %v1581
    %v1726 = vunpack.c.l.b16 %v1582
    %v1727 = vunpack.c.l.b16 %v1583
    %v1728 = vunpack.c.l.b16 %v1584
    %v1729 = vunpack.c.l.b16 %v1585
    %v1730 = vunpack.c.l.b16 %v1586
    %v1731 = vunpack.c.l.b16 %v1587
    %v1732 = vunpack.c.l.b16 %v1588
    %v1733 = vunpack.c.l.b16 %v1589
    %v1734 = vunpack.c.l.b16 %v1590
    %v1735 = vunpack.c.l.b16 %v1591
    %v1736 = vunpack.c.l.b16 %v1592
    %v1737 = vunpack.c.l.b16 %v1593
    %v1738 = vunpack.c.l.b16 %v1594
    %v1739 = vunpack.c.l.b16 %v1595
    %v1740 = vunpack.c.l.b16 %v1596
    %v1741 = vunpack.c.l.b16 %v1597
    %v1742 = vpack.c.b16 %v1671, %v1670
    %v1743 = vpack.c.b16 %v1673, %v1672
    %v1744 = vpack.c.b16 %v1675, %v1674
    %v1745 = vpack.c.b16 %v1677, %v1676
    %v1746 = vpack.c.b16 %v1679, %v1678
    %v1747 = vpack.c.b16 %v1681, %v1680
    %v1748 = vpack.c.b16 %v1683, %v1682
    %v1749 = vpack.c.b16 %v1685, %v1684
    %v1750 = vpack.c.b16 %v1687, %v1686
    %v1751 = vpack.c.b16 %v1689, %v1688
    %v1752 = vpack.c.b16 %v1691, %v1690
    %v1753 = vpack.c.b16 %v1693, %v1692
    %v1754 = vpack.c.b16 %v1695, %v1694
    %v1755 = vpack.c.b16 %v1697, %v1696
    %v1756 = vpack.c.b16 %v1699, %v1698
    %v1757 = vpack.c.b16 %v1701, %v1700
    %v1758 = vpack.c.b16 %v1703, %v1702
    %v1759 = vpack.c.b16 %v1705, %v1704
    %v1760 = vpack.c.b16 %v1707, %v1706
    %v1761 = vpack.c.b16 %v1709, %v1708
    %v1762 = vpack.c.b16 %v1711, %v1710
    %v1763 = vpack.c.b16 %v1713, %v1712
    %v1764 = vpack.c.b16 %v1715, %v1714
    %v1765 = vpack.c.b16 %v1717, %v1716
    %v1766 = vpack.c.b16 %v1719, %v1718
    %v1767 = vpack.c.b16 %v1721, %v1720
    %v1768 = vpack.c.b16 %v1723, %v1722
    %v1769 = vpack.c.b16 %v1725, %v1724
    %v1770 = vpack.c.b16 %v1727, %v1726
    %v1771 = vpack.c.b16 %v1729, %v1728
    %v1772 = vpack.c.b16 %v1731, %v1730
    %v1773 = vpack.c.b16 %v1733, %v1732
    %v1774 = vpack.c.b16 %v1735, %v1734
    %v1775 = vpack.c.b16 %v1737, %v1736
    %v1776 = vpack.c.b16 %v1739, %v1738
    %v1777 = vpack.c.b16 %v1741, %v1740
    %vm1814 = vcmask 523264
    %v1816 = vsel %vm1814, %v1525, 0
    %1818 = vmatprep.subr.bf16.mxu0 0
    %1819 = vmatpush1.bf16.msra.mxu0 %v1742
    %1820 = vmatprep.subr.bf16.mxu0 0
    %1821 = vmatpush1.bf16.msra.mxu0 %v1743
    %1822 = vmatprep.subr.bf16.mxu0 0
    %1823 = vmatpush1.bf16.msra.mxu0 %v1744
    %1824 = vmatprep.subr.bf16.mxu0 0
    %1825 = vmatpush1.bf16.msra.mxu0 %v1745
    %1826 = vmatprep.subr.bf16.mxu0 0
    %1827 = vmatpush1.bf16.msra.mxu0 %v1746
    %1828 = vmatprep.subr.bf16.mxu0 0
    %1829 = vmatpush1.bf16.msra.mxu0 %v1747
    %1830 = vmatprep.subr.bf16.mxu0 0
    %1831 = vmatpush1.bf16.msra.mxu0 %v1748
    %1832 = vmatprep.subr.bf16.mxu0 0
    %1833 = vmatpush1.bf16.msra.mxu0 %v1749
    %1834 = vmatprep.subr.bf16.mxu0 0
    %1835 = vmatpush1.bf16.msra.mxu0 %v1750
    %1836 = vmatprep.subr.bf16.mxu0 0
    %1837 = vmatpush1.bf16.msra.mxu0 %v1751
    %1838 = vmatprep.subr.bf16.mxu0 0
    %1839 = vmatpush1.bf16.msra.mxu0 %v1752
    %1840 = vmatprep.subr.bf16.mxu0 0
    %1841 = vmatpush1.bf16.msra.mxu0 %v1753
    %1842 = vmatprep.subr.bf16.mxu0 0
    %1843 = vmatpush1.bf16.msra.mxu0 %v1754
    %1844 = vmatprep.subr.bf16.mxu0 0
    %1845 = vmatpush1.bf16.msra.mxu0 %v1755
    %1846 = vmatprep.subr.bf16.mxu0 0
    %1847 = vmatpush1.bf16.msra.mxu0 %v1756
    %1848 = vmatprep.subr.bf16.mxu0 0
    %1849 = vmatpush1.bf16.msra.mxu0 %v1757
    %1850 = vmatprep.mubr.bf16.mxu0 %v1522
    %1851 = vmatmul.mubr.bf16.gmra.mrb[0].mxu0 %v1521
    %v1852 = vpop.f32.mrb[0].mxu0
    %v1853 = vadd.f32 0.0, %v1852
    %v1854 = vpop.f32.mrb[0].mxu0
    %v1855 = vpop.f32.mrb[0].mxu0
    %v1856 = vpop.f32.mrb[0].mxu0
    %1857 = vdwg.mxu0
    %1858 = vmatprep.subr.bf16.mxu0 0
    %1859 = vmatpush1.bf16.msra.mxu0 %v1758
    %1860 = vmatprep.subr.bf16.mxu0 0
    %1861 = vmatpush1.bf16.msra.mxu0 %v1759
    %1862 = vmatprep.subr.bf16.mxu0 0
    %1863 = vmatpush1.bf16.msra.mxu0 %v1760
    %1864 = vmatprep.subr.bf16.mxu0 0
    %1865 = vmatpush1.bf16.msra.mxu0 %v1761
    %1866 = vmatprep.subr.bf16.mxu0 0
    %1867 = vmatpush1.bf16.msra.mxu0 %v1762
    %1868 = vmatprep.subr.bf16.mxu0 0
    %1869 = vmatpush1.bf16.msra.mxu0 %v1763
    %1870 = vmatprep.subr.bf16.mxu0 0
    %1871 = vmatpush1.bf16.msra.mxu0 %v1764
    %1872 = vmatprep.subr.bf16.mxu0 0
    %1873 = vmatpush1.bf16.msra.mxu0 %v1765
    %1874 = vmatprep.subr.bf16.mxu0 0
    %1875 = vmatpush1.bf16.msra.mxu0 %v1766
    %1876 = vmatprep.subr.bf16.mxu0 0
    %1877 = vmatpush1.bf16.msra.mxu0 %v1767
    %1878 = vmatprep.subr.bf16.mxu0 0
    %1879 = vmatpush1.bf16.msra.mxu0 %v1768
    %1880 = vmatprep.subr.bf16.mxu0 0
    %1881 = vmatpush1.bf16.msra.mxu0 %v1769
    %1882 = vmatprep.subr.bf16.mxu0 0
    %1883 = vmatpush1.bf16.msra.mxu0 %v1770
    %1884 = vmatprep.subr.bf16.mxu0 0
    %1885 = vmatpush1.bf16.msra.mxu0 %v1771
    %1886 = vmatprep.subr.bf16.mxu0 0
    %1887 = vmatpush1.bf16.msra.mxu0 %v1772
    %1888 = vmatprep.subr.bf16.mxu0 0
    %1889 = vmatpush1.bf16.msra.mxu0 %v1773
    %1890 = vmatprep.mubr.bf16.mxu0 %v1524
    %1891 = vmatmul.mubr.bf16.gmra.mrb[0].mxu0 %v1523
    %v1892 = vpop.f32.mrb[0].mxu0
    %v1893 = vadd.f32 %v1853, %v1892
    %v1894 = vpop.f32.mrb[0].mxu0
    %v1895 = vpop.f32.mrb[0].mxu0
    %v1896 = vpop.f32.mrb[0].mxu0
    %1897 = vdwg.mxu0
    %1898 = vmatprep.subr.bf16.mxu0 0
    %1899 = vmatpush1.bf16.msra.mxu0 %v1774
    %1900 = vmatprep.subr.bf16.mxu0 0
    %1901 = vmatpush1.bf16.msra.mxu0 %v1775
    %1902 = vmatprep.subr.bf16.mxu0 0
    %1903 = vmatpush1.bf16.msra.mxu0 %v1776
    %1904 = vmatprep.subr.bf16.mxu0 0
    %1905 = vmatpush1.bf16.msra.mxu0 %v1777
    %1906 = vmatprep.subr.bf16.mxu0 0
    %1907 = vmatpush1.bf16.msra.mxu0 0
    %1908 = vmatprep.subr.bf16.mxu0 0
    %1909 = vmatpush1.bf16.msra.mxu0 0
    %1910 = vmatprep.subr.bf16.mxu0 0
    %1911 = vmatpush1.bf16.msra.mxu0 0
    %1912 = vmatprep.subr.bf16.mxu0 0
    %1913 = vmatpush1.bf16.msra.mxu0 0
    %1914 = vmatprep.subr.bf16.mxu0 0
    %1915 = vmatpush1.bf16.msra.mxu0 0
    %1916 = vmatprep.subr.bf16.mxu0 0
    %1917 = vmatpush1.bf16.msra.mxu0 0
    %1918 = vmatprep.subr.bf16.mxu0 0
    %1919 = vmatpush1.bf16.msra.mxu0 0
    %1920 = vmatprep.subr.bf16.mxu0 0
    %1921 = vmatpush1.bf16.msra.mxu0 0
    %1922 = vmatprep.subr.bf16.mxu0 0
    %1923 = vmatpush1.bf16.msra.mxu0 0
    %1924 = vmatprep.subr.bf16.mxu0 0
    %1925 = vmatpush1.bf16.msra.mxu0 0
    %1926 = vmatprep.subr.bf16.mxu0 0
    %1927 = vmatpush1.bf16.msra.mxu0 0
    %1928 = vmatprep.subr.bf16.mxu0 0
    %1929 = vmatpush1.bf16.msra.mxu0 0
    %1930 = vmatprep.mubr.bf16.mxu0 0
    %1931 = vmatmul.mubr.bf16.gmra.mrb[0].mxu0 %v1816
    %v1932 = vpop.f32.mrb[0].mxu0
    %v1933 = vadd.f32 %v1893, %v1932
    %v1934 = vpop.f32.mrb[0].mxu0
    %v1935 = vpop.f32.mrb[0].mxu0
    %v1936 = vpop.f32.mrb[0].mxu0
    %1937 = vdwg.mxu0
    %v1939 = vlaneseq
    %v1940 = vshrl.u32 %v1939, 7
    %v1941 = vsub.s32 0, %v1940
    %v1942 = vrot.slane %v1489, %v1941
    %v1944 = vadd.f32 %v1942, %v1933
    %v1947 = vcombine.high %v1317, %v1317
    %v1949 = vunpack.c.l.s4 1983009808
    %v1950 = vunpack.c.0.s8 %v1949
    %v1951 = vlaneseq
    %v1952 = vshrl.u32 %v1951, 7
    %v1953 = vsub.s32 %v1950, %v1952
    %v1954 = vrot.slane %v1317, %v1953
    %v1956 = vunpack.c.l.s4 1983009808
    %v1957 = vunpack.c.0.s8 %v1956
    %v1958 = vlaneseq
    %v1959 = vshrl.u32 %v1958, 7
    %v1960 = vsub.s32 %v1957, %v1959
    %v1961 = vrot.slane %v1947, %v1960
    %v1962 = vcombine.high %v1954, %v1954
    %v1963 = vcombine.high %v1961, %v1961
    %v1965 = vunpack.c.l.s4 1983009808
    %v1966 = vunpack.c.0.s8 %v1965
    %v1967 = vlaneseq
    %v1968 = vshrl.u32 %v1967, 7
    %v1969 = vsub.s32 %v1966, %v1968
    %v1970 = vrot.slane %v1318, %v1969
    %v1976 = vpack.c.bf16 %v1954, %v1954
    %v1977 = vpack.c.bf16 %v1962, %v1962
    %v1978 = vpack.c.bf16 %v1961, %v1961
    %v1979 = vpack.c.bf16 %v1963, %v1963
    %v1980 = vpack.c.bf16 %v1970, %v1970
    %s1981 = scalar_lea.vmem %s9, 288
    %v1982 = vld [vmem:[%s1981] sm:$0xf]
    %v1983 = vld [vmem:[%s1981 + $0x4] sm:$0xf]
    %v1984 = vld [vmem:[%s1981 + $0x8] sm:$0xf]
    %v1985 = vld [vmem:[%s1981 + $0xc] sm:$0xf]
    %v1986 = vld [vmem:[%s1981 + $0x10] sm:$0xf]
    %v1987 = vld [vmem:[%s1981 + $0x14] sm:$0xf]
    %v1988 = vld [vmem:[%s1981 + $0x18] sm:$0xf]
    %v1989 = vld [vmem:[%s1981 + $0x1c] sm:$0xf]
    %v1990 = vld [vmem:[%s1981 + $0x20] sm:$0xf]
    %v1991 = vld [vmem:[%s1981 + $0x24] sm:$0xf]
    %v1992 = vld [vmem:[%s1981 + $0x28] sm:$0xf]
    %v1993 = vld [vmem:[%s1981 + $0x2c] sm:$0xf]
    %v1994 = vld [vmem:[%s1981 + $0x30] sm:$0xf]
    %v1995 = vld [vmem:[%s1981 + $0x34] sm:$0xf]
    %v1996 = vld [vmem:[%s1981 + $0x38] sm:$0xf]
    %v1997 = vld [vmem:[%s1981 + $0x3c] sm:$0xf]
    %v1998 = vld [vmem:[%s1981 + $0x40] sm:$0xf]
    %v1999 = vld [vmem:[%s1981 + $0x44] sm:$0xf]
    %v2000 = vld [vmem:[%s1981 + $0x48] sm:$0xf]
    %v2001 = vld [vmem:[%s1981 + $0x4c] sm:$0xf]
    %v2002 = vld [vmem:[%s1981 + $0x50] sm:$0xf]
    %v2003 = vld [vmem:[%s1981 + $0x54] sm:$0xf]
    %v2004 = vld [vmem:[%s1981 + $0x58] sm:$0xf]
    %v2005 = vld [vmem:[%s1981 + $0x5c] sm:$0xf]
    %v2006 = vld [vmem:[%s1981 + $0x60] sm:$0xf]
    %v2007 = vld [vmem:[%s1981 + $0x64] sm:$0xf]
    %v2008 = vld [vmem:[%s1981 + $0x68] sm:$0xf]
    %v2009 = vld [vmem:[%s1981 + $0x6c] sm:$0xf]
    %v2010 = vld [vmem:[%s1981 + $0x70] sm:$0xf]
    %v2011 = vld [vmem:[%s1981 + $0x74] sm:$0xf]
    %v2012 = vld [vmem:[%s1981 + $0x78] sm:$0xf]
    %v2013 = vld [vmem:[%s1981 + $0x7c] sm:$0xf]
    %v2014 = vld [vmem:[%s1981 + $0x80] sm:$0xf]
    %v2015 = vld [vmem:[%s1981 + $0x84] sm:$0xf]
    %v2016 = vld [vmem:[%s1981 + $0x88] sm:$0xf]
    %v2017 = vld [vmem:[%s1981 + $0x8c] sm:$0xf]
    %v2018 = vld [vmem:[%s1981 + $0x90] sm:$0xf]
    %v2019 = vld [vmem:[%s1981 + $0x94] sm:$0xf]
    %v2020 = vld [vmem:[%s1981 + $0x98] sm:$0xf]
    %v2021 = vld [vmem:[%s1981 + $0x9c] sm:$0xf]
    %v2022 = vld [vmem:[%s1981 + $0xa0] sm:$0xf]
    %v2023 = vld [vmem:[%s1981 + $0xa4] sm:$0xf]
    %v2024 = vld [vmem:[%s1981 + $0xa8] sm:$0xf]
    %v2025 = vld [vmem:[%s1981 + $0xac] sm:$0xf]
    %v2026 = vld [vmem:[%s1981 + $0xb0] sm:$0xf]
    %v2027 = vld [vmem:[%s1981 + $0xb4] sm:$0xf]
    %v2028 = vld [vmem:[%s1981 + $0xb8] sm:$0xf]
    %v2029 = vld [vmem:[%s1981 + $0xbc] sm:$0xf]
    %v2030 = vld [vmem:[%s1981 + $0xc0] sm:$0xf]
    %v2031 = vld [vmem:[%s1981 + $0xc4] sm:$0xf]
    %v2032 = vld [vmem:[%s1981 + $0xc8] sm:$0xf]
    %v2033 = vld [vmem:[%s1981 + $0xcc] sm:$0xf]
    %v2034 = vld [vmem:[%s1981 + $0xd0] sm:$0xf]
    %v2035 = vld [vmem:[%s1981 + $0xd4] sm:$0xf]
    %v2036 = vld [vmem:[%s1981 + $0xd8] sm:$0xf]
    %v2037 = vld [vmem:[%s1981 + $0xdc] sm:$0xf]
    %v2038 = vld [vmem:[%s1981 + $0xe0] sm:$0xf]
    %v2039 = vld [vmem:[%s1981 + $0xe4] sm:$0xf]
    %v2040 = vld [vmem:[%s1981 + $0xe8] sm:$0xf]
    %v2041 = vld [vmem:[%s1981 + $0xec] sm:$0xf]
    %v2042 = vld [vmem:[%s1981 + $0xf0] sm:$0xf]
    %v2043 = vld [vmem:[%s1981 + $0xf4] sm:$0xf]
    %v2044 = vld [vmem:[%s1981 + $0xf8] sm:$0xf]
    %v2045 = vld [vmem:[%s1981 + $0xfc] sm:$0xf]
    %v2046 = vld [vmem:[%s1981 + $0x100] sm:$0xf]
    %v2047 = vld [vmem:[%s1981 + $0x104] sm:$0xf]
    %v2048 = vld [vmem:[%s1981 + $0x108] sm:$0xf]
    %v2049 = vld [vmem:[%s1981 + $0x10c] sm:$0xf]
    %v2050 = vld [vmem:[%s1981 + $0x110] sm:$0xf]
    %v2051 = vld [vmem:[%s1981 + $0x114] sm:$0xf]
    %v2052 = vld [vmem:[%s1981 + $0x118] sm:$0xf]
    %v2053 = vld [vmem:[%s1981 + $0x11c] sm:$0xf]
    %v2126 = vunpack.c.l.b16 %v1982
    %v2127 = vunpack.c.l.b16 %v1983
    %v2128 = vunpack.c.l.b16 %v1984
    %v2129 = vunpack.c.l.b16 %v1985
    %v2130 = vunpack.c.l.b16 %v1986
    %v2131 = vunpack.c.l.b16 %v1987
    %v2132 = vunpack.c.l.b16 %v1988
    %v2133 = vunpack.c.l.b16 %v1989
    %v2134 = vunpack.c.l.b16 %v1990
    %v2135 = vunpack.c.l.b16 %v1991
    %v2136 = vunpack.c.l.b16 %v1992
    %v2137 = vunpack.c.l.b16 %v1993
    %v2138 = vunpack.c.l.b16 %v1994
    %v2139 = vunpack.c.l.b16 %v1995
    %v2140 = vunpack.c.l.b16 %v1996
    %v2141 = vunpack.c.l.b16 %v1997
    %v2142 = vunpack.c.l.b16 %v1998
    %v2143 = vunpack.c.l.b16 %v1999
    %v2144 = vunpack.c.l.b16 %v2000
    %v2145 = vunpack.c.l.b16 %v2001
    %v2146 = vunpack.c.l.b16 %v2002
    %v2147 = vunpack.c.l.b16 %v2003
    %v2148 = vunpack.c.l.b16 %v2004
    %v2149 = vunpack.c.l.b16 %v2005
    %v2150 = vunpack.c.l.b16 %v2006
    %v2151 = vunpack.c.l.b16 %v2007
    %v2152 = vunpack.c.l.b16 %v2008
    %v2153 = vunpack.c.l.b16 %v2009
    %v2154 = vunpack.c.l.b16 %v2010
    %v2155 = vunpack.c.l.b16 %v2011
    %v2156 = vunpack.c.l.b16 %v2012
    %v2157 = vunpack.c.l.b16 %v2013
    %v2158 = vunpack.c.l.b16 %v2014
    %v2159 = vunpack.c.l.b16 %v2015
    %v2160 = vunpack.c.l.b16 %v2016
    %v2161 = vunpack.c.l.b16 %v2017
    %v2162 = vunpack.c.l.b16 %v2018
    %v2163 = vunpack.c.l.b16 %v2019
    %v2164 = vunpack.c.l.b16 %v2020
    %v2165 = vunpack.c.l.b16 %v2021
    %v2166 = vunpack.c.l.b16 %v2022
    %v2167 = vunpack.c.l.b16 %v2023
    %v2168 = vunpack.c.l.b16 %v2024
    %v2169 = vunpack.c.l.b16 %v2025
    %v2170 = vunpack.c.l.b16 %v2026
    %v2171 = vunpack.c.l.b16 %v2027
    %v2172 = vunpack.c.l.b16 %v2028
    %v2173 = vunpack.c.l.b16 %v2029
    %v2174 = vunpack.c.l.b16 %v2030
    %v2175 = vunpack.c.l.b16 %v2031
    %v2176 = vunpack.c.l.b16 %v2032
    %v2177 = vunpack.c.l.b16 %v2033
    %v2178 = vunpack.c.l.b16 %v2034
    %v2179 = vunpack.c.l.b16 %v2035
    %v2180 = vunpack.c.l.b16 %v2036
    %v2181 = vunpack.c.l.b16 %v2037
    %v2182 = vunpack.c.l.b16 %v2038
    %v2183 = vunpack.c.l.b16 %v2039
    %v2184 = vunpack.c.l.b16 %v2040
    %v2185 = vunpack.c.l.b16 %v2041
    %v2186 = vunpack.c.l.b16 %v2042
    %v2187 = vunpack.c.l.b16 %v2043
    %v2188 = vunpack.c.l.b16 %v2044
    %v2189 = vunpack.c.l.b16 %v2045
    %v2190 = vunpack.c.l.b16 %v2046
    %v2191 = vunpack.c.l.b16 %v2047
    %v2192 = vunpack.c.l.b16 %v2048
    %v2193 = vunpack.c.l.b16 %v2049
    %v2194 = vunpack.c.l.b16 %v2050
    %v2195 = vunpack.c.l.b16 %v2051
    %v2196 = vunpack.c.l.b16 %v2052
    %v2197 = vunpack.c.l.b16 %v2053
    %v2198 = vpack.c.b16 %v2127, %v2126
    %v2199 = vpack.c.b16 %v2129, %v2128
    %v2200 = vpack.c.b16 %v2131, %v2130
    %v2201 = vpack.c.b16 %v2133, %v2132
    %v2202 = vpack.c.b16 %v2135, %v2134
    %v2203 = vpack.c.b16 %v2137, %v2136
    %v2204 = vpack.c.b16 %v2139, %v2138
    %v2205 = vpack.c.b16 %v2141, %v2140
    %v2206 = vpack.c.b16 %v2143, %v2142
    %v2207 = vpack.c.b16 %v2145, %v2144
    %v2208 = vpack.c.b16 %v2147, %v2146
    %v2209 = vpack.c.b16 %v2149, %v2148
    %v2210 = vpack.c.b16 %v2151, %v2150
    %v2211 = vpack.c.b16 %v2153, %v2152
    %v2212 = vpack.c.b16 %v2155, %v2154
    %v2213 = vpack.c.b16 %v2157, %v2156
    %v2214 = vpack.c.b16 %v2159, %v2158
    %v2215 = vpack.c.b16 %v2161, %v2160
    %v2216 = vpack.c.b16 %v2163, %v2162
    %v2217 = vpack.c.b16 %v2165, %v2164
    %v2218 = vpack.c.b16 %v2167, %v2166
    %v2219 = vpack.c.b16 %v2169, %v2168
    %v2220 = vpack.c.b16 %v2171, %v2170
    %v2221 = vpack.c.b16 %v2173, %v2172
    %v2222 = vpack.c.b16 %v2175, %v2174
    %v2223 = vpack.c.b16 %v2177, %v2176
    %v2224 = vpack.c.b16 %v2179, %v2178
    %v2225 = vpack.c.b16 %v2181, %v2180
    %v2226 = vpack.c.b16 %v2183, %v2182
    %v2227 = vpack.c.b16 %v2185, %v2184
    %v2228 = vpack.c.b16 %v2187, %v2186
    %v2229 = vpack.c.b16 %v2189, %v2188
    %v2230 = vpack.c.b16 %v2191, %v2190
    %v2231 = vpack.c.b16 %v2193, %v2192
    %v2232 = vpack.c.b16 %v2195, %v2194
    %v2233 = vpack.c.b16 %v2197, %v2196
    %v2271 = vsel %vm1814, %v1980, 0
    %2273 = vmatprep.subr.bf16.mxu0 0
    %2274 = vmatpush1.bf16.msra.mxu0 %v2198
    %2275 = vmatprep.subr.bf16.mxu0 0
    %2276 = vmatpush1.bf16.msra.mxu0 %v2199
    %2277 = vmatprep.subr.bf16.mxu0 0
    %2278 = vmatpush1.bf16.msra.mxu0 %v2200
    %2279 = vmatprep.subr.bf16.mxu0 0
    %2280 = vmatpush1.bf16.msra.mxu0 %v2201
    %2281 = vmatprep.subr.bf16.mxu0 0
    %2282 = vmatpush1.bf16.msra.mxu0 %v2202
    %2283 = vmatprep.subr.bf16.mxu0 0
    %2284 = vmatpush1.bf16.msra.mxu0 %v2203
    %2285 = vmatprep.subr.bf16.mxu0 0
    %2286 = vmatpush1.bf16.msra.mxu0 %v2204
    %2287 = vmatprep.subr.bf16.mxu0 0
    %2288 = vmatpush1.bf16.msra.mxu0 %v2205
    %2289 = vmatprep.subr.bf16.mxu0 0
    %2290 = vmatpush1.bf16.msra.mxu0 %v2206
    %2291 = vmatprep.subr.bf16.mxu0 0
    %2292 = vmatpush1.bf16.msra.mxu0 %v2207
    %2293 = vmatprep.subr.bf16.mxu0 0
    %2294 = vmatpush1.bf16.msra.mxu0 %v2208
    %2295 = vmatprep.subr.bf16.mxu0 0
    %2296 = vmatpush1.bf16.msra.mxu0 %v2209
    %2297 = vmatprep.subr.bf16.mxu0 0
    %2298 = vmatpush1.bf16.msra.mxu0 %v2210
    %2299 = vmatprep.subr.bf16.mxu0 0
    %2300 = vmatpush1.bf16.msra.mxu0 %v2211
    %2301 = vmatprep.subr.bf16.mxu0 0
    %2302 = vmatpush1.bf16.msra.mxu0 %v2212
    %2303 = vmatprep.subr.bf16.mxu0 0
    %2304 = vmatpush1.bf16.msra.mxu0 %v2213
    %2305 = vmatprep.mubr.bf16.mxu0 %v1977
    %2306 = vmatmul.mubr.bf16.gmra.mrb[0].mxu0 %v1976
    %v2307 = vpop.f32.mrb[0].mxu0
    %v2308 = vadd.f32 0.0, %v2307
    %v2309 = vpop.f32.mrb[0].mxu0
    %v2310 = vpop.f32.mrb[0].mxu0
    %v2311 = vpop.f32.mrb[0].mxu0
    %2312 = vdwg.mxu0
    %2313 = vmatprep.subr.bf16.mxu0 0
    %2314 = vmatpush1.bf16.msra.mxu0 %v2214
    %2315 = vmatprep.subr.bf16.mxu0 0
    %2316 = vmatpush1.bf16.msra.mxu0 %v2215
    %2317 = vmatprep.subr.bf16.mxu0 0
    %2318 = vmatpush1.bf16.msra.mxu0 %v2216
    %2319 = vmatprep.subr.bf16.mxu0 0
    %2320 = vmatpush1.bf16.msra.mxu0 %v2217
    %2321 = vmatprep.subr.bf16.mxu0 0
    %2322 = vmatpush1.bf16.msra.mxu0 %v2218
    %2323 = vmatprep.subr.bf16.mxu0 0
    %2324 = vmatpush1.bf16.msra.mxu0 %v2219
    %2325 = vmatprep.subr.bf16.mxu0 0
    %2326 = vmatpush1.bf16.msra.mxu0 %v2220
    %2327 = vmatprep.subr.bf16.mxu0 0
    %2328 = vmatpush1.bf16.msra.mxu0 %v2221
    %2329 = vmatprep.subr.bf16.mxu0 0
    %2330 = vmatpush1.bf16.msra.mxu0 %v2222
    %2331 = vmatprep.subr.bf16.mxu0 0
    %2332 = vmatpush1.bf16.msra.mxu0 %v2223
    %2333 = vmatprep.subr.bf16.mxu0 0
    %2334 = vmatpush1.bf16.msra.mxu0 %v2224
    %2335 = vmatprep.subr.bf16.mxu0 0
    %2336 = vmatpush1.bf16.msra.mxu0 %v2225
    %2337 = vmatprep.subr.bf16.mxu0 0
    %2338 = vmatpush1.bf16.msra.mxu0 %v2226
    %2339 = vmatprep.subr.bf16.mxu0 0
    %2340 = vmatpush1.bf16.msra.mxu0 %v2227
    %2341 = vmatprep.subr.bf16.mxu0 0
    %2342 = vmatpush1.bf16.msra.mxu0 %v2228
    %2343 = vmatprep.subr.bf16.mxu0 0
    %2344 = vmatpush1.bf16.msra.mxu0 %v2229
    %2345 = vmatprep.mubr.bf16.mxu0 %v1979
    %2346 = vmatmul.mubr.bf16.gmra.mrb[0].mxu0 %v1978
    %v2347 = vpop.f32.mrb[0].mxu0
    %v2348 = vadd.f32 %v2308, %v2347
    %v2349 = vpop.f32.mrb[0].mxu0
    %v2350 = vpop.f32.mrb[0].mxu0
    %v2351 = vpop.f32.mrb[0].mxu0
    %2352 = vdwg.mxu0
    %2353 = vmatprep.subr.bf16.mxu0 0
    %2354 = vmatpush1.bf16.msra.mxu0 %v2230
    %2355 = vmatprep.subr.bf16.mxu0 0
    %2356 = vmatpush1.bf16.msra.mxu0 %v2231
    %2357 = vmatprep.subr.bf16.mxu0 0
    %2358 = vmatpush1.bf16.msra.mxu0 %v2232
    %2359 = vmatprep.subr.bf16.mxu0 0
    %2360 = vmatpush1.bf16.msra.mxu0 %v2233
    %2361 = vmatprep.subr.bf16.mxu0 0
    %2362 = vmatpush1.bf16.msra.mxu0 0
    %2363 = vmatprep.subr.bf16.mxu0 0
    %2364 = vmatpush1.bf16.msra.mxu0 0
    %2365 = vmatprep.subr.bf16.mxu0 0
    %2366 = vmatpush1.bf16.msra.mxu0 0
    %2367 = vmatprep.subr.bf16.mxu0 0
    %2368 = vmatpush1.bf16.msra.mxu0 0
    %2369 = vmatprep.subr.bf16.mxu0 0
    %2370 = vmatpush1.bf16.msra.mxu0 0
    %2371 = vmatprep.subr.bf16.mxu0 0
    %2372 = vmatpush1.bf16.msra.mxu0 0
    %2373 = vmatprep.subr.bf16.mxu0 0
    %2374 = vmatpush1.bf16.msra.mxu0 0
    %2375 = vmatprep.subr.bf16.mxu0 0
    %2376 = vmatpush1.bf16.msra.mxu0 0
    %2377 = vmatprep.subr.bf16.mxu0 0
    %2378 = vmatpush1.bf16.msra.mxu0 0
    %2379 = vmatprep.subr.bf16.mxu0 0
    %2380 = vmatpush1.bf16.msra.mxu0 0
    %2381 = vmatprep.subr.bf16.mxu0 0
    %2382 = vmatpush1.bf16.msra.mxu0 0
    %2383 = vmatprep.subr.bf16.mxu0 0
    %2384 = vmatpush1.bf16.msra.mxu0 0
    %2385 = vmatprep.mubr.bf16.mxu0 0
    %2386 = vmatmul.mubr.bf16.gmra.mrb[0].mxu0 %v2271
    %v2387 = vpop.f32.mrb[0].mxu0
    %v2388 = vadd.f32 %v2348, %v2387
    %v2389 = vpop.f32.mrb[0].mxu0
    %v2390 = vpop.f32.mrb[0].mxu0
    %v2391 = vpop.f32.mrb[0].mxu0
    %2392 = vdwg.mxu0
    %v2393 = vadd.f32 %v1944, %v2388
    %v2396 = vcombine.high %v1487, %v1487
    %v2398 = vunpack.c.l.s4 1983009808
    %v2399 = vunpack.c.0.s8 %v2398
    %v2400 = vlaneseq
    %v2401 = vshrl.u32 %v2400, 7
    %v2402 = vsub.s32 %v2399, %v2401
    %v2403 = vrot.slane %v1487, %v2402
    %v2405 = vunpack.c.l.s4 1983009808
    %v2406 = vunpack.c.0.s8 %v2405
    %v2407 = vlaneseq
    %v2408 = vshrl.u32 %v2407, 7
    %v2409 = vsub.s32 %v2406, %v2408
    %v2410 = vrot.slane %v2396, %v2409
    %v2411 = vcombine.high %v2403, %v2403
    %v2412 = vcombine.high %v2410, %v2410
    %v2414 = vunpack.c.l.s4 1983009808
    %v2415 = vunpack.c.0.s8 %v2414
    %v2416 = vlaneseq
    %v2417 = vshrl.u32 %v2416, 7
    %v2418 = vsub.s32 %v2415, %v2417
    %v2419 = vrot.slane %v1488, %v2418
    %v2425 = vpack.c.bf16 %v2403, %v2403
    %v2426 = vpack.c.bf16 %v2411, %v2411
    %v2427 = vpack.c.bf16 %v2410, %v2410
    %v2428 = vpack.c.bf16 %v2412, %v2412
    %v2429 = vpack.c.bf16 %v2419, %v2419
    %s2430 = scalar_lea.vmem %s9, 576
    %v2431 = vld [vmem:[%s2430] sm:$0xf]
    %v2432 = vld [vmem:[%s2430 + $0x4] sm:$0xf]
    %v2433 = vld [vmem:[%s2430 + $0x8] sm:$0xf]
    %v2434 = vld [vmem:[%s2430 + $0xc] sm:$0xf]
    %v2435 = vld [vmem:[%s2430 + $0x10] sm:$0xf]
    %v2436 = vld [vmem:[%s2430 + $0x14] sm:$0xf]
    %v2437 = vld [vmem:[%s2430 + $0x18] sm:$0xf]
    %v2438 = vld [vmem:[%s2430 + $0x1c] sm:$0xf]
    %v2439 = vld [vmem:[%s2430 + $0x20] sm:$0xf]
    %v2440 = vld [vmem:[%s2430 + $0x24] sm:$0xf]
    %v2441 = vld [vmem:[%s2430 + $0x28] sm:$0xf]
    %v2442 = vld [vmem:[%s2430 + $0x2c] sm:$0xf]
    %v2443 = vld [vmem:[%s2430 + $0x30] sm:$0xf]
    %v2444 = vld [vmem:[%s2430 + $0x34] sm:$0xf]
    %v2445 = vld [vmem:[%s2430 + $0x38] sm:$0xf]
    %v2446 = vld [vmem:[%s2430 + $0x3c] sm:$0xf]
    %v2447 = vld [vmem:[%s2430 + $0x40] sm:$0xf]
    %v2448 = vld [vmem:[%s2430 + $0x44] sm:$0xf]
    %v2449 = vld [vmem:[%s2430 + $0x48] sm:$0xf]
    %v2450 = vld [vmem:[%s2430 + $0x4c] sm:$0xf]
    %v2451 = vld [vmem:[%s2430 + $0x50] sm:$0xf]
    %v2452 = vld [vmem:[%s2430 + $0x54] sm:$0xf]
    %v2453 = vld [vmem:[%s2430 + $0x58] sm:$0xf]
    %v2454 = vld [vmem:[%s2430 + $0x5c] sm:$0xf]
    %v2455 = vld [vmem:[%s2430 + $0x60] sm:$0xf]
    %v2456 = vld [vmem:[%s2430 + $0x64] sm:$0xf]
    %v2457 = vld [vmem:[%s2430 + $0x68] sm:$0xf]
    %v2458 = vld [vmem:[%s2430 + $0x6c] sm:$0xf]
    %v2459 = vld [vmem:[%s2430 + $0x70] sm:$0xf]
    %v2460 = vld [vmem:[%s2430 + $0x74] sm:$0xf]
    %v2461 = vld [vmem:[%s2430 + $0x78] sm:$0xf]
    %v2462 = vld [vmem:[%s2430 + $0x7c] sm:$0xf]
    %v2463 = vld [vmem:[%s2430 + $0x80] sm:$0xf]
    %v2464 = vld [vmem:[%s2430 + $0x84] sm:$0xf]
    %v2465 = vld [vmem:[%s2430 + $0x88] sm:$0xf]
    %v2466 = vld [vmem:[%s2430 + $0x8c] sm:$0xf]
    %v2467 = vld [vmem:[%s2430 + $0x90] sm:$0xf]
    %v2468 = vld [vmem:[%s2430 + $0x94] sm:$0xf]
    %v2469 = vld [vmem:[%s2430 + $0x98] sm:$0xf]
    %v2470 = vld [vmem:[%s2430 + $0x9c] sm:$0xf]
    %v2471 = vld [vmem:[%s2430 + $0xa0] sm:$0xf]
    %v2472 = vld [vmem:[%s2430 + $0xa4] sm:$0xf]
    %v2473 = vld [vmem:[%s2430 + $0xa8] sm:$0xf]
    %v2474 = vld [vmem:[%s2430 + $0xac] sm:$0xf]
    %v2475 = vld [vmem:[%s2430 + $0xb0] sm:$0xf]
    %v2476 = vld [vmem:[%s2430 + $0xb4] sm:$0xf]
    %v2477 = vld [vmem:[%s2430 + $0xb8] sm:$0xf]
    %v2478 = vld [vmem:[%s2430 + $0xbc] sm:$0xf]
    %v2479 = vld [vmem:[%s2430 + $0xc0] sm:$0xf]
    %v2480 = vld [vmem:[%s2430 + $0xc4] sm:$0xf]
    %v2481 = vld [vmem:[%s2430 + $0xc8] sm:$0xf]
    %v2482 = vld [vmem:[%s2430 + $0xcc] sm:$0xf]
    %v2483 = vld [vmem:[%s2430 + $0xd0] sm:$0xf]
    %v2484 = vld [vmem:[%s2430 + $0xd4] sm:$0xf]
    %v2485 = vld [vmem:[%s2430 + $0xd8] sm:$0xf]
    %v2486 = vld [vmem:[%s2430 + $0xdc] sm:$0xf]
    %v2487 = vld [vmem:[%s2430 + $0xe0] sm:$0xf]
    %v2488 = vld [vmem:[%s2430 + $0xe4] sm:$0xf]
    %v2489 = vld [vmem:[%s2430 + $0xe8] sm:$0xf]
    %v2490 = vld [vmem:[%s2430 + $0xec] sm:$0xf]
    %v2491 = vld [vmem:[%s2430 + $0xf0] sm:$0xf]
    %v2492 = vld [vmem:[%s2430 + $0xf4] sm:$0xf]
    %v2493 = vld [vmem:[%s2430 + $0xf8] sm:$0xf]
    %v2494 = vld [vmem:[%s2430 + $0xfc] sm:$0xf]
    %v2495 = vld [vmem:[%s2430 + $0x100] sm:$0xf]
    %v2496 = vld [vmem:[%s2430 + $0x104] sm:$0xf]
    %v2497 = vld [vmem:[%s2430 + $0x108] sm:$0xf]
    %v2498 = vld [vmem:[%s2430 + $0x10c] sm:$0xf]
    %v2499 = vld [vmem:[%s2430 + $0x110] sm:$0xf]
    %v2500 = vld [vmem:[%s2430 + $0x114] sm:$0xf]
    %v2501 = vld [vmem:[%s2430 + $0x118] sm:$0xf]
    %v2502 = vld [vmem:[%s2430 + $0x11c] sm:$0xf]
    %v2575 = vunpack.c.l.b16 %v2431
    %v2576 = vunpack.c.l.b16 %v2432
    %v2577 = vunpack.c.l.b16 %v2433
    %v2578 = vunpack.c.l.b16 %v2434
    %v2579 = vunpack.c.l.b16 %v2435
    %v2580 = vunpack.c.l.b16 %v2436
    %v2581 = vunpack.c.l.b16 %v2437
    %v2582 = vunpack.c.l.b16 %v2438
    %v2583 = vunpack.c.l.b16 %v2439
    %v2584 = vunpack.c.l.b16 %v2440
    %v2585 = vunpack.c.l.b16 %v2441
    %v2586 = vunpack.c.l.b16 %v2442
    %v2587 = vunpack.c.l.b16 %v2443
    %v2588 = vunpack.c.l.b16 %v2444
    %v2589 = vunpack.c.l.b16 %v2445
    %v2590 = vunpack.c.l.b16 %v2446
    %v2591 = vunpack.c.l.b16 %v2447
    %v2592 = vunpack.c.l.b16 %v2448
    %v2593 = vunpack.c.l.b16 %v2449
    %v2594 = vunpack.c.l.b16 %v2450
    %v2595 = vunpack.c.l.b16 %v2451
    %v2596 = vunpack.c.l.b16 %v2452
    %v2597 = vunpack.c.l.b16 %v2453
    %v2598 = vunpack.c.l.b16 %v2454
    %v2599 = vunpack.c.l.b16 %v2455
    %v2600 = vunpack.c.l.b16 %v2456
    %v2601 = vunpack.c.l.b16 %v2457
    %v2602 = vunpack.c.l.b16 %v2458
    %v2603 = vunpack.c.l.b16 %v2459
    %v2604 = vunpack.c.l.b16 %v2460
    %v2605 = vunpack.c.l.b16 %v2461
    %v2606 = vunpack.c.l.b16 %v2462
    %v2607 = vunpack.c.l.b16 %v2463
    %v2608 = vunpack.c.l.b16 %v2464
    %v2609 = vunpack.c.l.b16 %v2465
    %v2610 = vunpack.c.l.b16 %v2466
    %v2611 = vunpack.c.l.b16 %v2467
    %v2612 = vunpack.c.l.b16 %v2468
    %v2613 = vunpack.c.l.b16 %v2469
    %v2614 = vunpack.c.l.b16 %v2470
    %v2615 = vunpack.c.l.b16 %v2471
    %v2616 = vunpack.c.l.b16 %v2472
    %v2617 = vunpack.c.l.b16 %v2473
    %v2618 = vunpack.c.l.b16 %v2474
    %v2619 = vunpack.c.l.b16 %v2475
    %v2620 = vunpack.c.l.b16 %v2476
    %v2621 = vunpack.c.l.b16 %v2477
    %v2622 = vunpack.c.l.b16 %v2478
    %v2623 = vunpack.c.l.b16 %v2479
    %v2624 = vunpack.c.l.b16 %v2480
    %v2625 = vunpack.c.l.b16 %v2481
    %v2626 = vunpack.c.l.b16 %v2482
    %v2627 = vunpack.c.l.b16 %v2483
    %v2628 = vunpack.c.l.b16 %v2484
    %v2629 = vunpack.c.l.b16 %v2485
    %v2630 = vunpack.c.l.b16 %v2486
    %v2631 = vunpack.c.l.b16 %v2487
    %v2632 = vunpack.c.l.b16 %v2488
    %v2633 = vunpack.c.l.b16 %v2489
    %v2634 = vunpack.c.l.b16 %v2490
    %v2635 = vunpack.c.l.b16 %v2491
    %v2636 = vunpack.c.l.b16 %v2492
    %v2637 = vunpack.c.l.b16 %v2493
    %v2638 = vunpack.c.l.b16 %v2494
    %v2639 = vunpack.c.l.b16 %v2495
    %v2640 = vunpack.c.l.b16 %v2496
    %v2641 = vunpack.c.l.b16 %v2497
    %v2642 = vunpack.c.l.b16 %v2498
    %v2643 = vunpack.c.l.b16 %v2499
    %v2644 = vunpack.c.l.b16 %v2500
    %v2645 = vunpack.c.l.b16 %v2501
    %v2646 = vunpack.c.l.b16 %v2502
    %v2647 = vpack.c.b16 %v2576, %v2575
    %v2648 = vpack.c.b16 %v2578, %v2577
    %v2649 = vpack.c.b16 %v2580, %v2579
    %v2650 = vpack.c.b16 %v2582, %v2581
    %v2651 = vpack.c.b16 %v2584, %v2583
    %v2652 = vpack.c.b16 %v2586, %v2585
    %v2653 = vpack.c.b16 %v2588, %v2587
    %v2654 = vpack.c.b16 %v2590, %v2589
    %v2655 = vpack.c.b16 %v2592, %v2591
    %v2656 = vpack.c.b16 %v2594, %v2593
    %v2657 = vpack.c.b16 %v2596, %v2595
    %v2658 = vpack.c.b16 %v2598, %v2597
    %v2659 = vpack.c.b16 %v2600, %v2599
    %v2660 = vpack.c.b16 %v2602, %v2601
    %v2661 = vpack.c.b16 %v2604, %v2603
    %v2662 = vpack.c.b16 %v2606, %v2605
    %v2663 = vpack.c.b16 %v2608, %v2607
    %v2664 = vpack.c.b16 %v2610, %v2609
    %v2665 = vpack.c.b16 %v2612, %v2611
    %v2666 = vpack.c.b16 %v2614, %v2613
    %v2667 = vpack.c.b16 %v2616, %v2615
    %v2668 = vpack.c.b16 %v2618, %v2617
    %v2669 = vpack.c.b16 %v2620, %v2619
    %v2670 = vpack.c.b16 %v2622, %v2621
    %v2671 = vpack.c.b16 %v2624, %v2623
    %v2672 = vpack.c.b16 %v2626, %v2625
    %v2673 = vpack.c.b16 %v2628, %v2627
    %v2674 = vpack.c.b16 %v2630, %v2629
    %v2675 = vpack.c.b16 %v2632, %v2631
    %v2676 = vpack.c.b16 %v2634, %v2633
    %v2677 = vpack.c.b16 %v2636, %v2635
    %v2678 = vpack.c.b16 %v2638, %v2637
    %v2679 = vpack.c.b16 %v2640, %v2639
    %v2680 = vpack.c.b16 %v2642, %v2641
    %v2681 = vpack.c.b16 %v2644, %v2643
    %v2682 = vpack.c.b16 %v2646, %v2645
    %v2720 = vsel %vm1814, %v2429, 0
    %2722 = vmatprep.subr.bf16.mxu0 0
    %2723 = vmatpush1.bf16.msra.mxu0 %v2647
    %2724 = vmatprep.subr.bf16.mxu0 0
    %2725 = vmatpush1.bf16.msra.mxu0 %v2648
    %2726 = vmatprep.subr.bf16.mxu0 0
    %2727 = vmatpush1.bf16.msra.mxu0 %v2649
    %2728 = vmatprep.subr.bf16.mxu0 0
    %2729 = vmatpush1.bf16.msra.mxu0 %v2650
    %2730 = vmatprep.subr.bf16.mxu0 0
    %2731 = vmatpush1.bf16.msra.mxu0 %v2651
    %2732 = vmatprep.subr.bf16.mxu0 0
    %2733 = vmatpush1.bf16.msra.mxu0 %v2652
    %2734 = vmatprep.subr.bf16.mxu0 0
    %2735 = vmatpush1.bf16.msra.mxu0 %v2653
    %2736 = vmatprep.subr.bf16.mxu0 0
    %2737 = vmatpush1.bf16.msra.mxu0 %v2654
    %2738 = vmatprep.subr.bf16.mxu0 0
    %2739 = vmatpush1.bf16.msra.mxu0 %v2655
    %2740 = vmatprep.subr.bf16.mxu0 0
    %2741 = vmatpush1.bf16.msra.mxu0 %v2656
    %2742 = vmatprep.subr.bf16.mxu0 0
    %2743 = vmatpush1.bf16.msra.mxu0 %v2657
    %2744 = vmatprep.subr.bf16.mxu0 0
    %2745 = vmatpush1.bf16.msra.mxu0 %v2658
    %2746 = vmatprep.subr.bf16.mxu0 0
    %2747 = vmatpush1.bf16.msra.mxu0 %v2659
    %2748 = vmatprep.subr.bf16.mxu0 0
    %2749 = vmatpush1.bf16.msra.mxu0 %v2660
    %2750 = vmatprep.subr.bf16.mxu0 0
    %2751 = vmatpush1.bf16.msra.mxu0 %v2661
    %2752 = vmatprep.subr.bf16.mxu0 0
    %2753 = vmatpush1.bf16.msra.mxu0 %v2662
    %2754 = vmatprep.mubr.bf16.mxu0 %v2426
    %2755 = vmatmul.mubr.bf16.gmra.mrb[0].mxu0 %v2425
    %v2756 = vpop.f32.mrb[0].mxu0
    %v2757 = vadd.f32 0.0, %v2756
    %v2758 = vpop.f32.mrb[0].mxu0
    %v2759 = vpop.f32.mrb[0].mxu0
    %v2760 = vpop.f32.mrb[0].mxu0
    %2761 = vdwg.mxu0
    %2762 = vmatprep.subr.bf16.mxu0 0
    %2763 = vmatpush1.bf16.msra.mxu0 %v2663
    %2764 = vmatprep.subr.bf16.mxu0 0
    %2765 = vmatpush1.bf16.msra.mxu0 %v2664
    %2766 = vmatprep.subr.bf16.mxu0 0
    %2767 = vmatpush1.bf16.msra.mxu0 %v2665
    %2768 = vmatprep.subr.bf16.mxu0 0
    %2769 = vmatpush1.bf16.msra.mxu0 %v2666
    %2770 = vmatprep.subr.bf16.mxu0 0
    %2771 = vmatpush1.bf16.msra.mxu0 %v2667
    %2772 = vmatprep.subr.bf16.mxu0 0
    %2773 = vmatpush1.bf16.msra.mxu0 %v2668
    %2774 = vmatprep.subr.bf16.mxu0 0
    %2775 = vmatpush1.bf16.msra.mxu0 %v2669
    %2776 = vmatprep.subr.bf16.mxu0 0
    %2777 = vmatpush1.bf16.msra.mxu0 %v2670
    %2778 = vmatprep.subr.bf16.mxu0 0
    %2779 = vmatpush1.bf16.msra.mxu0 %v2671
    %2780 = vmatprep.subr.bf16.mxu0 0
    %2781 = vmatpush1.bf16.msra.mxu0 %v2672
    %2782 = vmatprep.subr.bf16.mxu0 0
    %2783 = vmatpush1.bf16.msra.mxu0 %v2673
    %2784 = vmatprep.subr.bf16.mxu0 0
    %2785 = vmatpush1.bf16.msra.mxu0 %v2674
    %2786 = vmatprep.subr.bf16.mxu0 0
    %2787 = vmatpush1.bf16.msra.mxu0 %v2675
    %2788 = vmatprep.subr.bf16.mxu0 0
    %2789 = vmatpush1.bf16.msra.mxu0 %v2676
    %2790 = vmatprep.subr.bf16.mxu0 0
    %2791 = vmatpush1.bf16.msra.mxu0 %v2677
    %2792 = vmatprep.subr.bf16.mxu0 0
    %2793 = vmatpush1.bf16.msra.mxu0 %v2678
    %2794 = vmatprep.mubr.bf16.mxu0 %v2428
    %2795 = vmatmul.mubr.bf16.gmra.mrb[0].mxu0 %v2427
    %v2796 = vpop.f32.mrb[0].mxu0
    %v2797 = vadd.f32 %v2757, %v2796
    %v2798 = vpop.f32.mrb[0].mxu0
    %v2799 = vpop.f32.mrb[0].mxu0
    %v2800 = vpop.f32.mrb[0].mxu0
    %2801 = vdwg.mxu0
    %2802 = vmatprep.subr.bf16.mxu0 0
    %2803 = vmatpush1.bf16.msra.mxu0 %v2679
    %2804 = vmatprep.subr.bf16.mxu0 0
    %2805 = vmatpush1.bf16.msra.mxu0 %v2680
    %2806 = vmatprep.subr.bf16.mxu0 0
    %2807 = vmatpush1.bf16.msra.mxu0 %v2681
    %2808 = vmatprep.subr.bf16.mxu0 0
    %2809 = vmatpush1.bf16.msra.mxu0 %v2682
    %2810 = vmatprep.subr.bf16.mxu0 0
    %2811 = vmatpush1.bf16.msra.mxu0 0
    %2812 = vmatprep.subr.bf16.mxu0 0
    %2813 = vmatpush1.bf16.msra.mxu0 0
    %2814 = vmatprep.subr.bf16.mxu0 0
    %2815 = vmatpush1.bf16.msra.mxu0 0
    %2816 = vmatprep.subr.bf16.mxu0 0
    %2817 = vmatpush1.bf16.msra.mxu0 0
    %2818 = vmatprep.subr.bf16.mxu0 0
    %2819 = vmatpush1.bf16.msra.mxu0 0
    %2820 = vmatprep.subr.bf16.mxu0 0
    %2821 = vmatpush1.bf16.msra.mxu0 0
    %2822 = vmatprep.subr.bf16.mxu0 0
    %2823 = vmatpush1.bf16.msra.mxu0 0
    %2824 = vmatprep.subr.bf16.mxu0 0
    %2825 = vmatpush1.bf16.msra.mxu0 0
    %2826 = vmatprep.subr.bf16.mxu0 0
    %2827 = vmatpush1.bf16.msra.mxu0 0
    %2828 = vmatprep.subr.bf16.mxu0 0
    %2829 = vmatpush1.bf16.msra.mxu0 0
    %2830 = vmatprep.subr.bf16.mxu0 0
    %2831 = vmatpush1.bf16.msra.mxu0 0
    %2832 = vmatprep.subr.bf16.mxu0 0
    %2833 = vmatpush1.bf16.msra.mxu0 0
    %2834 = vmatprep.mubr.bf16.mxu0 0
    %2835 = vmatmul.mubr.bf16.gmra.mrb[0].mxu0 %v2720
    %v2836 = vpop.f32.mrb[0].mxu0
    %v2837 = vadd.f32 %v2797, %v2836
    %v2838 = vpop.f32.mrb[0].mxu0
    %v2839 = vpop.f32.mrb[0].mxu0
    %v2840 = vpop.f32.mrb[0].mxu0
    %2841 = vdwg.mxu0
    %v2842 = vadd.f32 %v2393, %v2837
    %v2845 = vcombine.high %v140, %v140
    %v2847 = vunpack.c.l.s4 1983009808
    %v2848 = vunpack.c.0.s8 %v2847
    %v2849 = vlaneseq
    %v2850 = vshrl.u32 %v2849, 7
    %v2851 = vsub.s32 %v2848, %v2850
    %v2852 = vrot.slane %v140, %v2851
    %v2854 = vunpack.c.l.s4 1983009808
    %v2855 = vunpack.c.0.s8 %v2854
    %v2856 = vlaneseq
    %v2857 = vshrl.u32 %v2856, 7
    %v2858 = vsub.s32 %v2855, %v2857
    %v2859 = vrot.slane %v2845, %v2858
    %v2860 = vcombine.high %v2852, %v2852
    %v2861 = vcombine.high %v2859, %v2859
    %v2863 = vunpack.c.l.s4 1983009808
    %v2864 = vunpack.c.0.s8 %v2863
    %v2865 = vlaneseq
    %v2866 = vshrl.u32 %v2865, 7
    %v2867 = vsub.s32 %v2864, %v2866
    %v2868 = vrot.slane %v141, %v2867
    %v2874 = vpack.c.bf16 %v2852, %v2852
    %v2875 = vpack.c.bf16 %v2860, %v2860
    %v2876 = vpack.c.bf16 %v2859, %v2859
    %v2877 = vpack.c.bf16 %v2861, %v2861
    %v2878 = vpack.c.bf16 %v2868, %v2868
    %s2879 = scalar_lea.vmem %s9, 864
    %v2880 = vld [vmem:[%s2879] sm:$0xf]
    %v2881 = vld [vmem:[%s2879 + $0x4] sm:$0xf]
    %v2882 = vld [vmem:[%s2879 + $0x8] sm:$0xf]
    %v2883 = vld [vmem:[%s2879 + $0xc] sm:$0xf]
    %v2884 = vld [vmem:[%s2879 + $0x10] sm:$0xf]
    %v2885 = vld [vmem:[%s2879 + $0x14] sm:$0xf]
    %v2886 = vld [vmem:[%s2879 + $0x18] sm:$0xf]
    %v2887 = vld [vmem:[%s2879 + $0x1c] sm:$0xf]
    %v2888 = vld [vmem:[%s2879 + $0x20] sm:$0xf]
    %v2889 = vld [vmem:[%s2879 + $0x24] sm:$0xf]
    %v2890 = vld [vmem:[%s2879 + $0x28] sm:$0xf]
    %v2891 = vld [vmem:[%s2879 + $0x2c] sm:$0xf]
    %v2892 = vld [vmem:[%s2879 + $0x30] sm:$0xf]
    %v2893 = vld [vmem:[%s2879 + $0x34] sm:$0xf]
    %v2894 = vld [vmem:[%s2879 + $0x38] sm:$0xf]
    %v2895 = vld [vmem:[%s2879 + $0x3c] sm:$0xf]
    %v2896 = vld [vmem:[%s2879 + $0x40] sm:$0xf]
    %v2897 = vld [vmem:[%s2879 + $0x44] sm:$0xf]
    %v2898 = vld [vmem:[%s2879 + $0x48] sm:$0xf]
    %v2899 = vld [vmem:[%s2879 + $0x4c] sm:$0xf]
    %v2900 = vld [vmem:[%s2879 + $0x50] sm:$0xf]
    %v2901 = vld [vmem:[%s2879 + $0x54] sm:$0xf]
    %v2902 = vld [vmem:[%s2879 + $0x58] sm:$0xf]
    %v2903 = vld [vmem:[%s2879 + $0x5c] sm:$0xf]
    %v2904 = vld [vmem:[%s2879 + $0x60] sm:$0xf]
    %v2905 = vld [vmem:[%s2879 + $0x64] sm:$0xf]
    %v2906 = vld [vmem:[%s2879 + $0x68] sm:$0xf]
    %v2907 = vld [vmem:[%s2879 + $0x6c] sm:$0xf]
    %v2908 = vld [vmem:[%s2879 + $0x70] sm:$0xf]
    %v2909 = vld [vmem:[%s2879 + $0x74] sm:$0xf]
    %v2910 = vld [vmem:[%s2879 + $0x78] sm:$0xf]
    %v2911 = vld [vmem:[%s2879 + $0x7c] sm:$0xf]
    %v2912 = vld [vmem:[%s2879 + $0x80] sm:$0xf]
    %v2913 = vld [vmem:[%s2879 + $0x84] sm:$0xf]
    %v2914 = vld [vmem:[%s2879 + $0x88] sm:$0xf]
    %v2915 = vld [vmem:[%s2879 + $0x8c] sm:$0xf]
    %v2916 = vld [vmem:[%s2879 + $0x90] sm:$0xf]
    %v2917 = vld [vmem:[%s2879 + $0x94] sm:$0xf]
    %v2918 = vld [vmem:[%s2879 + $0x98] sm:$0xf]
    %v2919 = vld [vmem:[%s2879 + $0x9c] sm:$0xf]
    %v2920 = vld [vmem:[%s2879 + $0xa0] sm:$0xf]
    %v2921 = vld [vmem:[%s2879 + $0xa4] sm:$0xf]
    %v2922 = vld [vmem:[%s2879 + $0xa8] sm:$0xf]
    %v2923 = vld [vmem:[%s2879 + $0xac] sm:$0xf]
    %v2924 = vld [vmem:[%s2879 + $0xb0] sm:$0xf]
    %v2925 = vld [vmem:[%s2879 + $0xb4] sm:$0xf]
    %v2926 = vld [vmem:[%s2879 + $0xb8] sm:$0xf]
    %v2927 = vld [vmem:[%s2879 + $0xbc] sm:$0xf]
    %v2928 = vld [vmem:[%s2879 + $0xc0] sm:$0xf]
    %v2929 = vld [vmem:[%s2879 + $0xc4] sm:$0xf]
    %v2930 = vld [vmem:[%s2879 + $0xc8] sm:$0xf]
    %v2931 = vld [vmem:[%s2879 + $0xcc] sm:$0xf]
    %v2932 = vld [vmem:[%s2879 + $0xd0] sm:$0xf]
    %v2933 = vld [vmem:[%s2879 + $0xd4] sm:$0xf]
    %v2934 = vld [vmem:[%s2879 + $0xd8] sm:$0xf]
    %v2935 = vld [vmem:[%s2879 + $0xdc] sm:$0xf]
    %v2936 = vld [vmem:[%s2879 + $0xe0] sm:$0xf]
    %v2937 = vld [vmem:[%s2879 + $0xe4] sm:$0xf]
    %v2938 = vld [vmem:[%s2879 + $0xe8] sm:$0xf]
    %v2939 = vld [vmem:[%s2879 + $0xec] sm:$0xf]
    %v2940 = vld [vmem:[%s2879 + $0xf0] sm:$0xf]
    %v2941 = vld [vmem:[%s2879 + $0xf4] sm:$0xf]
    %v2942 = vld [vmem:[%s2879 + $0xf8] sm:$0xf]
    %v2943 = vld [vmem:[%s2879 + $0xfc] sm:$0xf]
    %v2944 = vld [vmem:[%s2879 + $0x100] sm:$0xf]
    %v2945 = vld [vmem:[%s2879 + $0x104] sm:$0xf]
    %v2946 = vld [vmem:[%s2879 + $0x108] sm:$0xf]
    %v2947 = vld [vmem:[%s2879 + $0x10c] sm:$0xf]
    %v2948 = vld [vmem:[%s2879 + $0x110] sm:$0xf]
    %v2949 = vld [vmem:[%s2879 + $0x114] sm:$0xf]
    %v2950 = vld [vmem:[%s2879 + $0x118] sm:$0xf]
    %v2951 = vld [vmem:[%s2879 + $0x11c] sm:$0xf]
    %v3024 = vunpack.c.l.b16 %v2880
    %v3025 = vunpack.c.l.b16 %v2881
    %v3026 = vunpack.c.l.b16 %v2882
    %v3027 = vunpack.c.l.b16 %v2883
    %v3028 = vunpack.c.l.b16 %v2884
    %v3029 = vunpack.c.l.b16 %v2885
    %v3030 = vunpack.c.l.b16 %v2886
    %v3031 = vunpack.c.l.b16 %v2887
    %v3032 = vunpack.c.l.b16 %v2888
    %v3033 = vunpack.c.l.b16 %v2889
    %v3034 = vunpack.c.l.b16 %v2890
    %v3035 = vunpack.c.l.b16 %v2891
    %v3036 = vunpack.c.l.b16 %v2892
    %v3037 = vunpack.c.l.b16 %v2893
    %v3038 = vunpack.c.l.b16 %v2894
    %v3039 = vunpack.c.l.b16 %v2895
    %v3040 = vunpack.c.l.b16 %v2896
    %v3041 = vunpack.c.l.b16 %v2897
    %v3042 = vunpack.c.l.b16 %v2898
    %v3043 = vunpack.c.l.b16 %v2899
    %v3044 = vunpack.c.l.b16 %v2900
    %v3045 = vunpack.c.l.b16 %v2901
    %v3046 = vunpack.c.l.b16 %v2902
    %v3047 = vunpack.c.l.b16 %v2903
    %v3048 = vunpack.c.l.b16 %v2904
    %v3049 = vunpack.c.l.b16 %v2905
    %v3050 = vunpack.c.l.b16 %v2906
    %v3051 = vunpack.c.l.b16 %v2907
    %v3052 = vunpack.c.l.b16 %v2908
    %v3053 = vunpack.c.l.b16 %v2909
    %v3054 = vunpack.c.l.b16 %v2910
    %v3055 = vunpack.c.l.b16 %v2911
    %v3056 = vunpack.c.l.b16 %v2912
    %v3057 = vunpack.c.l.b16 %v2913
    %v3058 = vunpack.c.l.b16 %v2914
    %v3059 = vunpack.c.l.b16 %v2915
    %v3060 = vunpack.c.l.b16 %v2916
    %v3061 = vunpack.c.l.b16 %v2917
    %v3062 = vunpack.c.l.b16 %v2918
    %v3063 = vunpack.c.l.b16 %v2919
    %v3064 = vunpack.c.l.b16 %v2920
    %v3065 = vunpack.c.l.b16 %v2921
    %v3066 = vunpack.c.l.b16 %v2922
    %v3067 = vunpack.c.l.b16 %v2923
    %v3068 = vunpack.c.l.b16 %v2924
    %v3069 = vunpack.c.l.b16 %v2925
    %v3070 = vunpack.c.l.b16 %v2926
    %v3071 = vunpack.c.l.b16 %v2927
    %v3072 = vunpack.c.l.b16 %v2928
    %v3073 = vunpack.c.l.b16 %v2929
    %v3074 = vunpack.c.l.b16 %v2930
    %v3075 = vunpack.c.l.b16 %v2931
    %v3076 = vunpack.c.l.b16 %v2932
    %v3077 = vunpack.c.l.b16 %v2933
    %v3078 = vunpack.c.l.b16 %v2934
    %v3079 = vunpack.c.l.b16 %v2935
    %v3080 = vunpack.c.l.b16 %v2936
    %v3081 = vunpack.c.l.b16 %v2937
    %v3082 = vunpack.c.l.b16 %v2938
    %v3083 = vunpack.c.l.b16 %v2939
    %v3084 = vunpack.c.l.b16 %v2940
    %v3085 = vunpack.c.l.b16 %v2941
    %v3086 = vunpack.c.l.b16 %v2942
    %v3087 = vunpack.c.l.b16 %v2943
    %v3088 = vunpack.c.l.b16 %v2944
    %v3089 = vunpack.c.l.b16 %v2945
    %v3090 = vunpack.c.l.b16 %v2946
    %v3091 = vunpack.c.l.b16 %v2947
    %v3092 = vunpack.c.l.b16 %v2948
    %v3093 = vunpack.c.l.b16 %v2949
    %v3094 = vunpack.c.l.b16 %v2950
    %v3095 = vunpack.c.l.b16 %v2951
    %v3096 = vpack.c.b16 %v3025, %v3024
    %v3097 = vpack.c.b16 %v3027, %v3026
    %v3098 = vpack.c.b16 %v3029, %v3028
    %v3099 = vpack.c.b16 %v3031, %v3030
    %v3100 = vpack.c.b16 %v3033, %v3032
    %v3101 = vpack.c.b16 %v3035, %v3034
    %v3102 = vpack.c.b16 %v3037, %v3036
    %v3103 = vpack.c.b16 %v3039, %v3038
    %v3104 = vpack.c.b16 %v3041, %v3040
    %v3105 = vpack.c.b16 %v3043, %v3042
    %v3106 = vpack.c.b16 %v3045, %v3044
    %v3107 = vpack.c.b16 %v3047, %v3046
    %v3108 = vpack.c.b16 %v3049, %v3048
    %v3109 = vpack.c.b16 %v3051, %v3050
    %v3110 = vpack.c.b16 %v3053, %v3052
    %v3111 = vpack.c.b16 %v3055, %v3054
    %v3112 = vpack.c.b16 %v3057, %v3056
    %v3113 = vpack.c.b16 %v3059, %v3058
    %v3114 = vpack.c.b16 %v3061, %v3060
    %v3115 = vpack.c.b16 %v3063, %v3062
    %v3116 = vpack.c.b16 %v3065, %v3064
    %v3117 = vpack.c.b16 %v3067, %v3066
    %v3118 = vpack.c.b16 %v3069, %v3068
    %v3119 = vpack.c.b16 %v3071, %v3070
    %v3120 = vpack.c.b16 %v3073, %v3072
    %v3121 = vpack.c.b16 %v3075, %v3074
    %v3122 = vpack.c.b16 %v3077, %v3076
    %v3123 = vpack.c.b16 %v3079, %v3078
    %v3124 = vpack.c.b16 %v3081, %v3080
    %v3125 = vpack.c.b16 %v3083, %v3082
    %v3126 = vpack.c.b16 %v3085, %v3084
    %v3127 = vpack.c.b16 %v3087, %v3086
    %v3128 = vpack.c.b16 %v3089, %v3088
    %v3129 = vpack.c.b16 %v3091, %v3090
    %v3130 = vpack.c.b16 %v3093, %v3092
    %v3131 = vpack.c.b16 %v3095, %v3094
    %v3169 = vsel %vm1814, %v2878, 0
    %3171 = vmatprep.subr.bf16.mxu0 0
    %3172 = vmatpush1.bf16.msra.mxu0 %v3096
    %3173 = vmatprep.subr.bf16.mxu0 0
    %3174 = vmatpush1.bf16.msra.mxu0 %v3097
    %3175 = vmatprep.subr.bf16.mxu0 0
    %3176 = vmatpush1.bf16.msra.mxu0 %v3098
    %3177 = vmatprep.subr.bf16.mxu0 0
    %3178 = vmatpush1.bf16.msra.mxu0 %v3099
    %3179 = vmatprep.subr.bf16.mxu0 0
    %3180 = vmatpush1.bf16.msra.mxu0 %v3100
    %3181 = vmatprep.subr.bf16.mxu0 0
    %3182 = vmatpush1.bf16.msra.mxu0 %v3101
    %3183 = vmatprep.subr.bf16.mxu0 0
    %3184 = vmatpush1.bf16.msra.mxu0 %v3102
    %3185 = vmatprep.subr.bf16.mxu0 0
    %3186 = vmatpush1.bf16.msra.mxu0 %v3103
    %3187 = vmatprep.subr.bf16.mxu0 0
    %3188 = vmatpush1.bf16.msra.mxu0 %v3104
    %3189 = vmatprep.subr.bf16.mxu0 0
    %3190 = vmatpush1.bf16.msra.mxu0 %v3105
    %3191 = vmatprep.subr.bf16.mxu0 0
    %3192 = vmatpush1.bf16.msra.mxu0 %v3106
    %3193 = vmatprep.subr.bf16.mxu0 0
    %3194 = vmatpush1.bf16.msra.mxu0 %v3107
    %3195 = vmatprep.subr.bf16.mxu0 0
    %3196 = vmatpush1.bf16.msra.mxu0 %v3108
    %3197 = vmatprep.subr.bf16.mxu0 0
    %3198 = vmatpush1.bf16.msra.mxu0 %v3109
    %3199 = vmatprep.subr.bf16.mxu0 0
    %3200 = vmatpush1.bf16.msra.mxu0 %v3110
    %3201 = vmatprep.subr.bf16.mxu0 0
    %3202 = vmatpush1.bf16.msra.mxu0 %v3111
    %3203 = vmatprep.mubr.bf16.mxu0 %v2875
    %3204 = vmatmul.mubr.bf16.gmra.mrb[0].mxu0 %v2874
    %v3205 = vpop.f32.mrb[0].mxu0
    %v3206 = vadd.f32 0.0, %v3205
    %v3207 = vpop.f32.mrb[0].mxu0
    %v3208 = vpop.f32.mrb[0].mxu0
    %v3209 = vpop.f32.mrb[0].mxu0
    %3210 = vdwg.mxu0
    %3211 = vmatprep.subr.bf16.mxu0 0
    %3212 = vmatpush1.bf16.msra.mxu0 %v3112
    %3213 = vmatprep.subr.bf16.mxu0 0
    %3214 = vmatpush1.bf16.msra.mxu0 %v3113
    %3215 = vmatprep.subr.bf16.mxu0 0
    %3216 = vmatpush1.bf16.msra.mxu0 %v3114
    %3217 = vmatprep.subr.bf16.mxu0 0
    %3218 = vmatpush1.bf16.msra.mxu0 %v3115
    %3219 = vmatprep.subr.bf16.mxu0 0
    %3220 = vmatpush1.bf16.msra.mxu0 %v3116
    %3221 = vmatprep.subr.bf16.mxu0 0
    %3222 = vmatpush1.bf16.msra.mxu0 %v3117
    %3223 = vmatprep.subr.bf16.mxu0 0
    %3224 = vmatpush1.bf16.msra.mxu0 %v3118
    %3225 = vmatprep.subr.bf16.mxu0 0
    %3226 = vmatpush1.bf16.msra.mxu0 %v3119
    %3227 = vmatprep.subr.bf16.mxu0 0
    %3228 = vmatpush1.bf16.msra.mxu0 %v3120
    %3229 = vmatprep.subr.bf16.mxu0 0
    %3230 = vmatpush1.bf16.msra.mxu0 %v3121
    %3231 = vmatprep.subr.bf16.mxu0 0
    %3232 = vmatpush1.bf16.msra.mxu0 %v3122
    %3233 = vmatprep.subr.bf16.mxu0 0
    %3234 = vmatpush1.bf16.msra.mxu0 %v3123
    %3235 = vmatprep.subr.bf16.mxu0 0
    %3236 = vmatpush1.bf16.msra.mxu0 %v3124
    %3237 = vmatprep.subr.bf16.mxu0 0
    %3238 = vmatpush1.bf16.msra.mxu0 %v3125
    %3239 = vmatprep.subr.bf16.mxu0 0
    %3240 = vmatpush1.bf16.msra.mxu0 %v3126
    %3241 = vmatprep.subr.bf16.mxu0 0
    %3242 = vmatpush1.bf16.msra.mxu0 %v3127
    %3243 = vmatprep.mubr.bf16.mxu0 %v2877
    %3244 = vmatmul.mubr.bf16.gmra.mrb[0].mxu0 %v2876
    %v3245 = vpop.f32.mrb[0].mxu0
    %v3246 = vadd.f32 %v3206, %v3245
    %v3247 = vpop.f32.mrb[0].mxu0
    %v3248 = vpop.f32.mrb[0].mxu0
    %v3249 = vpop.f32.mrb[0].mxu0
    %3250 = vdwg.mxu0
    %3251 = vmatprep.subr.bf16.mxu0 0
    %3252 = vmatpush1.bf16.msra.mxu0 %v3128
    %3253 = vmatprep.subr.bf16.mxu0 0
    %3254 = vmatpush1.bf16.msra.mxu0 %v3129
    %3255 = vmatprep.subr.bf16.mxu0 0
    %3256 = vmatpush1.bf16.msra.mxu0 %v3130
    %3257 = vmatprep.subr.bf16.mxu0 0
    %3258 = vmatpush1.bf16.msra.mxu0 %v3131
    %3259 = vmatprep.subr.bf16.mxu0 0
    %3260 = vmatpush1.bf16.msra.mxu0 0
    %3261 = vmatprep.subr.bf16.mxu0 0
    %3262 = vmatpush1.bf16.msra.mxu0 0
    %3263 = vmatprep.subr.bf16.mxu0 0
    %3264 = vmatpush1.bf16.msra.mxu0 0
    %3265 = vmatprep.subr.bf16.mxu0 0
    %3266 = vmatpush1.bf16.msra.mxu0 0
    %3267 = vmatprep.subr.bf16.mxu0 0
    %3268 = vmatpush1.bf16.msra.mxu0 0
    %3269 = vmatprep.subr.bf16.mxu0 0
    %3270 = vmatpush1.bf16.msra.mxu0 0
    %3271 = vmatprep.subr.bf16.mxu0 0
    %3272 = vmatpush1.bf16.msra.mxu0 0
    %3273 = vmatprep.subr.bf16.mxu0 0
    %3274 = vmatpush1.bf16.msra.mxu0 0
    %3275 = vmatprep.subr.bf16.mxu0 0
    %3276 = vmatpush1.bf16.msra.mxu0 0
    %3277 = vmatprep.subr.bf16.mxu0 0
    %3278 = vmatpush1.bf16.msra.mxu0 0
    %3279 = vmatprep.subr.bf16.mxu0 0
    %3280 = vmatpush1.bf16.msra.mxu0 0
    %3281 = vmatprep.subr.bf16.mxu0 0
    %3282 = vmatpush1.bf16.msra.mxu0 0
    %3283 = vmatprep.mubr.bf16.mxu0 0
    %3284 = vmatmul.mubr.bf16.gmra.mrb[0].mxu0 %v3169
    %v3285 = vpop.f32.mrb[0].mxu0
    %v3286 = vadd.f32 %v3246, %v3285
    %v3287 = vpop.f32.mrb[0].mxu0
    %v3288 = vpop.f32.mrb[0].mxu0
    %v3289 = vpop.f32.mrb[0].mxu0
    %3290 = vdwg.mxu0
    %v3291 = vadd.f32 %v2842, %v3286
    %v3294 = vcombine.high %v143, %v143
    %v3296 = vunpack.c.l.s4 1983009808
    %v3297 = vunpack.c.0.s8 %v3296
    %v3298 = vlaneseq
    %v3299 = vshrl.u32 %v3298, 7
    %v3300 = vsub.s32 %v3297, %v3299
    %v3301 = vrot.slane %v143, %v3300
    %v3303 = vunpack.c.l.s4 1983009808
    %v3304 = vunpack.c.0.s8 %v3303
    %v3305 = vlaneseq
    %v3306 = vshrl.u32 %v3305, 7
    %v3307 = vsub.s32 %v3304, %v3306
    %v3308 = vrot.slane %v3294, %v3307
    %v3309 = vcombine.high %v3301, %v3301
    %v3310 = vcombine.high %v3308, %v3308
    %v3312 = vunpack.c.l.s4 1983009808
    %v3313 = vunpack.c.0.s8 %v3312
    %v3314 = vlaneseq
    %v3315 = vshrl.u32 %v3314, 7
    %v3316 = vsub.s32 %v3313, %v3315
    %v3317 = vrot.slane %v144, %v3316
    %v3323 = vpack.c.bf16 %v3301, %v3301
    %v3324 = vpack.c.bf16 %v3309, %v3309
    %v3325 = vpack.c.bf16 %v3308, %v3308
    %v3326 = vpack.c.bf16 %v3310, %v3310
    %v3327 = vpack.c.bf16 %v3317, %v3317
    %s3328 = scalar_lea.vmem %s9, 1152
    %v3329 = vld [vmem:[%s3328] sm:$0xf]
    %v3330 = vld [vmem:[%s3328 + $0x4] sm:$0xf]
    %v3331 = vld [vmem:[%s3328 + $0x8] sm:$0xf]
    %v3332 = vld [vmem:[%s3328 + $0xc] sm:$0xf]
    %v3333 = vld [vmem:[%s3328 + $0x10] sm:$0xf]
    %v3334 = vld [vmem:[%s3328 + $0x14] sm:$0xf]
    %v3335 = vld [vmem:[%s3328 + $0x18] sm:$0xf]
    %v3336 = vld [vmem:[%s3328 + $0x1c] sm:$0xf]
    %v3337 = vld [vmem:[%s3328 + $0x20] sm:$0xf]
    %v3338 = vld [vmem:[%s3328 + $0x24] sm:$0xf]
    %v3339 = vld [vmem:[%s3328 + $0x28] sm:$0xf]
    %v3340 = vld [vmem:[%s3328 + $0x2c] sm:$0xf]
    %v3341 = vld [vmem:[%s3328 + $0x30] sm:$0xf]
    %v3342 = vld [vmem:[%s3328 + $0x34] sm:$0xf]
    %v3343 = vld [vmem:[%s3328 + $0x38] sm:$0xf]
    %v3344 = vld [vmem:[%s3328 + $0x3c] sm:$0xf]
    %v3345 = vld [vmem:[%s3328 + $0x40] sm:$0xf]
    %v3346 = vld [vmem:[%s3328 + $0x44] sm:$0xf]
    %v3347 = vld [vmem:[%s3328 + $0x48] sm:$0xf]
    %v3348 = vld [vmem:[%s3328 + $0x4c] sm:$0xf]
    %v3349 = vld [vmem:[%s3328 + $0x50] sm:$0xf]
    %v3350 = vld [vmem:[%s3328 + $0x54] sm:$0xf]
    %v3351 = vld [vmem:[%s3328 + $0x58] sm:$0xf]
    %v3352 = vld [vmem:[%s3328 + $0x5c] sm:$0xf]
    %v3353 = vld [vmem:[%s3328 + $0x60] sm:$0xf]
    %v3354 = vld [vmem:[%s3328 + $0x64] sm:$0xf]
    %v3355 = vld [vmem:[%s3328 + $0x68] sm:$0xf]
    %v3356 = vld [vmem:[%s3328 + $0x6c] sm:$0xf]
    %v3357 = vld [vmem:[%s3328 + $0x70] sm:$0xf]
    %v3358 = vld [vmem:[%s3328 + $0x74] sm:$0xf]
    %v3359 = vld [vmem:[%s3328 + $0x78] sm:$0xf]
    %v3360 = vld [vmem:[%s3328 + $0x7c] sm:$0xf]
    %v3361 = vld [vmem:[%s3328 + $0x80] sm:$0xf]
    %v3362 = vld [vmem:[%s3328 + $0x84] sm:$0xf]
    %v3363 = vld [vmem:[%s3328 + $0x88] sm:$0xf]
    %v3364 = vld [vmem:[%s3328 + $0x8c] sm:$0xf]
    %v3365 = vld [vmem:[%s3328 + $0x90] sm:$0xf]
    %v3366 = vld [vmem:[%s3328 + $0x94] sm:$0xf]
    %v3367 = vld [vmem:[%s3328 + $0x98] sm:$0xf]
    %v3368 = vld [vmem:[%s3328 + $0x9c] sm:$0xf]
    %v3369 = vld [vmem:[%s3328 + $0xa0] sm:$0xf]
    %v3370 = vld [vmem:[%s3328 + $0xa4] sm:$0xf]
    %v3371 = vld [vmem:[%s3328 + $0xa8] sm:$0xf]
    %v3372 = vld [vmem:[%s3328 + $0xac] sm:$0xf]
    %v3373 = vld [vmem:[%s3328 + $0xb0] sm:$0xf]
    %v3374 = vld [vmem:[%s3328 + $0xb4] sm:$0xf]
    %v3375 = vld [vmem:[%s3328 + $0xb8] sm:$0xf]
    %v3376 = vld [vmem:[%s3328 + $0xbc] sm:$0xf]
    %v3377 = vld [vmem:[%s3328 + $0xc0] sm:$0xf]
    %v3378 = vld [vmem:[%s3328 + $0xc4] sm:$0xf]
    %v3379 = vld [vmem:[%s3328 + $0xc8] sm:$0xf]
    %v3380 = vld [vmem:[%s3328 + $0xcc] sm:$0xf]
    %v3381 = vld [vmem:[%s3328 + $0xd0] sm:$0xf]
    %v3382 = vld [vmem:[%s3328 + $0xd4] sm:$0xf]
    %v3383 = vld [vmem:[%s3328 + $0xd8] sm:$0xf]
    %v3384 = vld [vmem:[%s3328 + $0xdc] sm:$0xf]
    %v3385 = vld [vmem:[%s3328 + $0xe0] sm:$0xf]
    %v3386 = vld [vmem:[%s3328 + $0xe4] sm:$0xf]
    %v3387 = vld [vmem:[%s3328 + $0xe8] sm:$0xf]
    %v3388 = vld [vmem:[%s3328 + $0xec] sm:$0xf]
    %v3389 = vld [vmem:[%s3328 + $0xf0] sm:$0xf]
    %v3390 = vld [vmem:[%s3328 + $0xf4] sm:$0xf]
    %v3391 = vld [vmem:[%s3328 + $0xf8] sm:$0xf]
    %v3392 = vld [vmem:[%s3328 + $0xfc] sm:$0xf]
    %v3393 = vld [vmem:[%s3328 + $0x100] sm:$0xf]
    %v3394 = vld [vmem:[%s3328 + $0x104] sm:$0xf]
    %v3395 = vld [vmem:[%s3328 + $0x108] sm:$0xf]
    %v3396 = vld [vmem:[%s3328 + $0x10c] sm:$0xf]
    %v3397 = vld [vmem:[%s3328 + $0x110] sm:$0xf]
    %v3398 = vld [vmem:[%s3328 + $0x114] sm:$0xf]
    %v3399 = vld [vmem:[%s3328 + $0x118] sm:$0xf]
    %v3400 = vld [vmem:[%s3328 + $0x11c] sm:$0xf]
    %v3473 = vunpack.c.l.b16 %v3329
    %v3474 = vunpack.c.l.b16 %v3330
    %v3475 = vunpack.c.l.b16 %v3331
    %v3476 = vunpack.c.l.b16 %v3332
    %v3477 = vunpack.c.l.b16 %v3333
    %v3478 = vunpack.c.l.b16 %v3334
    %v3479 = vunpack.c.l.b16 %v3335
    %v3480 = vunpack.c.l.b16 %v3336
    %v3481 = vunpack.c.l.b16 %v3337
    %v3482 = vunpack.c.l.b16 %v3338
    %v3483 = vunpack.c.l.b16 %v3339
    %v3484 = vunpack.c.l.b16 %v3340
    %v3485 = vunpack.c.l.b16 %v3341
    %v3486 = vunpack.c.l.b16 %v3342
    %v3487 = vunpack.c.l.b16 %v3343
    %v3488 = vunpack.c.l.b16 %v3344
    %v3489 = vunpack.c.l.b16 %v3345
    %v3490 = vunpack.c.l.b16 %v3346
    %v3491 = vunpack.c.l.b16 %v3347
    %v3492 = vunpack.c.l.b16 %v3348
    %v3493 = vunpack.c.l.b16 %v3349
    %v3494 = vunpack.c.l.b16 %v3350
    %v3495 = vunpack.c.l.b16 %v3351
    %v3496 = vunpack.c.l.b16 %v3352
    %v3497 = vunpack.c.l.b16 %v3353
    %v3498 = vunpack.c.l.b16 %v3354
    %v3499 = vunpack.c.l.b16 %v3355
    %v3500 = vunpack.c.l.b16 %v3356
    %v3501 = vunpack.c.l.b16 %v3357
    %v3502 = vunpack.c.l.b16 %v3358
    %v3503 = vunpack.c.l.b16 %v3359
    %v3504 = vunpack.c.l.b16 %v3360
    %v3505 = vunpack.c.l.b16 %v3361
    %v3506 = vunpack.c.l.b16 %v3362
    %v3507 = vunpack.c.l.b16 %v3363
    %v3508 = vunpack.c.l.b16 %v3364
    %v3509 = vunpack.c.l.b16 %v3365
    %v3510 = vunpack.c.l.b16 %v3366
    %v3511 = vunpack.c.l.b16 %v3367
    %v3512 = vunpack.c.l.b16 %v3368
    %v3513 = vunpack.c.l.b16 %v3369
    %v3514 = vunpack.c.l.b16 %v3370
    %v3515 = vunpack.c.l.b16 %v3371
    %v3516 = vunpack.c.l.b16 %v3372
    %v3517 = vunpack.c.l.b16 %v3373
    %v3518 = vunpack.c.l.b16 %v3374
    %v3519 = vunpack.c.l.b16 %v3375
    %v3520 = vunpack.c.l.b16 %v3376
    %v3521 = vunpack.c.l.b16 %v3377
    %v3522 = vunpack.c.l.b16 %v3378
    %v3523 = vunpack.c.l.b16 %v3379
    %v3524 = vunpack.c.l.b16 %v3380
    %v3525 = vunpack.c.l.b16 %v3381
    %v3526 = vunpack.c.l.b16 %v3382
    %v3527 = vunpack.c.l.b16 %v3383
    %v3528 = vunpack.c.l.b16 %v3384
    %v3529 = vunpack.c.l.b16 %v3385
    %v3530 = vunpack.c.l.b16 %v3386
    %v3531 = vunpack.c.l.b16 %v3387
    %v3532 = vunpack.c.l.b16 %v3388
    %v3533 = vunpack.c.l.b16 %v3389
    %v3534 = vunpack.c.l.b16 %v3390
    %v3535 = vunpack.c.l.b16 %v3391
    %v3536 = vunpack.c.l.b16 %v3392
    %v3537 = vunpack.c.l.b16 %v3393
    %v3538 = vunpack.c.l.b16 %v3394
    %v3539 = vunpack.c.l.b16 %v3395
    %v3540 = vunpack.c.l.b16 %v3396
    %v3541 = vunpack.c.l.b16 %v3397
    %v3542 = vunpack.c.l.b16 %v3398
    %v3543 = vunpack.c.l.b16 %v3399
    %v3544 = vunpack.c.l.b16 %v3400
    %v3545 = vpack.c.b16 %v3474, %v3473
    %v3546 = vpack.c.b16 %v3476, %v3475
    %v3547 = vpack.c.b16 %v3478, %v3477
    %v3548 = vpack.c.b16 %v3480, %v3479
    %v3549 = vpack.c.b16 %v3482, %v3481
    %v3550 = vpack.c.b16 %v3484, %v3483
    %v3551 = vpack.c.b16 %v3486, %v3485
    %v3552 = vpack.c.b16 %v3488, %v3487
    %v3553 = vpack.c.b16 %v3490, %v3489
    %v3554 = vpack.c.b16 %v3492, %v3491
    %v3555 = vpack.c.b16 %v3494, %v3493
    %v3556 = vpack.c.b16 %v3496, %v3495
    %v3557 = vpack.c.b16 %v3498, %v3497
    %v3558 = vpack.c.b16 %v3500, %v3499
    %v3559 = vpack.c.b16 %v3502, %v3501
    %v3560 = vpack.c.b16 %v3504, %v3503
    %v3561 = vpack.c.b16 %v3506, %v3505
    %v3562 = vpack.c.b16 %v3508, %v3507
    %v3563 = vpack.c.b16 %v3510, %v3509
    %v3564 = vpack.c.b16 %v3512, %v3511
    %v3565 = vpack.c.b16 %v3514, %v3513
    %v3566 = vpack.c.b16 %v3516, %v3515
    %v3567 = vpack.c.b16 %v3518, %v3517
    %v3568 = vpack.c.b16 %v3520, %v3519
    %v3569 = vpack.c.b16 %v3522, %v3521
    %v3570 = vpack.c.b16 %v3524, %v3523
    %v3571 = vpack.c.b16 %v3526, %v3525
    %v3572 = vpack.c.b16 %v3528, %v3527
    %v3573 = vpack.c.b16 %v3530, %v3529
    %v3574 = vpack.c.b16 %v3532, %v3531
    %v3575 = vpack.c.b16 %v3534, %v3533
    %v3576 = vpack.c.b16 %v3536, %v3535
    %v3577 = vpack.c.b16 %v3538, %v3537
    %v3578 = vpack.c.b16 %v3540, %v3539
    %v3579 = vpack.c.b16 %v3542, %v3541
    %v3580 = vpack.c.b16 %v3544, %v3543
    %v3618 = vsel %vm1814, %v3327, 0
    %3620 = vmatprep.subr.bf16.mxu0 0
    %3621 = vmatpush1.bf16.msra.mxu0 %v3545
    %3622 = vmatprep.subr.bf16.mxu0 0
    %3623 = vmatpush1.bf16.msra.mxu0 %v3546
    %3624 = vmatprep.subr.bf16.mxu0 0
    %3625 = vmatpush1.bf16.msra.mxu0 %v3547
    %3626 = vmatprep.subr.bf16.mxu0 0
    %3627 = vmatpush1.bf16.msra.mxu0 %v3548
    %3628 = vmatprep.subr.bf16.mxu0 0
    %3629 = vmatpush1.bf16.msra.mxu0 %v3549
    %3630 = vmatprep.subr.bf16.mxu0 0
    %3631 = vmatpush1.bf16.msra.mxu0 %v3550
    %3632 = vmatprep.subr.bf16.mxu0 0
    %3633 = vmatpush1.bf16.msra.mxu0 %v3551
    %3634 = vmatprep.subr.bf16.mxu0 0
    %3635 = vmatpush1.bf16.msra.mxu0 %v3552
    %3636 = vmatprep.subr.bf16.mxu0 0
    %3637 = vmatpush1.bf16.msra.mxu0 %v3553
    %3638 = vmatprep.subr.bf16.mxu0 0
    %3639 = vmatpush1.bf16.msra.mxu0 %v3554
    %3640 = vmatprep.subr.bf16.mxu0 0
    %3641 = vmatpush1.bf16.msra.mxu0 %v3555
    %3642 = vmatprep.subr.bf16.mxu0 0
    %3643 = vmatpush1.bf16.msra.mxu0 %v3556
    %3644 = vmatprep.subr.bf16.mxu0 0
    %3645 = vmatpush1.bf16.msra.mxu0 %v3557
    %3646 = vmatprep.subr.bf16.mxu0 0
    %3647 = vmatpush1.bf16.msra.mxu0 %v3558
    %3648 = vmatprep.subr.bf16.mxu0 0
    %3649 = vmatpush1.bf16.msra.mxu0 %v3559
    %3650 = vmatprep.subr.bf16.mxu0 0
    %3651 = vmatpush1.bf16.msra.mxu0 %v3560
    %3652 = vmatprep.mubr.bf16.mxu0 %v3324
    %3653 = vmatmul.mubr.bf16.gmra.mrb[0].mxu0 %v3323
    %v3654 = vpop.f32.mrb[0].mxu0
    %v3655 = vadd.f32 0.0, %v3654
    %v3656 = vpop.f32.mrb[0].mxu0
    %v3657 = vpop.f32.mrb[0].mxu0
    %v3658 = vpop.f32.mrb[0].mxu0
    %3659 = vdwg.mxu0
    %3660 = vmatprep.subr.bf16.mxu0 0
    %3661 = vmatpush1.bf16.msra.mxu0 %v3561
    %3662 = vmatprep.subr.bf16.mxu0 0
    %3663 = vmatpush1.bf16.msra.mxu0 %v3562
    %3664 = vmatprep.subr.bf16.mxu0 0
    %3665 = vmatpush1.bf16.msra.mxu0 %v3563
    %3666 = vmatprep.subr.bf16.mxu0 0
    %3667 = vmatpush1.bf16.msra.mxu0 %v3564
    %3668 = vmatprep.subr.bf16.mxu0 0
    %3669 = vmatpush1.bf16.msra.mxu0 %v3565
    %3670 = vmatprep.subr.bf16.mxu0 0
    %3671 = vmatpush1.bf16.msra.mxu0 %v3566
    %3672 = vmatprep.subr.bf16.mxu0 0
    %3673 = vmatpush1.bf16.msra.mxu0 %v3567
    %3674 = vmatprep.subr.bf16.mxu0 0
    %3675 = vmatpush1.bf16.msra.mxu0 %v3568
    %3676 = vmatprep.subr.bf16.mxu0 0
    %3677 = vmatpush1.bf16.msra.mxu0 %v3569
    %3678 = vmatprep.subr.bf16.mxu0 0
    %3679 = vmatpush1.bf16.msra.mxu0 %v3570
    %3680 = vmatprep.subr.bf16.mxu0 0
    %3681 = vmatpush1.bf16.msra.mxu0 %v3571
    %3682 = vmatprep.subr.bf16.mxu0 0
    %3683 = vmatpush1.bf16.msra.mxu0 %v3572
    %3684 = vmatprep.subr.bf16.mxu0 0
    %3685 = vmatpush1.bf16.msra.mxu0 %v3573
    %3686 = vmatprep.subr.bf16.mxu0 0
    %3687 = vmatpush1.bf16.msra.mxu0 %v3574
    %3688 = vmatprep.subr.bf16.mxu0 0
    %3689 = vmatpush1.bf16.msra.mxu0 %v3575
    %3690 = vmatprep.subr.bf16.mxu0 0
    %3691 = vmatpush1.bf16.msra.mxu0 %v3576
    %3692 = vmatprep.mubr.bf16.mxu0 %v3326
    %3693 = vmatmul.mubr.bf16.gmra.mrb[0].mxu0 %v3325
    %v3694 = vpop.f32.mrb[0].mxu0
    %v3695 = vadd.f32 %v3655, %v3694
    %v3696 = vpop.f32.mrb[0].mxu0
    %v3697 = vpop.f32.mrb[0].mxu0
    %v3698 = vpop.f32.mrb[0].mxu0
    %3699 = vdwg.mxu0
    %3700 = vmatprep.subr.bf16.mxu0 0
    %3701 = vmatpush1.bf16.msra.mxu0 %v3577
    %3702 = vmatprep.subr.bf16.mxu0 0
    %3703 = vmatpush1.bf16.msra.mxu0 %v3578
    %3704 = vmatprep.subr.bf16.mxu0 0
    %3705 = vmatpush1.bf16.msra.mxu0 %v3579
    %3706 = vmatprep.subr.bf16.mxu0 0
    %3707 = vmatpush1.bf16.msra.mxu0 %v3580
    %3708 = vmatprep.subr.bf16.mxu0 0
    %3709 = vmatpush1.bf16.msra.mxu0 0
    %3710 = vmatprep.subr.bf16.mxu0 0
    %3711 = vmatpush1.bf16.msra.mxu0 0
    %3712 = vmatprep.subr.bf16.mxu0 0
    %3713 = vmatpush1.bf16.msra.mxu0 0
    %3714 = vmatprep.subr.bf16.mxu0 0
    %3715 = vmatpush1.bf16.msra.mxu0 0
    %3716 = vmatprep.subr.bf16.mxu0 0
    %3717 = vmatpush1.bf16.msra.mxu0 0
    %3718 = vmatprep.subr.bf16.mxu0 0
    %3719 = vmatpush1.bf16.msra.mxu0 0
    %3720 = vmatprep.subr.bf16.mxu0 0
    %3721 = vmatpush1.bf16.msra.mxu0 0
    %3722 = vmatprep.subr.bf16.mxu0 0
    %3723 = vmatpush1.bf16.msra.mxu0 0
    %3724 = vmatprep.subr.bf16.mxu0 0
    %3725 = vmatpush1.bf16.msra.mxu0 0
    %3726 = vmatprep.subr.bf16.mxu0 0
    %3727 = vmatpush1.bf16.msra.mxu0 0
    %3728 = vmatprep.subr.bf16.mxu0 0
    %3729 = vmatpush1.bf16.msra.mxu0 0
    %3730 = vmatprep.subr.bf16.mxu0 0
    %3731 = vmatpush1.bf16.msra.mxu0 0
    %3732 = vmatprep.mubr.bf16.mxu0 0
    %3733 = vmatmul.mubr.bf16.gmra.mrb[0].mxu0 %v3618
    %v3734 = vpop.f32.mrb[0].mxu0
    %v3735 = vadd.f32 %v3695, %v3734
    %v3736 = vpop.f32.mrb[0].mxu0
    %v3737 = vpop.f32.mrb[0].mxu0
    %v3738 = vpop.f32.mrb[0].mxu0
    %3739 = vdwg.mxu0
    %v3740 = vadd.f32 %v3291, %v3735
    %v3743 = vcombine.high %v146, %v146
    %v3745 = vunpack.c.l.s4 1983009808
    %v3746 = vunpack.c.0.s8 %v3745
    %v3747 = vlaneseq
    %v3748 = vshrl.u32 %v3747, 7
    %v3749 = vsub.s32 %v3746, %v3748
    %v3750 = vrot.slane %v146, %v3749
    %v3752 = vunpack.c.l.s4 1983009808
    %v3753 = vunpack.c.0.s8 %v3752
    %v3754 = vlaneseq
    %v3755 = vshrl.u32 %v3754, 7
    %v3756 = vsub.s32 %v3753, %v3755
    %v3757 = vrot.slane %v3743, %v3756
    %v3758 = vcombine.high %v3750, %v3750
    %v3759 = vcombine.high %v3757, %v3757
    %v3761 = vunpack.c.l.s4 1983009808
    %v3762 = vunpack.c.0.s8 %v3761
    %v3763 = vlaneseq
    %v3764 = vshrl.u32 %v3763, 7
    %v3765 = vsub.s32 %v3762, %v3764
    %v3766 = vrot.slane %v147, %v3765
    %v3772 = vpack.c.bf16 %v3750, %v3750
    %v3773 = vpack.c.bf16 %v3758, %v3758
    %v3774 = vpack.c.bf16 %v3757, %v3757
    %v3775 = vpack.c.bf16 %v3759, %v3759
    %v3776 = vpack.c.bf16 %v3766, %v3766
    %s3777 = scalar_lea.vmem %s9, 1440
    %v3778 = vld [vmem:[%s3777] sm:$0xf]
    %v3779 = vld [vmem:[%s3777 + $0x4] sm:$0xf]
    %v3780 = vld [vmem:[%s3777 + $0x8] sm:$0xf]
    %v3781 = vld [vmem:[%s3777 + $0xc] sm:$0xf]
    %v3782 = vld [vmem:[%s3777 + $0x10] sm:$0xf]
    %v3783 = vld [vmem:[%s3777 + $0x14] sm:$0xf]
    %v3784 = vld [vmem:[%s3777 + $0x18] sm:$0xf]
    %v3785 = vld [vmem:[%s3777 + $0x1c] sm:$0xf]
    %v3786 = vld [vmem:[%s3777 + $0x20] sm:$0xf]
    %v3787 = vld [vmem:[%s3777 + $0x24] sm:$0xf]
    %v3788 = vld [vmem:[%s3777 + $0x28] sm:$0xf]
    %v3789 = vld [vmem:[%s3777 + $0x2c] sm:$0xf]
    %v3790 = vld [vmem:[%s3777 + $0x30] sm:$0xf]
    %v3791 = vld [vmem:[%s3777 + $0x34] sm:$0xf]
    %v3792 = vld [vmem:[%s3777 + $0x38] sm:$0xf]
    %v3793 = vld [vmem:[%s3777 + $0x3c] sm:$0xf]
    %v3794 = vld [vmem:[%s3777 + $0x40] sm:$0xf]
    %v3795 = vld [vmem:[%s3777 + $0x44] sm:$0xf]
    %v3796 = vld [vmem:[%s3777 + $0x48] sm:$0xf]
    %v3797 = vld [vmem:[%s3777 + $0x4c] sm:$0xf]
    %v3798 = vld [vmem:[%s3777 + $0x50] sm:$0xf]
    %v3799 = vld [vmem:[%s3777 + $0x54] sm:$0xf]
    %v3800 = vld [vmem:[%s3777 + $0x58] sm:$0xf]
    %v3801 = vld [vmem:[%s3777 + $0x5c] sm:$0xf]
    %v3802 = vld [vmem:[%s3777 + $0x60] sm:$0xf]
    %v3803 = vld [vmem:[%s3777 + $0x64] sm:$0xf]
    %v3804 = vld [vmem:[%s3777 + $0x68] sm:$0xf]
    %v3805 = vld [vmem:[%s3777 + $0x6c] sm:$0xf]
    %v3806 = vld [vmem:[%s3777 + $0x70] sm:$0xf]
    %v3807 = vld [vmem:[%s3777 + $0x74] sm:$0xf]
    %v3808 = vld [vmem:[%s3777 + $0x78] sm:$0xf]
    %v3809 = vld [vmem:[%s3777 + $0x7c] sm:$0xf]
    %v3810 = vld [vmem:[%s3777 + $0x80] sm:$0xf]
    %v3811 = vld [vmem:[%s3777 + $0x84] sm:$0xf]
    %v3812 = vld [vmem:[%s3777 + $0x88] sm:$0xf]
    %v3813 = vld [vmem:[%s3777 + $0x8c] sm:$0xf]
    %v3814 = vld [vmem:[%s3777 + $0x90] sm:$0xf]
    %v3815 = vld [vmem:[%s3777 + $0x94] sm:$0xf]
    %v3816 = vld [vmem:[%s3777 + $0x98] sm:$0xf]
    %v3817 = vld [vmem:[%s3777 + $0x9c] sm:$0xf]
    %v3818 = vld [vmem:[%s3777 + $0xa0] sm:$0xf]
    %v3819 = vld [vmem:[%s3777 + $0xa4] sm:$0xf]
    %v3820 = vld [vmem:[%s3777 + $0xa8] sm:$0xf]
    %v3821 = vld [vmem:[%s3777 + $0xac] sm:$0xf]
    %v3822 = vld [vmem:[%s3777 + $0xb0] sm:$0xf]
    %v3823 = vld [vmem:[%s3777 + $0xb4] sm:$0xf]
    %v3824 = vld [vmem:[%s3777 + $0xb8] sm:$0xf]
    %v3825 = vld [vmem:[%s3777 + $0xbc] sm:$0xf]
    %v3826 = vld [vmem:[%s3777 + $0xc0] sm:$0xf]
    %v3827 = vld [vmem:[%s3777 + $0xc4] sm:$0xf]
    %v3828 = vld [vmem:[%s3777 + $0xc8] sm:$0xf]
    %v3829 = vld [vmem:[%s3777 + $0xcc] sm:$0xf]
    %v3830 = vld [vmem:[%s3777 + $0xd0] sm:$0xf]
    %v3831 = vld [vmem:[%s3777 + $0xd4] sm:$0xf]
    %v3832 = vld [vmem:[%s3777 + $0xd8] sm:$0xf]
    %v3833 = vld [vmem:[%s3777 + $0xdc] sm:$0xf]
    %v3834 = vld [vmem:[%s3777 + $0xe0] sm:$0xf]
    %v3835 = vld [vmem:[%s3777 + $0xe4] sm:$0xf]
    %v3836 = vld [vmem:[%s3777 + $0xe8] sm:$0xf]
    %v3837 = vld [vmem:[%s3777 + $0xec] sm:$0xf]
    %v3838 = vld [vmem:[%s3777 + $0xf0] sm:$0xf]
    %v3839 = vld [vmem:[%s3777 + $0xf4] sm:$0xf]
    %v3840 = vld [vmem:[%s3777 + $0xf8] sm:$0xf]
    %v3841 = vld [vmem:[%s3777 + $0xfc] sm:$0xf]
    %v3842 = vld [vmem:[%s3777 + $0x100] sm:$0xf]
    %v3843 = vld [vmem:[%s3777 + $0x104] sm:$0xf]
    %v3844 = vld [vmem:[%s3777 + $0x108] sm:$0xf]
    %v3845 = vld [vmem:[%s3777 + $0x10c] sm:$0xf]
    %v3846 = vld [vmem:[%s3777 + $0x110] sm:$0xf]
    %v3847 = vld [vmem:[%s3777 + $0x114] sm:$0xf]
    %v3848 = vld [vmem:[%s3777 + $0x118] sm:$0xf]
    %v3849 = vld [vmem:[%s3777 + $0x11c] sm:$0xf]
    %v3922 = vunpack.c.l.b16 %v3778
    %v3923 = vunpack.c.l.b16 %v3779
    %v3924 = vunpack.c.l.b16 %v3780
    %v3925 = vunpack.c.l.b16 %v3781
    %v3926 = vunpack.c.l.b16 %v3782
    %v3927 = vunpack.c.l.b16 %v3783
    %v3928 = vunpack.c.l.b16 %v3784
    %v3929 = vunpack.c.l.b16 %v3785
    %v3930 = vunpack.c.l.b16 %v3786
    %v3931 = vunpack.c.l.b16 %v3787
    %v3932 = vunpack.c.l.b16 %v3788
    %v3933 = vunpack.c.l.b16 %v3789
    %v3934 = vunpack.c.l.b16 %v3790
    %v3935 = vunpack.c.l.b16 %v3791
    %v3936 = vunpack.c.l.b16 %v3792
    %v3937 = vunpack.c.l.b16 %v3793
    %v3938 = vunpack.c.l.b16 %v3794
    %v3939 = vunpack.c.l.b16 %v3795
    %v3940 = vunpack.c.l.b16 %v3796
    %v3941 = vunpack.c.l.b16 %v3797
    %v3942 = vunpack.c.l.b16 %v3798
    %v3943 = vunpack.c.l.b16 %v3799
    %v3944 = vunpack.c.l.b16 %v3800
    %v3945 = vunpack.c.l.b16 %v3801
    %v3946 = vunpack.c.l.b16 %v3802
    %v3947 = vunpack.c.l.b16 %v3803
    %v3948 = vunpack.c.l.b16 %v3804
    %v3949 = vunpack.c.l.b16 %v3805
    %v3950 = vunpack.c.l.b16 %v3806
    %v3951 = vunpack.c.l.b16 %v3807
    %v3952 = vunpack.c.l.b16 %v3808
    %v3953 = vunpack.c.l.b16 %v3809
    %v3954 = vunpack.c.l.b16 %v3810
    %v3955 = vunpack.c.l.b16 %v3811
    %v3956 = vunpack.c.l.b16 %v3812
    %v3957 = vunpack.c.l.b16 %v3813
    %v3958 = vunpack.c.l.b16 %v3814
    %v3959 = vunpack.c.l.b16 %v3815
    %v3960 = vunpack.c.l.b16 %v3816
    %v3961 = vunpack.c.l.b16 %v3817
    %v3962 = vunpack.c.l.b16 %v3818
    %v3963 = vunpack.c.l.b16 %v3819
    %v3964 = vunpack.c.l.b16 %v3820
    %v3965 = vunpack.c.l.b16 %v3821
    %v3966 = vunpack.c.l.b16 %v3822
    %v3967 = vunpack.c.l.b16 %v3823
    %v3968 = vunpack.c.l.b16 %v3824
    %v3969 = vunpack.c.l.b16 %v3825
    %v3970 = vunpack.c.l.b16 %v3826
    %v3971 = vunpack.c.l.b16 %v3827
    %v3972 = vunpack.c.l.b16 %v3828
    %v3973 = vunpack.c.l.b16 %v3829
    %v3974 = vunpack.c.l.b16 %v3830
    %v3975 = vunpack.c.l.b16 %v3831
    %v3976 = vunpack.c.l.b16 %v3832
    %v3977 = vunpack.c.l.b16 %v3833
    %v3978 = vunpack.c.l.b16 %v3834
    %v3979 = vunpack.c.l.b16 %v3835
    %v3980 = vunpack.c.l.b16 %v3836
    %v3981 = vunpack.c.l.b16 %v3837
    %v3982 = vunpack.c.l.b16 %v3838
    %v3983 = vunpack.c.l.b16 %v3839
    %v3984 = vunpack.c.l.b16 %v3840
    %v3985 = vunpack.c.l.b16 %v3841
    %v3986 = vunpack.c.l.b16 %v3842
    %v3987 = vunpack.c.l.b16 %v3843
    %v3988 = vunpack.c.l.b16 %v3844
    %v3989 = vunpack.c.l.b16 %v3845
    %v3990 = vunpack.c.l.b16 %v3846
    %v3991 = vunpack.c.l.b16 %v3847
    %v3992 = vunpack.c.l.b16 %v3848
    %v3993 = vunpack.c.l.b16 %v3849
    %v3994 = vpack.c.b16 %v3923, %v3922
    %v3995 = vpack.c.b16 %v3925, %v3924
    %v3996 = vpack.c.b16 %v3927, %v3926
    %v3997 = vpack.c.b16 %v3929, %v3928
    %v3998 = vpack.c.b16 %v3931, %v3930
    %v3999 = vpack.c.b16 %v3933, %v3932
    %v4000 = vpack.c.b16 %v3935, %v3934
    %v4001 = vpack.c.b16 %v3937, %v3936
    %v4002 = vpack.c.b16 %v3939, %v3938
    %v4003 = vpack.c.b16 %v3941, %v3940
    %v4004 = vpack.c.b16 %v3943, %v3942
    %v4005 = vpack.c.b16 %v3945, %v3944
    %v4006 = vpack.c.b16 %v3947, %v3946
    %v4007 = vpack.c.b16 %v3949, %v3948
    %v4008 = vpack.c.b16 %v3951, %v3950
    %v4009 = vpack.c.b16 %v3953, %v3952
    %v4010 = vpack.c.b16 %v3955, %v3954
    %v4011 = vpack.c.b16 %v3957, %v3956
    %v4012 = vpack.c.b16 %v3959, %v3958
    %v4013 = vpack.c.b16 %v3961, %v3960
    %v4014 = vpack.c.b16 %v3963, %v3962
    %v4015 = vpack.c.b16 %v3965, %v3964
    %v4016 = vpack.c.b16 %v3967, %v3966
    %v4017 = vpack.c.b16 %v3969, %v3968
    %v4018 = vpack.c.b16 %v3971, %v3970
    %v4019 = vpack.c.b16 %v3973, %v3972
    %v4020 = vpack.c.b16 %v3975, %v3974
    %v4021 = vpack.c.b16 %v3977, %v3976
    %v4022 = vpack.c.b16 %v3979, %v3978
    %v4023 = vpack.c.b16 %v3981, %v3980
    %v4024 = vpack.c.b16 %v3983, %v3982
    %v4025 = vpack.c.b16 %v3985, %v3984
    %v4026 = vpack.c.b16 %v3987, %v3986
    %v4027 = vpack.c.b16 %v3989, %v3988
    %v4028 = vpack.c.b16 %v3991, %v3990
    %v4029 = vpack.c.b16 %v3993, %v3992
    %v4067 = vsel %vm1814, %v3776, 0
    %4069 = vmatprep.subr.bf16.mxu0 0
    %4070 = vmatpush1.bf16.msra.mxu0 %v3994
    %4071 = vmatprep.subr.bf16.mxu0 0
    %4072 = vmatpush1.bf16.msra.mxu0 %v3995
    %4073 = vmatprep.subr.bf16.mxu0 0
    %4074 = vmatpush1.bf16.msra.mxu0 %v3996
    %4075 = vmatprep.subr.bf16.mxu0 0
    %4076 = vmatpush1.bf16.msra.mxu0 %v3997
    %4077 = vmatprep.subr.bf16.mxu0 0
    %4078 = vmatpush1.bf16.msra.mxu0 %v3998
    %4079 = vmatprep.subr.bf16.mxu0 0
    %4080 = vmatpush1.bf16.msra.mxu0 %v3999
    %4081 = vmatprep.subr.bf16.mxu0 0
    %4082 = vmatpush1.bf16.msra.mxu0 %v4000
    %4083 = vmatprep.subr.bf16.mxu0 0
    %4084 = vmatpush1.bf16.msra.mxu0 %v4001
    %4085 = vmatprep.subr.bf16.mxu0 0
    %4086 = vmatpush1.bf16.msra.mxu0 %v4002
    %4087 = vmatprep.subr.bf16.mxu0 0
    %4088 = vmatpush1.bf16.msra.mxu0 %v4003
    %4089 = vmatprep.subr.bf16.mxu0 0
    %4090 = vmatpush1.bf16.msra.mxu0 %v4004
    %4091 = vmatprep.subr.bf16.mxu0 0
    %4092 = vmatpush1.bf16.msra.mxu0 %v4005
    %4093 = vmatprep.subr.bf16.mxu0 0
    %4094 = vmatpush1.bf16.msra.mxu0 %v4006
    %4095 = vmatprep.subr.bf16.mxu0 0
    %4096 = vmatpush1.bf16.msra.mxu0 %v4007
    %4097 = vmatprep.subr.bf16.mxu0 0
    %4098 = vmatpush1.bf16.msra.mxu0 %v4008
    %4099 = vmatprep.subr.bf16.mxu0 0
    %4100 = vmatpush1.bf16.msra.mxu0 %v4009
    %4101 = vmatprep.mubr.bf16.mxu0 %v3773
    %4102 = vmatmul.mubr.bf16.gmra.mrb[0].mxu0 %v3772
    %v4103 = vpop.f32.mrb[0].mxu0
    %v4104 = vadd.f32 0.0, %v4103
    %v4105 = vpop.f32.mrb[0].mxu0
    %v4106 = vpop.f32.mrb[0].mxu0
    %v4107 = vpop.f32.mrb[0].mxu0
    %4108 = vdwg.mxu0
    %4109 = vmatprep.subr.bf16.mxu0 0
    %4110 = vmatpush1.bf16.msra.mxu0 %v4010
    %4111 = vmatprep.subr.bf16.mxu0 0
    %4112 = vmatpush1.bf16.msra.mxu0 %v4011
    %4113 = vmatprep.subr.bf16.mxu0 0
    %4114 = vmatpush1.bf16.msra.mxu0 %v4012
    %4115 = vmatprep.subr.bf16.mxu0 0
    %4116 = vmatpush1.bf16.msra.mxu0 %v4013
    %4117 = vmatprep.subr.bf16.mxu0 0
    %4118 = vmatpush1.bf16.msra.mxu0 %v4014
    %4119 = vmatprep.subr.bf16.mxu0 0
    %4120 = vmatpush1.bf16.msra.mxu0 %v4015
    %4121 = vmatprep.subr.bf16.mxu0 0
    %4122 = vmatpush1.bf16.msra.mxu0 %v4016
    %4123 = vmatprep.subr.bf16.mxu0 0
    %4124 = vmatpush1.bf16.msra.mxu0 %v4017
    %4125 = vmatprep.subr.bf16.mxu0 0
    %4126 = vmatpush1.bf16.msra.mxu0 %v4018
    %4127 = vmatprep.subr.bf16.mxu0 0
    %4128 = vmatpush1.bf16.msra.mxu0 %v4019
    %4129 = vmatprep.subr.bf16.mxu0 0
    %4130 = vmatpush1.bf16.msra.mxu0 %v4020
    %4131 = vmatprep.subr.bf16.mxu0 0
    %4132 = vmatpush1.bf16.msra.mxu0 %v4021
    %4133 = vmatprep.subr.bf16.mxu0 0
    %4134 = vmatpush1.bf16.msra.mxu0 %v4022
    %4135 = vmatprep.subr.bf16.mxu0 0
    %4136 = vmatpush1.bf16.msra.mxu0 %v4023
    %4137 = vmatprep.subr.bf16.mxu0 0
    %4138 = vmatpush1.bf16.msra.mxu0 %v4024
    %4139 = vmatprep.subr.bf16.mxu0 0
    %4140 = vmatpush1.bf16.msra.mxu0 %v4025
    %4141 = vmatprep.mubr.bf16.mxu0 %v3775
    %4142 = vmatmul.mubr.bf16.gmra.mrb[0].mxu0 %v3774
    %v4143 = vpop.f32.mrb[0].mxu0
    %v4144 = vadd.f32 %v4104, %v4143
    %v4145 = vpop.f32.mrb[0].mxu0
    %v4146 = vpop.f32.mrb[0].mxu0
    %v4147 = vpop.f32.mrb[0].mxu0
    %4148 = vdwg.mxu0
    %4149 = vmatprep.subr.bf16.mxu0 0
    %4150 = vmatpush1.bf16.msra.mxu0 %v4026
    %4151 = vmatprep.subr.bf16.mxu0 0
    %4152 = vmatpush1.bf16.msra.mxu0 %v4027
    %4153 = vmatprep.subr.bf16.mxu0 0
    %4154 = vmatpush1.bf16.msra.mxu0 %v4028
    %4155 = vmatprep.subr.bf16.mxu0 0
    %4156 = vmatpush1.bf16.msra.mxu0 %v4029
    %4157 = vmatprep.subr.bf16.mxu0 0
    %4158 = vmatpush1.bf16.msra.mxu0 0
    %4159 = vmatprep.subr.bf16.mxu0 0
    %4160 = vmatpush1.bf16.msra.mxu0 0
    %4161 = vmatprep.subr.bf16.mxu0 0
    %4162 = vmatpush1.bf16.msra.mxu0 0
    %4163 = vmatprep.subr.bf16.mxu0 0
    %4164 = vmatpush1.bf16.msra.mxu0 0
    %4165 = vmatprep.subr.bf16.mxu0 0
    %4166 = vmatpush1.bf16.msra.mxu0 0
    %4167 = vmatprep.subr.bf16.mxu0 0
    %4168 = vmatpush1.bf16.msra.mxu0 0
    %4169 = vmatprep.subr.bf16.mxu0 0
    %4170 = vmatpush1.bf16.msra.mxu0 0
    %4171 = vmatprep.subr.bf16.mxu0 0
    %4172 = vmatpush1.bf16.msra.mxu0 0
    %4173 = vmatprep.subr.bf16.mxu0 0
    %4174 = vmatpush1.bf16.msra.mxu0 0
    %4175 = vmatprep.subr.bf16.mxu0 0
    %4176 = vmatpush1.bf16.msra.mxu0 0
    %4177 = vmatprep.subr.bf16.mxu0 0
    %4178 = vmatpush1.bf16.msra.mxu0 0
    %4179 = vmatprep.subr.bf16.mxu0 0
    %4180 = vmatpush1.bf16.msra.mxu0 0
    %4181 = vmatprep.mubr.bf16.mxu0 0
    %4182 = vmatmul.mubr.bf16.gmra.mrb[0].mxu0 %v4067
    %v4183 = vpop.f32.mrb[0].mxu0
    %v4184 = vadd.f32 %v4144, %v4183
    %v4185 = vpop.f32.mrb[0].mxu0
    %v4186 = vpop.f32.mrb[0].mxu0
    %v4187 = vpop.f32.mrb[0].mxu0
    %4188 = vdwg.mxu0
    %v4189 = vadd.f32 %v3740, %v4184
    %v4190 = vld [vmem:[%s11] sm:$0xff]
    %v4191 = vld [vmem:[%s11 + $0x8] sm:$0xff]
    %v4192 = vld [vmem:[%s11 + $0x10] sm:$0xff]
    %v4193 = vld [vmem:[%s11 + $0x18] sm:$0xff]
    %v4194 = vld [vmem:[%s11 + $0x20] sm:$0xff]
    %v4195 = vld [vmem:[%s11 + $0x28] sm:$0xff]
    %v4196 = vld [vmem:[%s11 + $0x30] sm:$0xff]
    %v4197 = vld [vmem:[%s11 + $0x38] sm:$0xf]
    %v4198 = vld [vmem:[%s12] sm:$0x1]
    %v4200 = vlaneseq
    %v4201 = vshrl.u32 %v4200, 7
    %v4202 = vsub.s32 0, %v4201
    %v4203 = vrot.slane %v4198, %v4202
    %vm4205 = vcmask 490496
    %v4207 = vsel %vm4205, %v4189, 0
    %vm4209 = vcmask 1043456
    %v4211 = vsel %vm4209, %v4197, 0
    %4213 = vmatprep.subr.mxu0 0.0
    %4214 = vmatpush1.msra.mxu0 %v4190
    %4215 = vmatprep.subr.mxu0 0.0
    %4216 = vmatpush1.msra.mxu0 %v4191
    %4217 = vmatprep.subr.mxu0 0.0
    %4218 = vmatpush1.msra.mxu0 %v4192
    %4219 = vmatprep.subr.mxu0 0.0
    %4220 = vmatpush1.msra.mxu0 %v4193
    %4221 = vmatprep.subr.mxu0 0.0
    %4222 = vmatpush1.msra.mxu0 %v4194
    %4223 = vmatprep.subr.mxu0 0.0
    %4224 = vmatpush1.msra.mxu0 %v4195
    %4225 = vmatprep.subr.mxu0 0.0
    %4226 = vmatpush1.msra.mxu0 %v4196
    %4227 = vmatprep.subr.mxu0 0.0
    %4228 = vmatpush1.msra.mxu0 %v4211
    %4229 = vmatprep.subr.mxu0 0.0
    %4230 = vmatpush1.msra.mxu0 0.0
    %4231 = vmatprep.subr.mxu0 0.0
    %4232 = vmatpush1.msra.mxu0 0.0
    %4233 = vmatprep.subr.mxu0 0.0
    %4234 = vmatpush1.msra.mxu0 0.0
    %4235 = vmatprep.subr.mxu0 0.0
    %4236 = vmatpush1.msra.mxu0 0.0
    %4237 = vmatprep.subr.mxu0 0.0
    %4238 = vmatpush1.msra.mxu0 0.0
    %4239 = vmatprep.subr.mxu0 0.0
    %4240 = vmatpush1.msra.mxu0 0.0
    %4241 = vmatprep.subr.mxu0 0.0
    %4242 = vmatpush1.msra.mxu0 0.0
    %4243 = vmatprep.subr.mxu0 0.0
    %4244 = vmatpush1.msra.mxu0 0.0
    %4245 = vmatprep.subr.mxu0 0.0
    %4246 = vmatpush1.msra.mxu0 0.0
    %4247 = vmatprep.subr.mxu0 0.0
    %4248 = vmatpush1.msra.mxu0 0.0
    %4249 = vmatprep.subr.mxu0 0.0
    %4250 = vmatpush1.msra.mxu0 0.0
    %4251 = vmatprep.subr.mxu0 0.0
    %4252 = vmatpush1.msra.mxu0 0.0
    %4253 = vmatprep.subr.mxu0 0.0
    %4254 = vmatpush1.msra.mxu0 0.0
    %4255 = vmatprep.subr.mxu0 0.0
    %4256 = vmatpush1.msra.mxu0 0.0
    %4257 = vmatprep.subr.mxu0 0.0
    %4258 = vmatpush1.msra.mxu0 0.0
    %4259 = vmatprep.subr.mxu0 0.0
    %4260 = vmatpush1.msra.mxu0 0.0
    %4261 = vmatprep.subr.mxu0 0.0
    %4262 = vmatpush1.msra.mxu0 0.0
    %4263 = vmatprep.subr.mxu0 0.0
    %4264 = vmatpush1.msra.mxu0 0.0
    %4265 = vmatprep.subr.mxu0 0.0
    %4266 = vmatpush1.msra.mxu0 0.0
    %4267 = vmatprep.subr.mxu0 0.0
    %4268 = vmatpush1.msra.mxu0 0.0
    %4269 = vmatprep.subr.mxu0 0.0
    %4270 = vmatpush1.msra.mxu0 0.0
    %4271 = vmatprep.subr.mxu0 0.0
    %4272 = vmatpush1.msra.mxu0 0.0
    %4273 = vmatprep.subr.mxu0 0.0
    %4274 = vmatpush1.msra.mxu0 0.0
    %4275 = vmatprep.subr.mxu0 0.0
    %4276 = vmatpush1.msra.mxu0 0.0
    %4277 = vmatprep.mubr.f32.mxu0 0.0
    %4278 = vmatmul.mubr.f32.gmra.mrb[0].mxu0 %v4207
    %v4279 = vpop.f32.mrb[0].mxu0
    %v4280 = vadd.f32 %v4203, %v4279
    %v4281 = vpop.f32.mrb[0].mxu0
    %4282 = vdwg.mxu0
    %vm4283 = vcmask 9216
    %v4284 = vsel %vm4283, %v4280, -inf
    %v4285 = vrot.slane %v4284, 4
    %v4286 = vmax.f32 %v4284, %v4285
    %v4287 = vrot.slane %v4286, 2
    %v4288 = vmax.f32 %v4286, %v4287
    %v4289 = vrot.slane %v4288, 1
    %v4290 = vmax.f32 %v4288, %v4289
    %v4291 = vsub.f32 %v4280, %v4290
    %v4292 = vmul.f32 %v4291, 1.442695
    %v4293 = vpow.pop %v4292
    %v4294 = vsel %vm4283, %v4293, 0.0
    %v4295 = vrot.slane %v4294, 4
    %v4296 = vadd.f32 %v4294, %v4295
    %v4297 = vrot.slane %v4296, 2
    %v4298 = vadd.f32 %v4296, %v4297
    %v4299 = vrot.slane %v4298, 1
    %v4300 = vadd.f32 %v4298, %v4299
    %v4301 = vrcp.pop %v4300
    %v4302 = vmul.f32 %v4293, %v4301
    %4303 = vst.msk [vmem:[#allocation16] sm:$0x3] %vm4283, %v4302
    // Predicated region
    $region86: #{my_net_forward.1} parent=1 // pred_check
      _
    $region87: #{my_net_forward.1} parent=1 // pred_check_branch
      %4305 = sbr.rel (0) target = $region89
    $region88: #{my_net_forward.1} parent=1 // pred_region
      %s4307 = ssub.s32 32, 32
      %4308 = vsyncadd [#allocation3], %s4307
      %s4310 = sshll.u32 [#allocation16], 4
      %s4311 = int_to_ptr.vmem [resolvable:$true] %s4310
      %4313 = dma.vmem_to_hbm [thread:$0]  %s4311, 32, %s13, [#allocation3]
    $region89: #{my_net_forward.1} parent=1 // pred_fallthru
      _
    // Predicated region
    $region90: #{my_net_forward.1} parent=1 // pred_check
      _
    $region91: #{my_net_forward.1} parent=1 // pred_check_branch
      %4315 = sbr.rel (0) target = $region93
    $region92: #{my_net_forward.1} parent=1 // pred_region
      %4316 = dma.done [#allocation3], 32
    $region93: #{my_net_forward.1} parent=1 // pred_fallthru
      _
    %4317 = vsyncpa [#allocation3], 1
    %4318 = vsyncpa [#allocation4], 1
    %4319 = vsyncpa [#allocation6], 1
    %4320 = vsyncpa [#allocation9], 1
    %4321 = vsyncpa [#allocation12], 1
    %4322 = vsyncpa [#allocation15], 1

</llo_original>
